<compile_context>
chip_gen: v5e
topology: v5e:2x2
jax: 0.10.0
libtpu: 0.0.40
codegen_flags: <defaults>
</compile_context>

<pallas_src>
import functools
import math

import jax
import jax.numpy as jnp
from jax.experimental import pallas as pl
from jax.experimental.pallas import tpu as pltpu


def build_pe_table(d_model: int, resolution: int = 100) -> jnp.ndarray:
    """Replicates FractionalEncoder.__init__'s `pe` buffer (resolution, d_model//2).

    Only used by the pure-JAX reference check in __main__."""
    half_d = d_model // 2
    x = jnp.linspace(0.0, resolution - 1, resolution).reshape(resolution, 1)
    fraction = jnp.linspace(0.0, half_d - 1, half_d).reshape(1, half_d)
    fraction = jnp.tile(fraction, (resolution, 1))
    pe = jnp.zeros((resolution, half_d), dtype=jnp.float32)
    pe = pe.at[:, 0::2].set(
        jnp.sin(x / jnp.power(50.0, 2.0 * fraction[:, 0::2] / half_d)))
    pe = pe.at[:, 1::2].set(
        jnp.cos(x / jnp.power(50.0, 2.0 * fraction[:, 1::2] / half_d)))
    return pe.astype(jnp.float32)


def _round_up(v: int, m: int) -> int:
    return ((v + m - 1) // m) * m


def _make_tables(half_d: int, half_d_pad: int, pack: int):
    """Small resident constants.

    sel[a, c]   = 1 if c // half_d_pad == a else 0         (pack, cw)  -- 0/1 selector
    invf[0, c]  = 50^(-2*(c % half_d_pad)/half_d)           (1, cw)
    phase[0, c] = 0 for even freq columns, pi/2 for odd     (1, cw)
    """
    cw = pack * half_d_pad
    c = jnp.arange(cw)
    d = c % half_d_pad                      # frequency column within a group
    grp = c // half_d_pad                   # which packed element in the group
    d_eff = jnp.minimum(d, half_d - 1).astype(jnp.float32)   # padded cols: don't-care
    inv_freq = jnp.power(50.0, -2.0 * d_eff / half_d).astype(jnp.float32)
    phase = jnp.where(d % 2 == 0, 0.0, jnp.pi / 2.0).astype(jnp.float32)
    sel = (grp[None, :] == jnp.arange(pack)[:, None]).astype(jnp.float32)
    return sel, inv_freq.reshape(1, cw), phase.reshape(1, cw)


def _frac_encoder_kernel(x_ref, sel_ref, invf_ref, phase_ref, o_ref, *,
                         resolution: int, log10: bool, pack: int,
                         half_d_pad: int):
    # x_ref:     (tin, 128) f32 fractions, lane-dense (flat element order)
    # sel_ref:   (pack, cw) f32 0/1 selector (unused when pack == 1)
    # invf_ref:  (1, cw)    f32 inverse frequencies
    # phase_ref: (1, cw)    f32 phases (0 / pi/2)
    # o_ref:     (tin, 128*half_d_pad) f32, row-major identical to
    #            (tin*128, half_d_pad)
    x = x_ref[...]
    if log10:
        lx = jnp.log(x) * 1.4426950408889634            # log2(x)
        x = 0.0025 * lx * lx
        x = jnp.minimum(x, 1.0)
    x = jnp.maximum(x, 1.0 / resolution)
    # torch only clamps the min in the non-log10 path; clamping the max keeps
    # the index inside the table (torch would raise on fractions > 1).
    x = jnp.minimum(x, 1.0)
    idx = jnp.round(x * resolution) - 1.0               # integral f32, [0, res-1]

    invf = invf_ref[...]
    ph = phase_ref[...]
    cw = pack * half_d_pad
    if pack > 1:
        sel = sel_ref[...]

    # Expand 128 input lanes -> 128*half_d_pad output lanes, one lane group of
    # `pack` input elements (width cw = lcm(half_d_pad, 128)) at a time, so
    # every store is a full 128-lane store at a 128-aligned column offset.
    for j in range(128 // pack):
        if pack == 1:
            # half_d_pad is a multiple of 128: plain lane-broadcast multiply.
            theta = idx[:, j:j + 1] * invf
        else:
            # 0/1 selector matmul is exact under any MXU precision (one nonzero
            # product per output); inv_freq is applied in f32 on the VPU.
            theta = jnp.dot(idx[:, j * pack:(j + 1) * pack], sel,
                            preferred_element_type=jnp.float32) * invf
        # phase = pi/2 on odd columns turns sin into cos.
        o_ref[:, j * cw:(j + 1) * cw] = jnp.sin(theta + ph)


_TARGET_OUT_BLOCK_BYTES = 3 << 20     # ~3 MiB output tile (double-buffered)


def _choose_tile_rows(m_rows: int, out_width: int) -> int:
    """Rows of the packed arrays per grid step."""
    if m_rows <= 8:
        return m_rows                                   # single full-dim block
    t = max(8, (_TARGET_OUT_BLOCK_BYTES // (out_width * 4)) // 8 * 8)
    # Keep >=4 grid steps when possible: v7x has 2 TensorCores and each wants
    # >=2 steps to double-buffer.
    steps_cap = max(8, _round_up(-(-m_rows // 4), 8))
    return max(8, min(t, steps_cap, 1024))


def fractional_encoder(x: jnp.ndarray, d_model: int, *, resolution: int = 100,
                       log10: bool = False) -> jnp.ndarray:
    """x: any-shape fractional amounts -> x.shape + (d_model//2,) f32."""
    half_d = d_model // 2
    assert half_d >= 1
    half_d_pad = _round_up(half_d, 8)                   # padded freq columns sliced off
    pack = 128 // math.gcd(half_d_pad, 128)             # lcm(half_d_pad,128)//half_d_pad
    cw = pack * half_d_pad                              # chunk width (multiple of 128)
    wb = 128 * half_d_pad                               # output block width

    orig_shape = x.shape
    n = int(x.size)
    m_rows = max(1, -(-n // 128))
    n_pad = m_rows * 128

    x_flat = jnp.reshape(x, (-1,)).astype(jnp.float32)
    if n_pad != n:
        # benign in-range pad value; padded rows are sliced off below
        x_flat = jnp.pad(x_flat, (0, n_pad - n), constant_values=0.5)
    x2 = x_flat.reshape(m_rows, 128)                    # lane-dense input

    sel, invf, phase = _make_tables(half_d, half_d_pad, pack)

    tin = _choose_tile_rows(m_rows, wb)
    grid = -(-m_rows // tin)                            # partial last block is masked

    in_block = tin * 128 * 4
    out_block = tin * wb * 4
    const_bytes = (sel.size + invf.size + phase.size) * 4
    vmem_bytes = 2 * (in_block + out_block) + 2 * const_bytes
    # Explicit scoped-VMEM budget (v5e default is 16 MiB); generous 2x margin,
    # capped well under every generation's physical VMEM.
    vmem_limit = int(min(48 << 20, max(24 << 20, 2 * vmem_bytes)))

    out = pl.pallas_call(
        functools.partial(_frac_encoder_kernel, resolution=resolution,
                          log10=log10, pack=pack, half_d_pad=half_d_pad),
        out_shape=jax.ShapeDtypeStruct((m_rows, wb), jnp.float32),
        grid=(grid,),
        in_specs=[
            pl.BlockSpec((tin, 128), lambda i: (i, 0)),    # streamed, lane-dense
            pl.BlockSpec((pack, cw), lambda i: (0, 0)),    # resident constants
            pl.BlockSpec((1, cw), lambda i: (0, 0)),
            pl.BlockSpec((1, cw), lambda i: (0, 0)),
        ],
        out_specs=pl.BlockSpec((tin, wb), lambda i: (i, 0)),
        compiler_params=pltpu.CompilerParams(
            dimension_semantics=("parallel",),
            vmem_limit_bytes=vmem_limit),
    )(x2, sel, invf, phase)

    # (m_rows, 128*half_d_pad) is row-major identical to (n_pad, half_d_pad);
    # the slice below only copies when n % 128 != 0 or half_d % 8 != 0.
    out = out.reshape(n_pad, half_d_pad)
    if n_pad != n or half_d_pad != half_d:
        out = out[:n, :half_d]
    return out.reshape(*orig_shape, half_d)


if __name__ == "__main__":
    resolution = 100
    B, S = 2, 8
    key = jax.random.PRNGKey(0)
    x = jax.random.uniform(key, (B, S), dtype=jnp.float32,
                           minval=0.01, maxval=1.0)

    # Tolerance covers f32 sin / argument differences between the in-kernel
    # evaluation and the precomputed table; a wrong row would be O(1).
    TOL = 2e-3

    def ref_encode(xv, d_model, log10=False):
        pe = build_pe_table(d_model, resolution)
        xv = xv.astype(jnp.float32)
        if log10:
            xv = 0.0025 * jnp.log2(xv) ** 2
            xv = jnp.minimum(xv, 1.0)
        xv = jnp.maximum(xv, 1.0 / resolution)
        idx = jnp.round(xv * resolution).astype(jnp.int32) - 1
        return pe[idx]

    # --- test 1: small d_model (half_d=16 -> pack=8 selector-matmul path) ---
    d_model = 32
    out = jax.block_until_ready(
        fractional_encoder(x, d_model, resolution=resolution, log10=False))
    ref = ref_encode(x, d_model)
    assert out.shape == (B, S, d_model // 2)
    assert float(jnp.max(jnp.abs(out - ref))) < TOL, "mismatch (d_model=32)"

    # --- test 2: larger d_model (half_d=128 -> pack=1 broadcast path) ---
    d_model = 256
    out = jax.block_until_ready(
        fractional_encoder(x, d_model, resolution=resolution, log10=False))
    ref = ref_encode(x, d_model)
    assert out.shape == (B, S, d_model // 2)
    assert float(jnp.max(jnp.abs(out - ref))) < TOL, "mismatch (d_model=256)"

    # --- test 3: log10 path (inputs are powers of two so the computed index is
    #             far from any rounding boundary) ---
    d_model = 32
    x_log = (2.0 ** -jnp.arange(1, B * S + 1, dtype=jnp.float32)).reshape(B, S)
    out = jax.block_until_ready(
        fractional_encoder(x_log, d_model, resolution=resolution, log10=True))
    ref = ref_encode(x_log, d_model, log10=True)
    assert out.shape == (B, S, d_model // 2)
    assert float(jnp.max(jnp.abs(out - ref))) < TOL, "mismatch (log10 path)"

    # --- test 4: multi-step grid with a partial last block and wrapper-side
    #             slice (n = 2100 is not a multiple of 128) ---
    d_model = 32
    x_big = jax.random.uniform(jax.random.PRNGKey(1), (3, 700),
                               dtype=jnp.float32, minval=0.01, maxval=1.0)
    out = jax.block_until_ready(
        fractional_encoder(x_big, d_model, resolution=resolution, log10=False))
    ref = ref_encode(x_big, d_model)
    assert out.shape == (3, 700, d_model // 2)
    assert float(jnp.max(jnp.abs(out - ref))) < TOL, "mismatch (partial block)"

    print("KERNEL_OK")
</pallas_src>

<mosaic_0001>
module attributes {stable_mosaic.version = 11 : i64} {
  func.func @_frac_encoder_kernel(%arg0: i32, %arg1: memref<1x128xf32, #tpu.memory_space<vmem>>, %arg2: memref<8x128xf32, #tpu.memory_space<vmem>>, %arg3: memref<1x128xf32, #tpu.memory_space<vmem>>, %arg4: memref<1x128xf32, #tpu.memory_space<vmem>>, %arg5: memref<1x2048xf32, #tpu.memory_space<vmem>>) attributes {dimension_semantics = [#tpu.dimension_semantics<parallel>], iteration_bounds = array<i64: 1>, scalar_prefetch = 0 : i64, scratch_operands = 0 : i64, tpu.core_type = #tpu.core_type<tc>, window_params = [{transform_indices = @transform_0, window_bounds = array<i64: 1, 128>}, {pipeline_mode = #tpu.pipeline_mode<synchronous>, transform_indices = @transform_1, window_bounds = array<i64: 8, 128>}, {pipeline_mode = #tpu.pipeline_mode<synchronous>, transform_indices = @transform_2, window_bounds = array<i64: 1, 128>}, {pipeline_mode = #tpu.pipeline_mode<synchronous>, transform_indices = @transform_3, window_bounds = array<i64: 1, 128>}, {transform_indices = @transform_4, window_bounds = array<i64: 1, 2048>}]} {
    %c0 = arith.constant 0 : index
    %c0_0 = arith.constant 0 : index
    %0 = vector.load %arg1[%c0, %c0_0] : memref<1x128xf32, #tpu.memory_space<vmem>>, vector<1x128xf32>
    %cst = arith.constant 0.00999999977 : f32
    %1 = vector.broadcast %cst : f32 to vector<1x128xf32>
    %2 = arith.maximumf %0, %1 : vector<1x128xf32>
    %cst_1 = arith.constant 1.000000e+00 : f32
    %3 = vector.broadcast %cst_1 : f32 to vector<1x128xf32>
    %4 = arith.minimumf %2, %3 : vector<1x128xf32>
    %cst_2 = arith.constant 1.000000e+02 : f32
    %5 = vector.broadcast %cst_2 : f32 to vector<1x128xf32>
    %6 = arith.mulf %4, %5 : vector<1x128xf32>
    %7 = math.roundeven %6 : vector<1x128xf32>
    %cst_3 = arith.constant 1.000000e+00 : f32
    %8 = vector.broadcast %cst_3 : f32 to vector<1x128xf32>
    %9 = arith.subf %7, %8 : vector<1x128xf32>
    %c0_4 = arith.constant 0 : index
    %c0_5 = arith.constant 0 : index
    %10 = vector.load %arg3[%c0_4, %c0_5] : memref<1x128xf32, #tpu.memory_space<vmem>>, vector<1x128xf32>
    %c0_6 = arith.constant 0 : index
    %c0_7 = arith.constant 0 : index
    %11 = vector.load %arg4[%c0_6, %c0_7] : memref<1x128xf32, #tpu.memory_space<vmem>>, vector<1x128xf32>
    %c0_8 = arith.constant 0 : index
    %c0_9 = arith.constant 0 : index
    %12 = vector.load %arg2[%c0_8, %c0_9] : memref<8x128xf32, #tpu.memory_space<vmem>>, vector<8x128xf32>
    %13 = vector.extract_strided_slice %9 {offsets = [0, 0], sizes = [1, 8], strides = [1, 1]} : vector<1x128xf32> to vector<1x8xf32>
    %cst_10 = arith.constant dense<0.000000e+00> : vector<1x128xf32>
    %14 = tpu.matmul %13, %12, %cst_10 {dimension_numbers = #tpu.dot_dimension_numbers<[1], [0], [0], [1], [0, 0, 1, 1], [], []>} : vector<1x8xf32>, vector<8x128xf32>, vector<1x128xf32> -> vector<1x128xf32>
    %15 = arith.mulf %14, %10 : vector<1x128xf32>
    %16 = arith.addf %15, %11 : vector<1x128xf32>
    %17 = math.sin %16 : vector<1x128xf32>
    %c0_11 = arith.constant 0 : index
    %c0_12 = arith.constant 0 : index
    %18 = vector.load %arg5[%c0_11, %c0_12] : memref<1x2048xf32, #tpu.memory_space<vmem>>, vector<1x128xf32>
    tpu.vector_store %arg5[%c0_11, %c0_12], %17 {strides = array<i32>} : memref<1x2048xf32, #tpu.memory_space<vmem>>, vector<1x128xf32>,
    %19 = vector.extract_strided_slice %9 {offsets = [0, 8], sizes = [1, 8], strides = [1, 1]} : vector<1x128xf32> to vector<1x8xf32>
    %cst_13 = arith.constant dense<0.000000e+00> : vector<1x128xf32>
    %20 = tpu.matmul %19, %12, %cst_13 {dimension_numbers = #tpu.dot_dimension_numbers<[1], [0], [0], [1], [0, 0, 1, 1], [], []>} : vector<1x8xf32>, vector<8x128xf32>, vector<1x128xf32> -> vector<1x128xf32>
    %21 = arith.mulf %20, %10 : vector<1x128xf32>
    %22 = arith.addf %21, %11 : vector<1x128xf32>
    %23 = math.sin %22 : vector<1x128xf32>
    %c0_14 = arith.constant 0 : index
    %c128 = arith.constant 128 : index
    %24 = vector.load %arg5[%c0_14, %c128] : memref<1x2048xf32, #tpu.memory_space<vmem>>, vector<1x128xf32>
    tpu.vector_store %arg5[%c0_14, %c128], %23 {strides = array<i32>} : memref<1x2048xf32, #tpu.memory_space<vmem>>, vector<1x128xf32>,
    %25 = vector.extract_strided_slice %9 {offsets = [0, 16], sizes = [1, 8], strides = [1, 1]} : vector<1x128xf32> to vector<1x8xf32>
    %cst_15 = arith.constant dense<0.000000e+00> : vector<1x128xf32>
    %26 = tpu.matmul %25, %12, %cst_15 {dimension_numbers = #tpu.dot_dimension_numbers<[1], [0], [0], [1], [0, 0, 1, 1], [], []>} : vector<1x8xf32>, vector<8x128xf32>, vector<1x128xf32> -> vector<1x128xf32>
    %27 = arith.mulf %26, %10 : vector<1x128xf32>
    %28 = arith.addf %27, %11 : vector<1x128xf32>
    %29 = math.sin %28 : vector<1x128xf32>
    %c0_16 = arith.constant 0 : index
    %c256 = arith.constant 256 : index
    %30 = vector.load %arg5[%c0_16, %c256] : memref<1x2048xf32, #tpu.memory_space<vmem>>, vector<1x128xf32>
    tpu.vector_store %arg5[%c0_16, %c256], %29 {strides = array<i32>} : memref<1x2048xf32, #tpu.memory_space<vmem>>, vector<1x128xf32>,
    %31 = vector.extract_strided_slice %9 {offsets = [0, 24], sizes = [1, 8], strides = [1, 1]} : vector<1x128xf32> to vector<1x8xf32>
    %cst_17 = arith.constant dense<0.000000e+00> : vector<1x128xf32>
    %32 = tpu.matmul %31, %12, %cst_17 {dimension_numbers = #tpu.dot_dimension_numbers<[1], [0], [0], [1], [0, 0, 1, 1], [], []>} : vector<1x8xf32>, vector<8x128xf32>, vector<1x128xf32> -> vector<1x128xf32>
    %33 = arith.mulf %32, %10 : vector<1x128xf32>
    %34 = arith.addf %33, %11 : vector<1x128xf32>
    %35 = math.sin %34 : vector<1x128xf32>
    %c0_18 = arith.constant 0 : index
    %c384 = arith.constant 384 : index
    %36 = vector.load %arg5[%c0_18, %c384] : memref<1x2048xf32, #tpu.memory_space<vmem>>, vector<1x128xf32>
    tpu.vector_store %arg5[%c0_18, %c384], %35 {strides = array<i32>} : memref<1x2048xf32, #tpu.memory_space<vmem>>, vector<1x128xf32>,
    %37 = vector.extract_strided_slice %9 {offsets = [0, 32], sizes = [1, 8], strides = [1, 1]} : vector<1x128xf32> to vector<1x8xf32>
    %cst_19 = arith.constant dense<0.000000e+00> : vector<1x128xf32>
    %38 = tpu.matmul %37, %12, %cst_19 {dimension_numbers = #tpu.dot_dimension_numbers<[1], [0], [0], [1], [0, 0, 1, 1], [], []>} : vector<1x8xf32>, vector<8x128xf32>, vector<1x128xf32> -> vector<1x128xf32>
    %39 = arith.mulf %38, %10 : vector<1x128xf32>
    %40 = arith.addf %39, %11 : vector<1x128xf32>
    %41 = math.sin %40 : vector<1x128xf32>
    %c0_20 = arith.constant 0 : index
    %c512 = arith.constant 512 : index
    %42 = vector.load %arg5[%c0_20, %c512] : memref<1x2048xf32, #tpu.memory_space<vmem>>, vector<1x128xf32>
    tpu.vector_store %arg5[%c0_20, %c512], %41 {strides = array<i32>} : memref<1x2048xf32, #tpu.memory_space<vmem>>, vector<1x128xf32>,
    %43 = vector.extract_strided_slice %9 {offsets = [0, 40], sizes = [1, 8], strides = [1, 1]} : vector<1x128xf32> to vector<1x8xf32>
    %cst_21 = arith.constant dense<0.000000e+00> : vector<1x128xf32>
    %44 = tpu.matmul %43, %12, %cst_21 {dimension_numbers = #tpu.dot_dimension_numbers<[1], [0], [0], [1], [0, 0, 1, 1], [], []>} : vector<1x8xf32>, vector<8x128xf32>, vector<1x128xf32> -> vector<1x128xf32>
    %45 = arith.mulf %44, %10 : vector<1x128xf32>
    %46 = arith.addf %45, %11 : vector<1x128xf32>
    %47 = math.sin %46 : vector<1x128xf32>
    %c0_22 = arith.constant 0 : index
    %c640 = arith.constant 640 : index
    %48 = vector.load %arg5[%c0_22, %c640] : memref<1x2048xf32, #tpu.memory_space<vmem>>, vector<1x128xf32>
    tpu.vector_store %arg5[%c0_22, %c640], %47 {strides = array<i32>} : memref<1x2048xf32, #tpu.memory_space<vmem>>, vector<1x128xf32>,
    %49 = vector.extract_strided_slice %9 {offsets = [0, 48], sizes = [1, 8], strides = [1, 1]} : vector<1x128xf32> to vector<1x8xf32>
    %cst_23 = arith.constant dense<0.000000e+00> : vector<1x128xf32>
    %50 = tpu.matmul %49, %12, %cst_23 {dimension_numbers = #tpu.dot_dimension_numbers<[1], [0], [0], [1], [0, 0, 1, 1], [], []>} : vector<1x8xf32>, vector<8x128xf32>, vector<1x128xf32> -> vector<1x128xf32>
    %51 = arith.mulf %50, %10 : vector<1x128xf32>
    %52 = arith.addf %51, %11 : vector<1x128xf32>
    %53 = math.sin %52 : vector<1x128xf32>
    %c0_24 = arith.constant 0 : index
    %c768 = arith.constant 768 : index
    %54 = vector.load %arg5[%c0_24, %c768] : memref<1x2048xf32, #tpu.memory_space<vmem>>, vector<1x128xf32>
    tpu.vector_store %arg5[%c0_24, %c768], %53 {strides = array<i32>} : memref<1x2048xf32, #tpu.memory_space<vmem>>, vector<1x128xf32>,
    %55 = vector.extract_strided_slice %9 {offsets = [0, 56], sizes = [1, 8], strides = [1, 1]} : vector<1x128xf32> to vector<1x8xf32>
    %cst_25 = arith.constant dense<0.000000e+00> : vector<1x128xf32>
    %56 = tpu.matmul %55, %12, %cst_25 {dimension_numbers = #tpu.dot_dimension_numbers<[1], [0], [0], [1], [0, 0, 1, 1], [], []>} : vector<1x8xf32>, vector<8x128xf32>, vector<1x128xf32> -> vector<1x128xf32>
    %57 = arith.mulf %56, %10 : vector<1x128xf32>
    %58 = arith.addf %57, %11 : vector<1x128xf32>
    %59 = math.sin %58 : vector<1x128xf32>
    %c0_26 = arith.constant 0 : index
    %c896 = arith.constant 896 : index
    %60 = vector.load %arg5[%c0_26, %c896] : memref<1x2048xf32, #tpu.memory_space<vmem>>, vector<1x128xf32>
    tpu.vector_store %arg5[%c0_26, %c896], %59 {strides = array<i32>} : memref<1x2048xf32, #tpu.memory_space<vmem>>, vector<1x128xf32>,
    %61 = vector.extract_strided_slice %9 {offsets = [0, 64], sizes = [1, 8], strides = [1, 1]} : vector<1x128xf32> to vector<1x8xf32>
    %cst_27 = arith.constant dense<0.000000e+00> : vector<1x128xf32>
    %62 = tpu.matmul %61, %12, %cst_27 {dimension_numbers = #tpu.dot_dimension_numbers<[1], [0], [0], [1], [0, 0, 1, 1], [], []>} : vector<1x8xf32>, vector<8x128xf32>, vector<1x128xf32> -> vector<1x128xf32>
    %63 = arith.mulf %62, %10 : vector<1x128xf32>
    %64 = arith.addf %63, %11 : vector<1x128xf32>
    %65 = math.sin %64 : vector<1x128xf32>
    %c0_28 = arith.constant 0 : index
    %c1024 = arith.constant 1024 : index
    %66 = vector.load %arg5[%c0_28, %c1024] : memref<1x2048xf32, #tpu.memory_space<vmem>>, vector<1x128xf32>
    tpu.vector_store %arg5[%c0_28, %c1024], %65 {strides = array<i32>} : memref<1x2048xf32, #tpu.memory_space<vmem>>, vector<1x128xf32>,
    %67 = vector.extract_strided_slice %9 {offsets = [0, 72], sizes = [1, 8], strides = [1, 1]} : vector<1x128xf32> to vector<1x8xf32>
    %cst_29 = arith.constant dense<0.000000e+00> : vector<1x128xf32>
    %68 = tpu.matmul %67, %12, %cst_29 {dimension_numbers = #tpu.dot_dimension_numbers<[1], [0], [0], [1], [0, 0, 1, 1], [], []>} : vector<1x8xf32>, vector<8x128xf32>, vector<1x128xf32> -> vector<1x128xf32>
    %69 = arith.mulf %68, %10 : vector<1x128xf32>
    %70 = arith.addf %69, %11 : vector<1x128xf32>
    %71 = math.sin %70 : vector<1x128xf32>
    %c0_30 = arith.constant 0 : index
    %c1152 = arith.constant 1152 : index
    %72 = vector.load %arg5[%c0_30, %c1152] : memref<1x2048xf32, #tpu.memory_space<vmem>>, vector<1x128xf32>
    tpu.vector_store %arg5[%c0_30, %c1152], %71 {strides = array<i32>} : memref<1x2048xf32, #tpu.memory_space<vmem>>, vector<1x128xf32>,
    %73 = vector.extract_strided_slice %9 {offsets = [0, 80], sizes = [1, 8], strides = [1, 1]} : vector<1x128xf32> to vector<1x8xf32>
    %cst_31 = arith.constant dense<0.000000e+00> : vector<1x128xf32>
    %74 = tpu.matmul %73, %12, %cst_31 {dimension_numbers = #tpu.dot_dimension_numbers<[1], [0], [0], [1], [0, 0, 1, 1], [], []>} : vector<1x8xf32>, vector<8x128xf32>, vector<1x128xf32> -> vector<1x128xf32>
    %75 = arith.mulf %74, %10 : vector<1x128xf32>
    %76 = arith.addf %75, %11 : vector<1x128xf32>
    %77 = math.sin %76 : vector<1x128xf32>
    %c0_32 = arith.constant 0 : index
    %c1280 = arith.constant 1280 : index
    %78 = vector.load %arg5[%c0_32, %c1280] : memref<1x2048xf32, #tpu.memory_space<vmem>>, vector<1x128xf32>
    tpu.vector_store %arg5[%c0_32, %c1280], %77 {strides = array<i32>} : memref<1x2048xf32, #tpu.memory_space<vmem>>, vector<1x128xf32>,
    %79 = vector.extract_strided_slice %9 {offsets = [0, 88], sizes = [1, 8], strides = [1, 1]} : vector<1x128xf32> to vector<1x8xf32>
    %cst_33 = arith.constant dense<0.000000e+00> : vector<1x128xf32>
    %80 = tpu.matmul %79, %12, %cst_33 {dimension_numbers = #tpu.dot_dimension_numbers<[1], [0], [0], [1], [0, 0, 1, 1], [], []>} : vector<1x8xf32>, vector<8x128xf32>, vector<1x128xf32> -> vector<1x128xf32>
    %81 = arith.mulf %80, %10 : vector<1x128xf32>
    %82 = arith.addf %81, %11 : vector<1x128xf32>
    %83 = math.sin %82 : vector<1x128xf32>
    %c0_34 = arith.constant 0 : index
    %c1408 = arith.constant 1408 : index
    %84 = vector.load %arg5[%c0_34, %c1408] : memref<1x2048xf32, #tpu.memory_space<vmem>>, vector<1x128xf32>
    tpu.vector_store %arg5[%c0_34, %c1408], %83 {strides = array<i32>} : memref<1x2048xf32, #tpu.memory_space<vmem>>, vector<1x128xf32>,
    %85 = vector.extract_strided_slice %9 {offsets = [0, 96], sizes = [1, 8], strides = [1, 1]} : vector<1x128xf32> to vector<1x8xf32>
    %cst_35 = arith.constant dense<0.000000e+00> : vector<1x128xf32>
    %86 = tpu.matmul %85, %12, %cst_35 {dimension_numbers = #tpu.dot_dimension_numbers<[1], [0], [0], [1], [0, 0, 1, 1], [], []>} : vector<1x8xf32>, vector<8x128xf32>, vector<1x128xf32> -> vector<1x128xf32>
    %87 = arith.mulf %86, %10 : vector<1x128xf32>
    %88 = arith.addf %87, %11 : vector<1x128xf32>
    %89 = math.sin %88 : vector<1x128xf32>
    %c0_36 = arith.constant 0 : index
    %c1536 = arith.constant 1536 : index
    %90 = vector.load %arg5[%c0_36, %c1536] : memref<1x2048xf32, #tpu.memory_space<vmem>>, vector<1x128xf32>
    tpu.vector_store %arg5[%c0_36, %c1536], %89 {strides = array<i32>} : memref<1x2048xf32, #tpu.memory_space<vmem>>, vector<1x128xf32>,
    %91 = vector.extract_strided_slice %9 {offsets = [0, 104], sizes = [1, 8], strides = [1, 1]} : vector<1x128xf32> to vector<1x8xf32>
    %cst_37 = arith.constant dense<0.000000e+00> : vector<1x128xf32>
    %92 = tpu.matmul %91, %12, %cst_37 {dimension_numbers = #tpu.dot_dimension_numbers<[1], [0], [0], [1], [0, 0, 1, 1], [], []>} : vector<1x8xf32>, vector<8x128xf32>, vector<1x128xf32> -> vector<1x128xf32>
    %93 = arith.mulf %92, %10 : vector<1x128xf32>
    %94 = arith.addf %93, %11 : vector<1x128xf32>
    %95 = math.sin %94 : vector<1x128xf32>
    %c0_38 = arith.constant 0 : index
    %c1664 = arith.constant 1664 : index
    %96 = vector.load %arg5[%c0_38, %c1664] : memref<1x2048xf32, #tpu.memory_space<vmem>>, vector<1x128xf32>
    tpu.vector_store %arg5[%c0_38, %c1664], %95 {strides = array<i32>} : memref<1x2048xf32, #tpu.memory_space<vmem>>, vector<1x128xf32>,
    %97 = vector.extract_strided_slice %9 {offsets = [0, 112], sizes = [1, 8], strides = [1, 1]} : vector<1x128xf32> to vector<1x8xf32>
    %cst_39 = arith.constant dense<0.000000e+00> : vector<1x128xf32>
    %98 = tpu.matmul %97, %12, %cst_39 {dimension_numbers = #tpu.dot_dimension_numbers<[1], [0], [0], [1], [0, 0, 1, 1], [], []>} : vector<1x8xf32>, vector<8x128xf32>, vector<1x128xf32> -> vector<1x128xf32>
    %99 = arith.mulf %98, %10 : vector<1x128xf32>
    %100 = arith.addf %99, %11 : vector<1x128xf32>
    %101 = math.sin %100 : vector<1x128xf32>
    %c0_40 = arith.constant 0 : index
    %c1792 = arith.constant 1792 : index
    %102 = vector.load %arg5[%c0_40, %c1792] : memref<1x2048xf32, #tpu.memory_space<vmem>>, vector<1x128xf32>
    tpu.vector_store %arg5[%c0_40, %c1792], %101 {strides = array<i32>} : memref<1x2048xf32, #tpu.memory_space<vmem>>, vector<1x128xf32>,
    %103 = vector.extract_strided_slice %9 {offsets = [0, 120], sizes = [1, 8], strides = [1, 1]} : vector<1x128xf32> to vector<1x8xf32>
    %cst_41 = arith.constant dense<0.000000e+00> : vector<1x128xf32>
    %104 = tpu.matmul %103, %12, %cst_41 {dimension_numbers = #tpu.dot_dimension_numbers<[1], [0], [0], [1], [0, 0, 1, 1], [], []>} : vector<1x8xf32>, vector<8x128xf32>, vector<1x128xf32> -> vector<1x128xf32>
    %105 = arith.mulf %104, %10 : vector<1x128xf32>
    %106 = arith.addf %105, %11 : vector<1x128xf32>
    %107 = math.sin %106 : vector<1x128xf32>
    %c0_42 = arith.constant 0 : index
    %c1920 = arith.constant 1920 : index
    %108 = vector.load %arg5[%c0_42, %c1920] : memref<1x2048xf32, #tpu.memory_space<vmem>>, vector<1x128xf32>
    tpu.vector_store %arg5[%c0_42, %c1920], %107 {strides = array<i32>} : memref<1x2048xf32, #tpu.memory_space<vmem>>, vector<1x128xf32>,
    return
  }
  func.func @transform_0(%arg0: i32) -> (i32, i32) {
    %c0_i32 = arith.constant 0 : i32
    %c0_i32_0 = arith.constant 0 : i32
    return %arg0, %c0_i32 : i32, i32
  }
  func.func @transform_1(%arg0: i32) -> (i32, i32) {
    %c0_i32 = arith.constant 0 : i32
    %c0_i32_0 = arith.constant 0 : i32
    %c0_i32_1 = arith.constant 0 : i32
    return %c0_i32, %c0_i32_0 : i32, i32
  }
  func.func @transform_2(%arg0: i32) -> (i32, i32) {
    %c0_i32 = arith.constant 0 : i32
    %c0_i32_0 = arith.constant 0 : i32
    %c0_i32_1 = arith.constant 0 : i32
    return %c0_i32, %c0_i32_0 : i32, i32
  }
  func.func @transform_3(%arg0: i32) -> (i32, i32) {
    %c0_i32 = arith.constant 0 : i32
    %c0_i32_0 = arith.constant 0 : i32
    %c0_i32_1 = arith.constant 0 : i32
    return %c0_i32, %c0_i32_0 : i32, i32
  }
  func.func @transform_4(%arg0: i32) -> (i32, i32) {
    %c0_i32 = arith.constant 0 : i32
    %c0_i32_0 = arith.constant 0 : i32
    return %arg0, %c0_i32 : i32, i32
  }
}

</mosaic_0001>

<llo_original>
// kernel: tpu_custom_call.1
$region0: #{tpu_custom_call.1}
  #allocation0 [shape = 'u32[]', space=smem, size = 0x4, offset = 0x4, fixed_abs, tag = 'smem constant byte address 0x4 - core index']
  #allocation1 [shape = 'u32[72,128]{1,0:T(1,128)}', space=vmem, size = 0x9000, scoped, tag = 'internal scratch']
  %s0 = inlined_call_operand.hbm [shape: f32[1,128], index: 0, kind: input, shape index: {}]
  %s1 = inlined_call_operand.hbm [shape: f32[8,128], index: 1, kind: input, shape index: {}]
  %s2 = inlined_call_operand.vmem [shape: f32[1,128], index: 2, kind: input, shape index: {}]
  %s3 = inlined_call_operand.vmem [shape: f32[1,128], index: 3, kind: input, shape index: {}]
  %s4 = inlined_call_operand.hbm [shape: f32[1,2048], index: 4, kind: output, shape index: {}]
  %s5 = sld [smem:[#allocation0]]
  $region34: #{tpu_custom_call.1} parent=0
    _
  %s7 = ssub.s32 1, %s5
  %s8 = scalar_select 0, %s7, %s5
  $region1: #{tpu_custom_call.1} parent=0
    #allocation2 [shape = 'u8[512]{0}', space=vmem, size = 0x400, scoped, tag = 'input window, operand 0, single buffered']
    #allocation3 [shape = 's32[1]{0}', space=sflag, size = 0x4, scoped, tag = 'scoped memory for tpu_custom_call.1']
    #allocation4 [shape = 's32[1]{0}', space=sflag, size = 0x4, scoped, tag = 'scoped memory for tpu_custom_call.1']
    #allocation5 [shape = 'u8[4096]{0}', space=vmem, size = 0x1000, scoped, tag = 'input window, operand 1, single buffered']
    #allocation6 [shape = 's32[1]{0}', space=sflag, size = 0x4, scoped, tag = 'scoped memory for tpu_custom_call.1']
    #allocation7 [shape = 'u8[8192]{0}', space=vmem, size = 0x2000, scoped, tag = 'output window, operand 0, single buffered']
    %9 = vsyncpa [#allocation3], 0
    %10 = vsyncpa [#allocation6], 0
    %11 = vsyncpa [#allocation4], 0
    // Predicated region
    $region2: #{tpu_custom_call.1} parent=1 // pred_check
      _
    $region3: #{tpu_custom_call.1} parent=1 // pred_check_branch
      %13 = sbr.rel (0) target = $region5
    $region4: #{tpu_custom_call.1} parent=1 // pred_region
      %15 = vsyncadd [#allocation3], 0
      %s17 = sshll.u32 %s0, 4
      %s18 = int_to_ptr.hbm [resolvable:$true] %s17
      %s19 = sshll.u32 [#allocation2], 4
      %s20 = int_to_ptr.vmem [resolvable:$true] %s19
      %22 = dma.hbm_to_vmem [thread:$0]  %s18, 16, %s20, [#allocation3]
    $region5: #{tpu_custom_call.1} parent=1 // pred_fallthru
      _
    // Predicated region
    $region6: #{tpu_custom_call.1} parent=1 // pred_check
      _
    $region7: #{tpu_custom_call.1} parent=1 // pred_check_branch
      %24 = sbr.rel (0) target = $region9
    $region8: #{tpu_custom_call.1} parent=1 // pred_region
      %26 = vsyncadd [#allocation6], 0
      %s28 = sshll.u32 %s1, 4
      %s29 = int_to_ptr.hbm [resolvable:$true] %s28
      %s30 = sshll.u32 [#allocation5], 4
      %s31 = int_to_ptr.vmem [resolvable:$true] %s30
      %33 = dma.hbm_to_vmem [thread:$0]  %s29, 128, %s31, [#allocation6]
    $region9: #{tpu_custom_call.1} parent=1 // pred_fallthru
      _
    // Predicated region
    $region10: #{tpu_custom_call.1} parent=1 // pred_check
      _
    $region11: #{tpu_custom_call.1} parent=1 // pred_check_branch
      %35 = sbr.rel (0) target = $region13
    $region12: #{tpu_custom_call.1} parent=1 // pred_region
      _
    $region13: #{tpu_custom_call.1} parent=1 // pred_fallthru
      _
    // Predicated region
    $region14: #{tpu_custom_call.1} parent=1 // pred_check
      _
    $region15: #{tpu_custom_call.1} parent=1 // pred_check_branch
      %37 = sbr.rel (0) target = $region17
    $region16: #{tpu_custom_call.1} parent=1 // pred_region
      _
    $region17: #{tpu_custom_call.1} parent=1 // pred_fallthru
      _
    // Predicated region
    $region18: #{tpu_custom_call.1} parent=1 // pred_check
      _
    $region19: #{tpu_custom_call.1} parent=1 // pred_check_branch
      %39 = sbr.rel (0) target = $region21
    $region20: #{tpu_custom_call.1} parent=1 // pred_region
      %41 = dma.done [#allocation3], 16
    $region21: #{tpu_custom_call.1} parent=1 // pred_fallthru
      _
    // Predicated region
    $region22: #{tpu_custom_call.1} parent=1 // pred_check
      _
    $region23: #{tpu_custom_call.1} parent=1 // pred_check_branch
      %43 = sbr.rel (0) target = $region25
    $region24: #{tpu_custom_call.1} parent=1 // pred_region
      %45 = dma.done [#allocation6], 128
    $region25: #{tpu_custom_call.1} parent=1 // pred_fallthru
      _
    %v46 = vld [vmem:[#allocation2] sm:$0x1]
    %v47 = vmax.f32 %v46, 0.01
    %v48 = vmin.f32 %v47, 1.0
    %v49 = vmul.f32 %v48, 100.0
    %v50 = vround.ne.pseudo %v49
    %v51 = vsub.f32 %v50, 1.0
    %v52 = vld [vmem:[%s2] sm:$0x1]
    %v53 = vld [vmem:[%s3] sm:$0x1]
    %v54 = vld [vmem:[#allocation5] sm:$0xff]
    %vm55 = vcmask 64512
    %v57 = vsel %vm55, %v51, 0
    %59 = vmatpush.msra.mxu0 0.0
    %60 = vmatpush.msra.mxu0 0.0
    %61 = vmatpush.msra.mxu0 0.0
    %62 = vmatpush.msra.mxu0 0.0
    %63 = vmatpush.msra.mxu0 0.0
    %64 = vmatpush.msra.mxu0 0.0
    %65 = vmatpush.msra.mxu0 0.0
    %66 = vmatpush.msra.mxu0 0.0
    %67 = vmatpush.msra.mxu0 0.0
    %68 = vmatpush.msra.mxu0 0.0
    %69 = vmatpush.msra.mxu0 0.0
    %70 = vmatpush.msra.mxu0 0.0
    %71 = vmatpush.msra.mxu0 0.0
    %72 = vmatpush.msra.mxu0 0.0
    %73 = vmatpush.msra.mxu0 0.0
    %74 = vmatpush.msra.mxu0 %v54
    %75 = vmatmul.f32.gmra.mxu0 %v57
    %v76 = vpop.f32.mrf.mxu0
    %v77 = vadd.f32 0.0, %v76
    %78 = vdwg.mxu0
    %v79 = vmul.f32 %v77, %v52
    %v80 = vadd.f32 %v79, %v53
    %v81 = vand.u32 2147483647, %v80
    %vm82 = vcmp.le.f32.partialorder %v81, 0.7853982
    %vm83 = vcmp.lt.s32.totalorder %v80, 0
    %v84 = vand.u32 %v80, 2139095040
    %v85 = vshrl.u32 %v84, 23
    %v86 = vsub.s32 %v85, 127
    %v87 = vand.u32 2147483647, %v80
    %v88 = vand.u32 %v87, 8388607
    %v89 = vor.u32 %v88, 8388608
    %v90 = vsub.s32 0, %v89
    %v91 = vadd.s32 %v86, 1
    %vm92 = vcmp.gt.s32.totalorder %v91, 0
    %v93 = vsel %vm92, %v91, 0
    %v94 = vshrl.u32 %v93, 5
    %v95 = vand.u32 %v93, 31
    %v96 = vsub.s32 32, %v95
    %v97 = vshrl.u32 683565275, %v96
    %v98 = vshll.u32 683565275, %v95
    %v99 = vshrl.u32 2475754826, %v96
    %v100 = vor.u32 %v98, %v99
    %v101 = vshll.u32 2475754826, %v95
    %v102 = vshrl.u32 2131351028, %v96
    %v103 = vor.u32 %v101, %v102
    %v104 = vshll.u32 2131351028, %v95
    %v105 = vshrl.u32 2102212464, %v96
    %v106 = vor.u32 %v104, %v105
    %v107 = vshll.u32 2102212464, %v95
    %v108 = vshrl.u32 920167782, %v96
    %v109 = vor.u32 %v107, %v108
    %v110 = vshll.u32 920167782, %v95
    %v111 = vshrl.u32 1326507024, %v96
    %v112 = vor.u32 %v110, %v111
    %vm113 = vcmp.lt.s32.totalorder %v94, 1
    %vm114 = vcmp.lt.s32.totalorder %v94, 2
    %vm115 = vcmp.lt.s32.totalorder %v94, 3
    %vm116 = vcmp.lt.s32.totalorder %v94, 4
    %v117 = vsel %vm113, %v97, %v100
    %v118 = vsel %vm116, %v106, 2102212464
    %v119 = vsel %vm115, %v103, %v118
    %v120 = vsel %vm114, %v117, %v119
    %v121 = vsel %vm113, %v100, %v103
    %v122 = vsel %vm116, %v109, 920167782
    %v123 = vsel %vm115, %v106, %v122
    %v124 = vsel %vm114, %v121, %v123
    %v125 = vsel %vm113, %v103, %v106
    %v126 = vsel %vm116, %v112, 1326507024
    %v127 = vsel %vm115, %v109, %v126
    %v128 = vsel %vm114, %v125, %v127
    %v129 = vshll.u32 %v89, 8
    %v130 = vand.u32 %v129, 65535
    %v131 = vshrl.u32 %v129, 16
    %v132 = vand.u32 %v128, 65535
    %v133 = vshrl.u32 %v128, 16
    %v134 = vmul.u32 %v130, %v132
    %v135 = vmul.u32 %v130, %v133
    %v136 = vmul.u32 %v131, %v132
    %v137 = vmul.u32 %v131, %v133
    %v138 = vshll.u32 %v135, 16
    %v139 = vshrl.u32 %v135, 16
    %v140 = vshll.u32 %v136, 16
    %v141 = vshrl.u32 %v136, 16
    %vm142 = vc.u32 %v134, %v138
    %v143 = vsel %vm142, 1, 0
    %v144 = vadd.s32 %v134, %v138
    %v145 = vadd.s32 %v137, %v143
    %vm146 = vc.u32 %v144, %v140
    %v147 = vsel %vm146, 1, 0
    %v148 = vadd.s32 %v144, %v140
    %v149 = vadd.s32 %v145, %v147
    %v150 = vadd.s32 %v149, %v139
    %v151 = vadd.s32 %v150, %v141
    %v152 = vand.u32 %v129, 65535
    %v153 = vshrl.u32 %v129, 16
    %v154 = vand.u32 %v124, 65535
    %v155 = vshrl.u32 %v124, 16
    %v156 = vmul.u32 %v152, %v154
    %v157 = vmul.u32 %v152, %v155
    %v158 = vmul.u32 %v153, %v154
    %v159 = vmul.u32 %v153, %v155
    %v160 = vshll.u32 %v157, 16
    %v161 = vshrl.u32 %v157, 16
    %v162 = vshll.u32 %v158, 16
    %v163 = vshrl.u32 %v158, 16
    %vm164 = vc.u32 %v156, %v160
    %v165 = vsel %vm164, 1, 0
    %v166 = vadd.s32 %v156, %v160
    %v167 = vadd.s32 %v159, %v165
    %vm168 = vc.u32 %v166, %v162
    %v169 = vsel %vm168, 1, 0
    %v170 = vadd.s32 %v166, %v162
    %v171 = vadd.s32 %v167, %v169
    %v172 = vadd.s32 %v171, %v161
    %v173 = vadd.s32 %v172, %v163
    %v174 = vmul.u32 %v129, %v120
    %v175 = vadd.s32 %v151, %v170
    %vm176 = vc.u32 %v151, %v170
    %v177 = vadd.s32 %v173, 1
    %v178 = vsel %vm176, %v177, %v173
    %v179 = vadd.s32 %v174, %v178
    %v180 = vadd.s32 %v179, 536870912
    %v181 = vshrl.u32 %v180, 30
    %v182 = vshll.u32 %v181, 30
    %v183 = vsub.s32 %v179, %v182
    %vm184 = vcmp.lt.s32.totalorder %v183, 0
    %v185 = vsub.s32 0, %v183
    %v186 = vsel %vm184, %v185, %v183
    %v187 = vclz %v186
    %v188 = vsub.s32 %v187, 2
    %vm189 = vcmp.gt.s32.totalorder 0, %v188
    %v190 = vsel %vm189, 0, %v188
    %v191 = vsub.s32 32, %v190
    %v192 = vshll.u32 %v183, %v190
    %v193 = vshrl.u32 %v175, %v191
    %v194 = vor.u32 %v192, %v193
    %v195 = vsub.s32 4294967266, %v190
    %v196 = vadd.s32 %v195, 127
    %v197 = vshll.u32 %v196, 23
    %v198 = vor.u32 4788187, %v197
    %v199 = vand.u32 2147483647, %v198
    %v201 = vcvt.s32.f32 %v194
    %v202 = vmul.f32 %v201, %v199
    %v203 = vxor.u32 %v202, 2147483648
    %v204 = vsel %vm83, %v203, %v202
    %v205 = vsub.s32 4, %v181
    %v206 = vsel %vm83, %v205, %v181
    %v207 = vsel %vm82, %v80, %v204
    %v208 = vsel %vm82, 0, %v206
    %v209 = vmul.f32 %v207, %v207
    %v210 = vmul.f32 %v209, -0.001358992
    %v211 = vadd.f32 %v210, 0.041655596
    %v212 = vmul.f32 %v209, %v211
    %v213 = vadd.f32 %v212, -0.4999988
    %v214 = vmul.f32 %v209, %v213
    %v215 = vadd.f32 1.0, %v214
    %v216 = vmul.f32 %v207, %v207
    %v217 = vmul.f32 %v216, -0.00019511016
    %v218 = vadd.f32 %v217, 0.008332121
    %v219 = vmul.f32 %v216, %v218
    %v220 = vadd.f32 %v219, -0.16666654
    %v221 = vmul.f32 %v216, %v220
    %v222 = vadd.f32 %v221, 1.0
    %v223 = vmul.f32 %v222, %v207
    %vm224 = vweird.f32 %v80
    %v225 = vadd.s32 %v208, 3
    %v226 = vand.u32 %v225, 3
    %vm227 = vcmp.lt.s32.totalorder %v226, 2
    %vm228 = vcmp.eq.s32.totalorder %v226, 0
    %v229 = vxor.u32 %v223, 2147483648
    %v230 = vsel %vm228, %v215, %v229
    %vm231 = vcmp.eq.s32.totalorder %v226, 2
    %v232 = vxor.u32 %v215, 2147483648
    %v233 = vsel %vm231, %v232, %v223
    %v234 = vsel %vm227, %v230, %v233
    %v235 = vsel %vm224, nan, %v234
    %v236 = vlaneseq
    %vm237 = vcmp.ge.s32.totalorder %v236, 0
    %vm238 = vcmp.lt.s32.totalorder %v236, 128
    %vm239 = vmand %vm237, %vm238
    %240 = vst.msk [vmem:[#allocation7] sm:$0x1] %vm239, %v235
    %v241 = vperm.slane %v51, 0
    %242 = vrot.lane.b32.xlu0 %v241, 120
    %v243 = vpop.permute.xlu0 %242
    %v244 = vsel %vm55, %v243, 0
    %246 = vmatpush.msra.mxu0 0.0
    %247 = vmatpush.msra.mxu0 0.0
    %248 = vmatpush.msra.mxu0 0.0
    %249 = vmatpush.msra.mxu0 0.0
    %250 = vmatpush.msra.mxu0 0.0
    %251 = vmatpush.msra.mxu0 0.0
    %252 = vmatpush.msra.mxu0 0.0
    %253 = vmatpush.msra.mxu0 0.0
    %254 = vmatpush.msra.mxu0 0.0
    %255 = vmatpush.msra.mxu0 0.0
    %256 = vmatpush.msra.mxu0 0.0
    %257 = vmatpush.msra.mxu0 0.0
    %258 = vmatpush.msra.mxu0 0.0
    %259 = vmatpush.msra.mxu0 0.0
    %260 = vmatpush.msra.mxu0 0.0
    %261 = vmatpush.msra.mxu0 %v54
    %262 = vmatmul.f32.gmra.mxu0 %v244
    %v263 = vpop.f32.mrf.mxu0
    %v264 = vadd.f32 0.0, %v263
    %265 = vdwg.mxu0
    %v266 = vmul.f32 %v264, %v52
    %v267 = vadd.f32 %v266, %v53
    %v268 = vand.u32 2147483647, %v267
    %vm269 = vcmp.le.f32.partialorder %v268, 0.7853982
    %vm270 = vcmp.lt.s32.totalorder %v267, 0
    %v271 = vand.u32 %v267, 2139095040
    %v272 = vshrl.u32 %v271, 23
    %v273 = vsub.s32 %v272, 127
    %v274 = vand.u32 2147483647, %v267
    %v275 = vand.u32 %v274, 8388607
    %v276 = vor.u32 %v275, 8388608
    %v277 = vsub.s32 0, %v276
    %v278 = vadd.s32 %v273, 1
    %vm279 = vcmp.gt.s32.totalorder %v278, 0
    %v280 = vsel %vm279, %v278, 0
    %v281 = vshrl.u32 %v280, 5
    %v282 = vand.u32 %v280, 31
    %v283 = vsub.s32 32, %v282
    %v284 = vshrl.u32 683565275, %v283
    %v285 = vshll.u32 683565275, %v282
    %v286 = vshrl.u32 2475754826, %v283
    %v287 = vor.u32 %v285, %v286
    %v288 = vshll.u32 2475754826, %v282
    %v289 = vshrl.u32 2131351028, %v283
    %v290 = vor.u32 %v288, %v289
    %v291 = vshll.u32 2131351028, %v282
    %v292 = vshrl.u32 2102212464, %v283
    %v293 = vor.u32 %v291, %v292
    %v294 = vshll.u32 2102212464, %v282
    %v295 = vshrl.u32 920167782, %v283
    %v296 = vor.u32 %v294, %v295
    %v297 = vshll.u32 920167782, %v282
    %v298 = vshrl.u32 1326507024, %v283
    %v299 = vor.u32 %v297, %v298
    %vm300 = vcmp.lt.s32.totalorder %v281, 1
    %vm301 = vcmp.lt.s32.totalorder %v281, 2
    %vm302 = vcmp.lt.s32.totalorder %v281, 3
    %vm303 = vcmp.lt.s32.totalorder %v281, 4
    %v304 = vsel %vm300, %v284, %v287
    %v305 = vsel %vm303, %v293, 2102212464
    %v306 = vsel %vm302, %v290, %v305
    %v307 = vsel %vm301, %v304, %v306
    %v308 = vsel %vm300, %v287, %v290
    %v309 = vsel %vm303, %v296, 920167782
    %v310 = vsel %vm302, %v293, %v309
    %v311 = vsel %vm301, %v308, %v310
    %v312 = vsel %vm300, %v290, %v293
    %v313 = vsel %vm303, %v299, 1326507024
    %v314 = vsel %vm302, %v296, %v313
    %v315 = vsel %vm301, %v312, %v314
    %v316 = vshll.u32 %v276, 8
    %v317 = vand.u32 %v316, 65535
    %v318 = vshrl.u32 %v316, 16
    %v319 = vand.u32 %v315, 65535
    %v320 = vshrl.u32 %v315, 16
    %v321 = vmul.u32 %v317, %v319
    %v322 = vmul.u32 %v317, %v320
    %v323 = vmul.u32 %v318, %v319
    %v324 = vmul.u32 %v318, %v320
    %v325 = vshll.u32 %v322, 16
    %v326 = vshrl.u32 %v322, 16
    %v327 = vshll.u32 %v323, 16
    %v328 = vshrl.u32 %v323, 16
    %vm329 = vc.u32 %v321, %v325
    %v330 = vsel %vm329, 1, 0
    %v331 = vadd.s32 %v321, %v325
    %v332 = vadd.s32 %v324, %v330
    %vm333 = vc.u32 %v331, %v327
    %v334 = vsel %vm333, 1, 0
    %v335 = vadd.s32 %v331, %v327
    %v336 = vadd.s32 %v332, %v334
    %v337 = vadd.s32 %v336, %v326
    %v338 = vadd.s32 %v337, %v328
    %v339 = vand.u32 %v316, 65535
    %v340 = vshrl.u32 %v316, 16
    %v341 = vand.u32 %v311, 65535
    %v342 = vshrl.u32 %v311, 16
    %v343 = vmul.u32 %v339, %v341
    %v344 = vmul.u32 %v339, %v342
    %v345 = vmul.u32 %v340, %v341
    %v346 = vmul.u32 %v340, %v342
    %v347 = vshll.u32 %v344, 16
    %v348 = vshrl.u32 %v344, 16
    %v349 = vshll.u32 %v345, 16
    %v350 = vshrl.u32 %v345, 16
    %vm351 = vc.u32 %v343, %v347
    %v352 = vsel %vm351, 1, 0
    %v353 = vadd.s32 %v343, %v347
    %v354 = vadd.s32 %v346, %v352
    %vm355 = vc.u32 %v353, %v349
    %v356 = vsel %vm355, 1, 0
    %v357 = vadd.s32 %v353, %v349
    %v358 = vadd.s32 %v354, %v356
    %v359 = vadd.s32 %v358, %v348
    %v360 = vadd.s32 %v359, %v350
    %v361 = vmul.u32 %v316, %v307
    %v362 = vadd.s32 %v338, %v357
    %vm363 = vc.u32 %v338, %v357
    %v364 = vadd.s32 %v360, 1
    %v365 = vsel %vm363, %v364, %v360
    %v366 = vadd.s32 %v361, %v365
    %v367 = vadd.s32 %v366, 536870912
    %v368 = vshrl.u32 %v367, 30
    %v369 = vshll.u32 %v368, 30
    %v370 = vsub.s32 %v366, %v369
    %vm371 = vcmp.lt.s32.totalorder %v370, 0
    %v372 = vsub.s32 0, %v370
    %v373 = vsel %vm371, %v372, %v370
    %v374 = vclz %v373
    %v375 = vsub.s32 %v374, 2
    %vm376 = vcmp.gt.s32.totalorder 0, %v375
    %v377 = vsel %vm376, 0, %v375
    %v378 = vsub.s32 32, %v377
    %v379 = vshll.u32 %v370, %v377
    %v380 = vshrl.u32 %v362, %v378
    %v381 = vor.u32 %v379, %v380
    %v382 = vsub.s32 4294967266, %v377
    %v383 = vadd.s32 %v382, 127
    %v384 = vshll.u32 %v383, 23
    %v385 = vor.u32 4788187, %v384
    %v386 = vand.u32 2147483647, %v385
    %v388 = vcvt.s32.f32 %v381
    %v389 = vmul.f32 %v388, %v386
    %v390 = vxor.u32 %v389, 2147483648
    %v391 = vsel %vm270, %v390, %v389
    %v392 = vsub.s32 4, %v368
    %v393 = vsel %vm270, %v392, %v368
    %v394 = vsel %vm269, %v267, %v391
    %v395 = vsel %vm269, 0, %v393
    %v396 = vmul.f32 %v394, %v394
    %v397 = vmul.f32 %v396, -0.001358992
    %v398 = vadd.f32 %v397, 0.041655596
    %v399 = vmul.f32 %v396, %v398
    %v400 = vadd.f32 %v399, -0.4999988
    %v401 = vmul.f32 %v396, %v400
    %v402 = vadd.f32 1.0, %v401
    %v403 = vmul.f32 %v394, %v394
    %v404 = vmul.f32 %v403, -0.00019511016
    %v405 = vadd.f32 %v404, 0.008332121
    %v406 = vmul.f32 %v403, %v405
    %v407 = vadd.f32 %v406, -0.16666654
    %v408 = vmul.f32 %v403, %v407
    %v409 = vadd.f32 %v408, 1.0
    %v410 = vmul.f32 %v409, %v394
    %vm411 = vweird.f32 %v267
    %v412 = vadd.s32 %v395, 3
    %v413 = vand.u32 %v412, 3
    %vm414 = vcmp.lt.s32.totalorder %v413, 2
    %vm415 = vcmp.eq.s32.totalorder %v413, 0
    %v416 = vxor.u32 %v410, 2147483648
    %v417 = vsel %vm415, %v402, %v416
    %vm418 = vcmp.eq.s32.totalorder %v413, 2
    %v419 = vxor.u32 %v402, 2147483648
    %v420 = vsel %vm418, %v419, %v410
    %v421 = vsel %vm414, %v417, %v420
    %v422 = vsel %vm411, nan, %v421
    %423 = vst.msk [vmem:[#allocation7 + $0x1] sm:$0x1] %vm239, %v422
    %424 = vrot.lane.b32.xlu0 %v241, 112
    %v425 = vpop.permute.xlu0 %424
    %v426 = vsel %vm55, %v425, 0
    %428 = vmatpush.msra.mxu0 0.0
    %429 = vmatpush.msra.mxu0 0.0
    %430 = vmatpush.msra.mxu0 0.0
    %431 = vmatpush.msra.mxu0 0.0
    %432 = vmatpush.msra.mxu0 0.0
    %433 = vmatpush.msra.mxu0 0.0
    %434 = vmatpush.msra.mxu0 0.0
    %435 = vmatpush.msra.mxu0 0.0
    %436 = vmatpush.msra.mxu0 0.0
    %437 = vmatpush.msra.mxu0 0.0
    %438 = vmatpush.msra.mxu0 0.0
    %439 = vmatpush.msra.mxu0 0.0
    %440 = vmatpush.msra.mxu0 0.0
    %441 = vmatpush.msra.mxu0 0.0
    %442 = vmatpush.msra.mxu0 0.0
    %443 = vmatpush.msra.mxu0 %v54
    %444 = vmatmul.f32.gmra.mxu0 %v426
    %v445 = vpop.f32.mrf.mxu0
    %v446 = vadd.f32 0.0, %v445
    %447 = vdwg.mxu0
    %v448 = vmul.f32 %v446, %v52
    %v449 = vadd.f32 %v448, %v53
    %v450 = vand.u32 2147483647, %v449
    %vm451 = vcmp.le.f32.partialorder %v450, 0.7853982
    %vm452 = vcmp.lt.s32.totalorder %v449, 0
    %v453 = vand.u32 %v449, 2139095040
    %v454 = vshrl.u32 %v453, 23
    %v455 = vsub.s32 %v454, 127
    %v456 = vand.u32 2147483647, %v449
    %v457 = vand.u32 %v456, 8388607
    %v458 = vor.u32 %v457, 8388608
    %v459 = vsub.s32 0, %v458
    %v460 = vadd.s32 %v455, 1
    %vm461 = vcmp.gt.s32.totalorder %v460, 0
    %v462 = vsel %vm461, %v460, 0
    %v463 = vshrl.u32 %v462, 5
    %v464 = vand.u32 %v462, 31
    %v465 = vsub.s32 32, %v464
    %v466 = vshrl.u32 683565275, %v465
    %v467 = vshll.u32 683565275, %v464
    %v468 = vshrl.u32 2475754826, %v465
    %v469 = vor.u32 %v467, %v468
    %v470 = vshll.u32 2475754826, %v464
    %v471 = vshrl.u32 2131351028, %v465
    %v472 = vor.u32 %v470, %v471
    %v473 = vshll.u32 2131351028, %v464
    %v474 = vshrl.u32 2102212464, %v465
    %v475 = vor.u32 %v473, %v474
    %v476 = vshll.u32 2102212464, %v464
    %v477 = vshrl.u32 920167782, %v465
    %v478 = vor.u32 %v476, %v477
    %v479 = vshll.u32 920167782, %v464
    %v480 = vshrl.u32 1326507024, %v465
    %v481 = vor.u32 %v479, %v480
    %vm482 = vcmp.lt.s32.totalorder %v463, 1
    %vm483 = vcmp.lt.s32.totalorder %v463, 2
    %vm484 = vcmp.lt.s32.totalorder %v463, 3
    %vm485 = vcmp.lt.s32.totalorder %v463, 4
    %v486 = vsel %vm482, %v466, %v469
    %v487 = vsel %vm485, %v475, 2102212464
    %v488 = vsel %vm484, %v472, %v487
    %v489 = vsel %vm483, %v486, %v488
    %v490 = vsel %vm482, %v469, %v472
    %v491 = vsel %vm485, %v478, 920167782
    %v492 = vsel %vm484, %v475, %v491
    %v493 = vsel %vm483, %v490, %v492
    %v494 = vsel %vm482, %v472, %v475
    %v495 = vsel %vm485, %v481, 1326507024
    %v496 = vsel %vm484, %v478, %v495
    %v497 = vsel %vm483, %v494, %v496
    %v498 = vshll.u32 %v458, 8
    %v499 = vand.u32 %v498, 65535
    %v500 = vshrl.u32 %v498, 16
    %v501 = vand.u32 %v497, 65535
    %v502 = vshrl.u32 %v497, 16
    %v503 = vmul.u32 %v499, %v501
    %v504 = vmul.u32 %v499, %v502
    %v505 = vmul.u32 %v500, %v501
    %v506 = vmul.u32 %v500, %v502
    %v507 = vshll.u32 %v504, 16
    %v508 = vshrl.u32 %v504, 16
    %v509 = vshll.u32 %v505, 16
    %v510 = vshrl.u32 %v505, 16
    %vm511 = vc.u32 %v503, %v507
    %v512 = vsel %vm511, 1, 0
    %v513 = vadd.s32 %v503, %v507
    %v514 = vadd.s32 %v506, %v512
    %vm515 = vc.u32 %v513, %v509
    %v516 = vsel %vm515, 1, 0
    %v517 = vadd.s32 %v513, %v509
    %v518 = vadd.s32 %v514, %v516
    %v519 = vadd.s32 %v518, %v508
    %v520 = vadd.s32 %v519, %v510
    %v521 = vand.u32 %v498, 65535
    %v522 = vshrl.u32 %v498, 16
    %v523 = vand.u32 %v493, 65535
    %v524 = vshrl.u32 %v493, 16
    %v525 = vmul.u32 %v521, %v523
    %v526 = vmul.u32 %v521, %v524
    %v527 = vmul.u32 %v522, %v523
    %v528 = vmul.u32 %v522, %v524
    %v529 = vshll.u32 %v526, 16
    %v530 = vshrl.u32 %v526, 16
    %v531 = vshll.u32 %v527, 16
    %v532 = vshrl.u32 %v527, 16
    %vm533 = vc.u32 %v525, %v529
    %v534 = vsel %vm533, 1, 0
    %v535 = vadd.s32 %v525, %v529
    %v536 = vadd.s32 %v528, %v534
    %vm537 = vc.u32 %v535, %v531
    %v538 = vsel %vm537, 1, 0
    %v539 = vadd.s32 %v535, %v531
    %v540 = vadd.s32 %v536, %v538
    %v541 = vadd.s32 %v540, %v530
    %v542 = vadd.s32 %v541, %v532
    %v543 = vmul.u32 %v498, %v489
    %v544 = vadd.s32 %v520, %v539
    %vm545 = vc.u32 %v520, %v539
    %v546 = vadd.s32 %v542, 1
    %v547 = vsel %vm545, %v546, %v542
    %v548 = vadd.s32 %v543, %v547
    %v549 = vadd.s32 %v548, 536870912
    %v550 = vshrl.u32 %v549, 30
    %v551 = vshll.u32 %v550, 30
    %v552 = vsub.s32 %v548, %v551
    %vm553 = vcmp.lt.s32.totalorder %v552, 0
    %v554 = vsub.s32 0, %v552
    %v555 = vsel %vm553, %v554, %v552
    %v556 = vclz %v555
    %v557 = vsub.s32 %v556, 2
    %vm558 = vcmp.gt.s32.totalorder 0, %v557
    %v559 = vsel %vm558, 0, %v557
    %v560 = vsub.s32 32, %v559
    %v561 = vshll.u32 %v552, %v559
    %v562 = vshrl.u32 %v544, %v560
    %v563 = vor.u32 %v561, %v562
    %v564 = vsub.s32 4294967266, %v559
    %v565 = vadd.s32 %v564, 127
    %v566 = vshll.u32 %v565, 23
    %v567 = vor.u32 4788187, %v566
    %v568 = vand.u32 2147483647, %v567
    %v570 = vcvt.s32.f32 %v563
    %v571 = vmul.f32 %v570, %v568
    %v572 = vxor.u32 %v571, 2147483648
    %v573 = vsel %vm452, %v572, %v571
    %v574 = vsub.s32 4, %v550
    %v575 = vsel %vm452, %v574, %v550
    %v576 = vsel %vm451, %v449, %v573
    %v577 = vsel %vm451, 0, %v575
    %v578 = vmul.f32 %v576, %v576
    %v579 = vmul.f32 %v578, -0.001358992
    %v580 = vadd.f32 %v579, 0.041655596
    %v581 = vmul.f32 %v578, %v580
    %v582 = vadd.f32 %v581, -0.4999988
    %v583 = vmul.f32 %v578, %v582
    %v584 = vadd.f32 1.0, %v583
    %v585 = vmul.f32 %v576, %v576
    %v586 = vmul.f32 %v585, -0.00019511016
    %v587 = vadd.f32 %v586, 0.008332121
    %v588 = vmul.f32 %v585, %v587
    %v589 = vadd.f32 %v588, -0.16666654
    %v590 = vmul.f32 %v585, %v589
    %v591 = vadd.f32 %v590, 1.0
    %v592 = vmul.f32 %v591, %v576
    %vm593 = vweird.f32 %v449
    %v594 = vadd.s32 %v577, 3
    %v595 = vand.u32 %v594, 3
    %vm596 = vcmp.lt.s32.totalorder %v595, 2
    %vm597 = vcmp.eq.s32.totalorder %v595, 0
    %v598 = vxor.u32 %v592, 2147483648
    %v599 = vsel %vm597, %v584, %v598
    %vm600 = vcmp.eq.s32.totalorder %v595, 2
    %v601 = vxor.u32 %v584, 2147483648
    %v602 = vsel %vm600, %v601, %v592
    %v603 = vsel %vm596, %v599, %v602
    %v604 = vsel %vm593, nan, %v603
    %605 = vst.msk [vmem:[#allocation7 + $0x2] sm:$0x1] %vm239, %v604
    %606 = vrot.lane.b32.xlu0 %v241, 104
    %v607 = vpop.permute.xlu0 %606
    %v608 = vsel %vm55, %v607, 0
    %610 = vmatpush.msra.mxu0 0.0
    %611 = vmatpush.msra.mxu0 0.0
    %612 = vmatpush.msra.mxu0 0.0
    %613 = vmatpush.msra.mxu0 0.0
    %614 = vmatpush.msra.mxu0 0.0
    %615 = vmatpush.msra.mxu0 0.0
    %616 = vmatpush.msra.mxu0 0.0
    %617 = vmatpush.msra.mxu0 0.0
    %618 = vmatpush.msra.mxu0 0.0
    %619 = vmatpush.msra.mxu0 0.0
    %620 = vmatpush.msra.mxu0 0.0
    %621 = vmatpush.msra.mxu0 0.0
    %622 = vmatpush.msra.mxu0 0.0
    %623 = vmatpush.msra.mxu0 0.0
    %624 = vmatpush.msra.mxu0 0.0
    %625 = vmatpush.msra.mxu0 %v54
    %626 = vmatmul.f32.gmra.mxu0 %v608
    %v627 = vpop.f32.mrf.mxu0
    %v628 = vadd.f32 0.0, %v627
    %629 = vdwg.mxu0
    %v630 = vmul.f32 %v628, %v52
    %v631 = vadd.f32 %v630, %v53
    %v632 = vand.u32 2147483647, %v631
    %vm633 = vcmp.le.f32.partialorder %v632, 0.7853982
    %vm634 = vcmp.lt.s32.totalorder %v631, 0
    %v635 = vand.u32 %v631, 2139095040
    %v636 = vshrl.u32 %v635, 23
    %v637 = vsub.s32 %v636, 127
    %v638 = vand.u32 2147483647, %v631
    %v639 = vand.u32 %v638, 8388607
    %v640 = vor.u32 %v639, 8388608
    %v641 = vsub.s32 0, %v640
    %v642 = vadd.s32 %v637, 1
    %vm643 = vcmp.gt.s32.totalorder %v642, 0
    %v644 = vsel %vm643, %v642, 0
    %v645 = vshrl.u32 %v644, 5
    %v646 = vand.u32 %v644, 31
    %v647 = vsub.s32 32, %v646
    %v648 = vshrl.u32 683565275, %v647
    %v649 = vshll.u32 683565275, %v646
    %v650 = vshrl.u32 2475754826, %v647
    %v651 = vor.u32 %v649, %v650
    %v652 = vshll.u32 2475754826, %v646
    %v653 = vshrl.u32 2131351028, %v647
    %v654 = vor.u32 %v652, %v653
    %v655 = vshll.u32 2131351028, %v646
    %v656 = vshrl.u32 2102212464, %v647
    %v657 = vor.u32 %v655, %v656
    %v658 = vshll.u32 2102212464, %v646
    %v659 = vshrl.u32 920167782, %v647
    %v660 = vor.u32 %v658, %v659
    %v661 = vshll.u32 920167782, %v646
    %v662 = vshrl.u32 1326507024, %v647
    %v663 = vor.u32 %v661, %v662
    %vm664 = vcmp.lt.s32.totalorder %v645, 1
    %vm665 = vcmp.lt.s32.totalorder %v645, 2
    %vm666 = vcmp.lt.s32.totalorder %v645, 3
    %vm667 = vcmp.lt.s32.totalorder %v645, 4
    %v668 = vsel %vm664, %v648, %v651
    %v669 = vsel %vm667, %v657, 2102212464
    %v670 = vsel %vm666, %v654, %v669
    %v671 = vsel %vm665, %v668, %v670
    %v672 = vsel %vm664, %v651, %v654
    %v673 = vsel %vm667, %v660, 920167782
    %v674 = vsel %vm666, %v657, %v673
    %v675 = vsel %vm665, %v672, %v674
    %v676 = vsel %vm664, %v654, %v657
    %v677 = vsel %vm667, %v663, 1326507024
    %v678 = vsel %vm666, %v660, %v677
    %v679 = vsel %vm665, %v676, %v678
    %v680 = vshll.u32 %v640, 8
    %v681 = vand.u32 %v680, 65535
    %v682 = vshrl.u32 %v680, 16
    %v683 = vand.u32 %v679, 65535
    %v684 = vshrl.u32 %v679, 16
    %v685 = vmul.u32 %v681, %v683
    %v686 = vmul.u32 %v681, %v684
    %v687 = vmul.u32 %v682, %v683
    %v688 = vmul.u32 %v682, %v684
    %v689 = vshll.u32 %v686, 16
    %v690 = vshrl.u32 %v686, 16
    %v691 = vshll.u32 %v687, 16
    %v692 = vshrl.u32 %v687, 16
    %vm693 = vc.u32 %v685, %v689
    %v694 = vsel %vm693, 1, 0
    %v695 = vadd.s32 %v685, %v689
    %v696 = vadd.s32 %v688, %v694
    %vm697 = vc.u32 %v695, %v691
    %v698 = vsel %vm697, 1, 0
    %v699 = vadd.s32 %v695, %v691
    %v700 = vadd.s32 %v696, %v698
    %v701 = vadd.s32 %v700, %v690
    %v702 = vadd.s32 %v701, %v692
    %v703 = vand.u32 %v680, 65535
    %v704 = vshrl.u32 %v680, 16
    %v705 = vand.u32 %v675, 65535
    %v706 = vshrl.u32 %v675, 16
    %v707 = vmul.u32 %v703, %v705
    %v708 = vmul.u32 %v703, %v706
    %v709 = vmul.u32 %v704, %v705
    %v710 = vmul.u32 %v704, %v706
    %v711 = vshll.u32 %v708, 16
    %v712 = vshrl.u32 %v708, 16
    %v713 = vshll.u32 %v709, 16
    %v714 = vshrl.u32 %v709, 16
    %vm715 = vc.u32 %v707, %v711
    %v716 = vsel %vm715, 1, 0
    %v717 = vadd.s32 %v707, %v711
    %v718 = vadd.s32 %v710, %v716
    %vm719 = vc.u32 %v717, %v713
    %v720 = vsel %vm719, 1, 0
    %v721 = vadd.s32 %v717, %v713
    %v722 = vadd.s32 %v718, %v720
    %v723 = vadd.s32 %v722, %v712
    %v724 = vadd.s32 %v723, %v714
    %v725 = vmul.u32 %v680, %v671
    %v726 = vadd.s32 %v702, %v721
    %vm727 = vc.u32 %v702, %v721
    %v728 = vadd.s32 %v724, 1
    %v729 = vsel %vm727, %v728, %v724
    %v730 = vadd.s32 %v725, %v729
    %v731 = vadd.s32 %v730, 536870912
    %v732 = vshrl.u32 %v731, 30
    %v733 = vshll.u32 %v732, 30
    %v734 = vsub.s32 %v730, %v733
    %vm735 = vcmp.lt.s32.totalorder %v734, 0
    %v736 = vsub.s32 0, %v734
    %v737 = vsel %vm735, %v736, %v734
    %v738 = vclz %v737
    %v739 = vsub.s32 %v738, 2
    %vm740 = vcmp.gt.s32.totalorder 0, %v739
    %v741 = vsel %vm740, 0, %v739
    %v742 = vsub.s32 32, %v741
    %v743 = vshll.u32 %v734, %v741
    %v744 = vshrl.u32 %v726, %v742
    %v745 = vor.u32 %v743, %v744
    %v746 = vsub.s32 4294967266, %v741
    %v747 = vadd.s32 %v746, 127
    %v748 = vshll.u32 %v747, 23
    %v749 = vor.u32 4788187, %v748
    %v750 = vand.u32 2147483647, %v749
    %v752 = vcvt.s32.f32 %v745
    %v753 = vmul.f32 %v752, %v750
    %v754 = vxor.u32 %v753, 2147483648
    %v755 = vsel %vm634, %v754, %v753
    %v756 = vsub.s32 4, %v732
    %v757 = vsel %vm634, %v756, %v732
    %v758 = vsel %vm633, %v631, %v755
    %v759 = vsel %vm633, 0, %v757
    %v760 = vmul.f32 %v758, %v758
    %v761 = vmul.f32 %v760, -0.001358992
    %v762 = vadd.f32 %v761, 0.041655596
    %v763 = vmul.f32 %v760, %v762
    %v764 = vadd.f32 %v763, -0.4999988
    %v765 = vmul.f32 %v760, %v764
    %v766 = vadd.f32 1.0, %v765
    %v767 = vmul.f32 %v758, %v758
    %v768 = vmul.f32 %v767, -0.00019511016
    %v769 = vadd.f32 %v768, 0.008332121
    %v770 = vmul.f32 %v767, %v769
    %v771 = vadd.f32 %v770, -0.16666654
    %v772 = vmul.f32 %v767, %v771
    %v773 = vadd.f32 %v772, 1.0
    %v774 = vmul.f32 %v773, %v758
    %vm775 = vweird.f32 %v631
    %v776 = vadd.s32 %v759, 3
    %v777 = vand.u32 %v776, 3
    %vm778 = vcmp.lt.s32.totalorder %v777, 2
    %vm779 = vcmp.eq.s32.totalorder %v777, 0
    %v780 = vxor.u32 %v774, 2147483648
    %v781 = vsel %vm779, %v766, %v780
    %vm782 = vcmp.eq.s32.totalorder %v777, 2
    %v783 = vxor.u32 %v766, 2147483648
    %v784 = vsel %vm782, %v783, %v774
    %v785 = vsel %vm778, %v781, %v784
    %v786 = vsel %vm775, nan, %v785
    %787 = vst.msk [vmem:[#allocation7 + $0x3] sm:$0x1] %vm239, %v786
    %788 = vrot.lane.b32.xlu0 %v241, 96
    %v789 = vpop.permute.xlu0 %788
    %v790 = vsel %vm55, %v789, 0
    %792 = vmatpush.msra.mxu0 0.0
    %793 = vmatpush.msra.mxu0 0.0
    %794 = vmatpush.msra.mxu0 0.0
    %795 = vmatpush.msra.mxu0 0.0
    %796 = vmatpush.msra.mxu0 0.0
    %797 = vmatpush.msra.mxu0 0.0
    %798 = vmatpush.msra.mxu0 0.0
    %799 = vmatpush.msra.mxu0 0.0
    %800 = vmatpush.msra.mxu0 0.0
    %801 = vmatpush.msra.mxu0 0.0
    %802 = vmatpush.msra.mxu0 0.0
    %803 = vmatpush.msra.mxu0 0.0
    %804 = vmatpush.msra.mxu0 0.0
    %805 = vmatpush.msra.mxu0 0.0
    %806 = vmatpush.msra.mxu0 0.0
    %807 = vmatpush.msra.mxu0 %v54
    %808 = vmatmul.f32.gmra.mxu0 %v790
    %v809 = vpop.f32.mrf.mxu0
    %v810 = vadd.f32 0.0, %v809
    %811 = vdwg.mxu0
    %v812 = vmul.f32 %v810, %v52
    %v813 = vadd.f32 %v812, %v53
    %v814 = vand.u32 2147483647, %v813
    %vm815 = vcmp.le.f32.partialorder %v814, 0.7853982
    %vm816 = vcmp.lt.s32.totalorder %v813, 0
    %v817 = vand.u32 %v813, 2139095040
    %v818 = vshrl.u32 %v817, 23
    %v819 = vsub.s32 %v818, 127
    %v820 = vand.u32 2147483647, %v813
    %v821 = vand.u32 %v820, 8388607
    %v822 = vor.u32 %v821, 8388608
    %v823 = vsub.s32 0, %v822
    %v824 = vadd.s32 %v819, 1
    %vm825 = vcmp.gt.s32.totalorder %v824, 0
    %v826 = vsel %vm825, %v824, 0
    %v827 = vshrl.u32 %v826, 5
    %v828 = vand.u32 %v826, 31
    %v829 = vsub.s32 32, %v828
    %v830 = vshrl.u32 683565275, %v829
    %v831 = vshll.u32 683565275, %v828
    %v832 = vshrl.u32 2475754826, %v829
    %v833 = vor.u32 %v831, %v832
    %v834 = vshll.u32 2475754826, %v828
    %v835 = vshrl.u32 2131351028, %v829
    %v836 = vor.u32 %v834, %v835
    %v837 = vshll.u32 2131351028, %v828
    %v838 = vshrl.u32 2102212464, %v829
    %v839 = vor.u32 %v837, %v838
    %v840 = vshll.u32 2102212464, %v828
    %v841 = vshrl.u32 920167782, %v829
    %v842 = vor.u32 %v840, %v841
    %v843 = vshll.u32 920167782, %v828
    %v844 = vshrl.u32 1326507024, %v829
    %v845 = vor.u32 %v843, %v844
    %vm846 = vcmp.lt.s32.totalorder %v827, 1
    %vm847 = vcmp.lt.s32.totalorder %v827, 2
    %vm848 = vcmp.lt.s32.totalorder %v827, 3
    %vm849 = vcmp.lt.s32.totalorder %v827, 4
    %v850 = vsel %vm846, %v830, %v833
    %v851 = vsel %vm849, %v839, 2102212464
    %v852 = vsel %vm848, %v836, %v851
    %v853 = vsel %vm847, %v850, %v852
    %v854 = vsel %vm846, %v833, %v836
    %v855 = vsel %vm849, %v842, 920167782
    %v856 = vsel %vm848, %v839, %v855
    %v857 = vsel %vm847, %v854, %v856
    %v858 = vsel %vm846, %v836, %v839
    %v859 = vsel %vm849, %v845, 1326507024
    %v860 = vsel %vm848, %v842, %v859
    %v861 = vsel %vm847, %v858, %v860
    %v862 = vshll.u32 %v822, 8
    %v863 = vand.u32 %v862, 65535
    %v864 = vshrl.u32 %v862, 16
    %v865 = vand.u32 %v861, 65535
    %v866 = vshrl.u32 %v861, 16
    %v867 = vmul.u32 %v863, %v865
    %v868 = vmul.u32 %v863, %v866
    %v869 = vmul.u32 %v864, %v865
    %v870 = vmul.u32 %v864, %v866
    %v871 = vshll.u32 %v868, 16
    %v872 = vshrl.u32 %v868, 16
    %v873 = vshll.u32 %v869, 16
    %v874 = vshrl.u32 %v869, 16
    %vm875 = vc.u32 %v867, %v871
    %v876 = vsel %vm875, 1, 0
    %v877 = vadd.s32 %v867, %v871
    %v878 = vadd.s32 %v870, %v876
    %vm879 = vc.u32 %v877, %v873
    %v880 = vsel %vm879, 1, 0
    %v881 = vadd.s32 %v877, %v873
    %v882 = vadd.s32 %v878, %v880
    %v883 = vadd.s32 %v882, %v872
    %v884 = vadd.s32 %v883, %v874
    %v885 = vand.u32 %v862, 65535
    %v886 = vshrl.u32 %v862, 16
    %v887 = vand.u32 %v857, 65535
    %v888 = vshrl.u32 %v857, 16
    %v889 = vmul.u32 %v885, %v887
    %v890 = vmul.u32 %v885, %v888
    %v891 = vmul.u32 %v886, %v887
    %v892 = vmul.u32 %v886, %v888
    %v893 = vshll.u32 %v890, 16
    %v894 = vshrl.u32 %v890, 16
    %v895 = vshll.u32 %v891, 16
    %v896 = vshrl.u32 %v891, 16
    %vm897 = vc.u32 %v889, %v893
    %v898 = vsel %vm897, 1, 0
    %v899 = vadd.s32 %v889, %v893
    %v900 = vadd.s32 %v892, %v898
    %vm901 = vc.u32 %v899, %v895
    %v902 = vsel %vm901, 1, 0
    %v903 = vadd.s32 %v899, %v895
    %v904 = vadd.s32 %v900, %v902
    %v905 = vadd.s32 %v904, %v894
    %v906 = vadd.s32 %v905, %v896
    %v907 = vmul.u32 %v862, %v853
    %v908 = vadd.s32 %v884, %v903
    %vm909 = vc.u32 %v884, %v903
    %v910 = vadd.s32 %v906, 1
    %v911 = vsel %vm909, %v910, %v906
    %v912 = vadd.s32 %v907, %v911
    %v913 = vadd.s32 %v912, 536870912
    %v914 = vshrl.u32 %v913, 30
    %v915 = vshll.u32 %v914, 30
    %v916 = vsub.s32 %v912, %v915
    %vm917 = vcmp.lt.s32.totalorder %v916, 0
    %v918 = vsub.s32 0, %v916
    %v919 = vsel %vm917, %v918, %v916
    %v920 = vclz %v919
    %v921 = vsub.s32 %v920, 2
    %vm922 = vcmp.gt.s32.totalorder 0, %v921
    %v923 = vsel %vm922, 0, %v921
    %v924 = vsub.s32 32, %v923
    %v925 = vshll.u32 %v916, %v923
    %v926 = vshrl.u32 %v908, %v924
    %v927 = vor.u32 %v925, %v926
    %v928 = vsub.s32 4294967266, %v923
    %v929 = vadd.s32 %v928, 127
    %v930 = vshll.u32 %v929, 23
    %v931 = vor.u32 4788187, %v930
    %v932 = vand.u32 2147483647, %v931
    %v934 = vcvt.s32.f32 %v927
    %v935 = vmul.f32 %v934, %v932
    %v936 = vxor.u32 %v935, 2147483648
    %v937 = vsel %vm816, %v936, %v935
    %v938 = vsub.s32 4, %v914
    %v939 = vsel %vm816, %v938, %v914
    %v940 = vsel %vm815, %v813, %v937
    %v941 = vsel %vm815, 0, %v939
    %v942 = vmul.f32 %v940, %v940
    %v943 = vmul.f32 %v942, -0.001358992
    %v944 = vadd.f32 %v943, 0.041655596
    %v945 = vmul.f32 %v942, %v944
    %v946 = vadd.f32 %v945, -0.4999988
    %v947 = vmul.f32 %v942, %v946
    %v948 = vadd.f32 1.0, %v947
    %v949 = vmul.f32 %v940, %v940
    %v950 = vmul.f32 %v949, -0.00019511016
    %v951 = vadd.f32 %v950, 0.008332121
    %v952 = vmul.f32 %v949, %v951
    %v953 = vadd.f32 %v952, -0.16666654
    %v954 = vmul.f32 %v949, %v953
    %v955 = vadd.f32 %v954, 1.0
    %v956 = vmul.f32 %v955, %v940
    %vm957 = vweird.f32 %v813
    %v958 = vadd.s32 %v941, 3
    %v959 = vand.u32 %v958, 3
    %vm960 = vcmp.lt.s32.totalorder %v959, 2
    %vm961 = vcmp.eq.s32.totalorder %v959, 0
    %v962 = vxor.u32 %v956, 2147483648
    %v963 = vsel %vm961, %v948, %v962
    %vm964 = vcmp.eq.s32.totalorder %v959, 2
    %v965 = vxor.u32 %v948, 2147483648
    %v966 = vsel %vm964, %v965, %v956
    %v967 = vsel %vm960, %v963, %v966
    %v968 = vsel %vm957, nan, %v967
    %969 = vst.msk [vmem:[#allocation7 + $0x4] sm:$0x1] %vm239, %v968
    %970 = vrot.lane.b32.xlu0 %v241, 88
    %v971 = vpop.permute.xlu0 %970
    %v972 = vsel %vm55, %v971, 0
    %974 = vmatpush.msra.mxu0 0.0
    %975 = vmatpush.msra.mxu0 0.0
    %976 = vmatpush.msra.mxu0 0.0
    %977 = vmatpush.msra.mxu0 0.0
    %978 = vmatpush.msra.mxu0 0.0
    %979 = vmatpush.msra.mxu0 0.0
    %980 = vmatpush.msra.mxu0 0.0
    %981 = vmatpush.msra.mxu0 0.0
    %982 = vmatpush.msra.mxu0 0.0
    %983 = vmatpush.msra.mxu0 0.0
    %984 = vmatpush.msra.mxu0 0.0
    %985 = vmatpush.msra.mxu0 0.0
    %986 = vmatpush.msra.mxu0 0.0
    %987 = vmatpush.msra.mxu0 0.0
    %988 = vmatpush.msra.mxu0 0.0
    %989 = vmatpush.msra.mxu0 %v54
    %990 = vmatmul.f32.gmra.mxu0 %v972
    %v991 = vpop.f32.mrf.mxu0
    %v992 = vadd.f32 0.0, %v991
    %993 = vdwg.mxu0
    %v994 = vmul.f32 %v992, %v52
    %v995 = vadd.f32 %v994, %v53
    %v996 = vand.u32 2147483647, %v995
    %vm997 = vcmp.le.f32.partialorder %v996, 0.7853982
    %vm998 = vcmp.lt.s32.totalorder %v995, 0
    %v999 = vand.u32 %v995, 2139095040
    %v1000 = vshrl.u32 %v999, 23
    %v1001 = vsub.s32 %v1000, 127
    %v1002 = vand.u32 2147483647, %v995
    %v1003 = vand.u32 %v1002, 8388607
    %v1004 = vor.u32 %v1003, 8388608
    %v1005 = vsub.s32 0, %v1004
    %v1006 = vadd.s32 %v1001, 1
    %vm1007 = vcmp.gt.s32.totalorder %v1006, 0
    %v1008 = vsel %vm1007, %v1006, 0
    %v1009 = vshrl.u32 %v1008, 5
    %v1010 = vand.u32 %v1008, 31
    %v1011 = vsub.s32 32, %v1010
    %v1012 = vshrl.u32 683565275, %v1011
    %v1013 = vshll.u32 683565275, %v1010
    %v1014 = vshrl.u32 2475754826, %v1011
    %v1015 = vor.u32 %v1013, %v1014
    %v1016 = vshll.u32 2475754826, %v1010
    %v1017 = vshrl.u32 2131351028, %v1011
    %v1018 = vor.u32 %v1016, %v1017
    %v1019 = vshll.u32 2131351028, %v1010
    %v1020 = vshrl.u32 2102212464, %v1011
    %v1021 = vor.u32 %v1019, %v1020
    %v1022 = vshll.u32 2102212464, %v1010
    %v1023 = vshrl.u32 920167782, %v1011
    %v1024 = vor.u32 %v1022, %v1023
    %v1025 = vshll.u32 920167782, %v1010
    %v1026 = vshrl.u32 1326507024, %v1011
    %v1027 = vor.u32 %v1025, %v1026
    %vm1028 = vcmp.lt.s32.totalorder %v1009, 1
    %vm1029 = vcmp.lt.s32.totalorder %v1009, 2
    %vm1030 = vcmp.lt.s32.totalorder %v1009, 3
    %vm1031 = vcmp.lt.s32.totalorder %v1009, 4
    %v1032 = vsel %vm1028, %v1012, %v1015
    %v1033 = vsel %vm1031, %v1021, 2102212464
    %v1034 = vsel %vm1030, %v1018, %v1033
    %v1035 = vsel %vm1029, %v1032, %v1034
    %v1036 = vsel %vm1028, %v1015, %v1018
    %v1037 = vsel %vm1031, %v1024, 920167782
    %v1038 = vsel %vm1030, %v1021, %v1037
    %v1039 = vsel %vm1029, %v1036, %v1038
    %v1040 = vsel %vm1028, %v1018, %v1021
    %v1041 = vsel %vm1031, %v1027, 1326507024
    %v1042 = vsel %vm1030, %v1024, %v1041
    %v1043 = vsel %vm1029, %v1040, %v1042
    %v1044 = vshll.u32 %v1004, 8
    %v1045 = vand.u32 %v1044, 65535
    %v1046 = vshrl.u32 %v1044, 16
    %v1047 = vand.u32 %v1043, 65535
    %v1048 = vshrl.u32 %v1043, 16
    %v1049 = vmul.u32 %v1045, %v1047
    %v1050 = vmul.u32 %v1045, %v1048
    %v1051 = vmul.u32 %v1046, %v1047
    %v1052 = vmul.u32 %v1046, %v1048
    %v1053 = vshll.u32 %v1050, 16
    %v1054 = vshrl.u32 %v1050, 16
    %v1055 = vshll.u32 %v1051, 16
    %v1056 = vshrl.u32 %v1051, 16
    %vm1057 = vc.u32 %v1049, %v1053
    %v1058 = vsel %vm1057, 1, 0
    %v1059 = vadd.s32 %v1049, %v1053
    %v1060 = vadd.s32 %v1052, %v1058
    %vm1061 = vc.u32 %v1059, %v1055
    %v1062 = vsel %vm1061, 1, 0
    %v1063 = vadd.s32 %v1059, %v1055
    %v1064 = vadd.s32 %v1060, %v1062
    %v1065 = vadd.s32 %v1064, %v1054
    %v1066 = vadd.s32 %v1065, %v1056
    %v1067 = vand.u32 %v1044, 65535
    %v1068 = vshrl.u32 %v1044, 16
    %v1069 = vand.u32 %v1039, 65535
    %v1070 = vshrl.u32 %v1039, 16
    %v1071 = vmul.u32 %v1067, %v1069
    %v1072 = vmul.u32 %v1067, %v1070
    %v1073 = vmul.u32 %v1068, %v1069
    %v1074 = vmul.u32 %v1068, %v1070
    %v1075 = vshll.u32 %v1072, 16
    %v1076 = vshrl.u32 %v1072, 16
    %v1077 = vshll.u32 %v1073, 16
    %v1078 = vshrl.u32 %v1073, 16
    %vm1079 = vc.u32 %v1071, %v1075
    %v1080 = vsel %vm1079, 1, 0
    %v1081 = vadd.s32 %v1071, %v1075
    %v1082 = vadd.s32 %v1074, %v1080
    %vm1083 = vc.u32 %v1081, %v1077
    %v1084 = vsel %vm1083, 1, 0
    %v1085 = vadd.s32 %v1081, %v1077
    %v1086 = vadd.s32 %v1082, %v1084
    %v1087 = vadd.s32 %v1086, %v1076
    %v1088 = vadd.s32 %v1087, %v1078
    %v1089 = vmul.u32 %v1044, %v1035
    %v1090 = vadd.s32 %v1066, %v1085
    %vm1091 = vc.u32 %v1066, %v1085
    %v1092 = vadd.s32 %v1088, 1
    %v1093 = vsel %vm1091, %v1092, %v1088
    %v1094 = vadd.s32 %v1089, %v1093
    %v1095 = vadd.s32 %v1094, 536870912
    %v1096 = vshrl.u32 %v1095, 30
    %v1097 = vshll.u32 %v1096, 30
    %v1098 = vsub.s32 %v1094, %v1097
    %vm1099 = vcmp.lt.s32.totalorder %v1098, 0
    %v1100 = vsub.s32 0, %v1098
    %v1101 = vsel %vm1099, %v1100, %v1098
    %v1102 = vclz %v1101
    %v1103 = vsub.s32 %v1102, 2
    %vm1104 = vcmp.gt.s32.totalorder 0, %v1103
    %v1105 = vsel %vm1104, 0, %v1103
    %v1106 = vsub.s32 32, %v1105
    %v1107 = vshll.u32 %v1098, %v1105
    %v1108 = vshrl.u32 %v1090, %v1106
    %v1109 = vor.u32 %v1107, %v1108
    %v1110 = vsub.s32 4294967266, %v1105
    %v1111 = vadd.s32 %v1110, 127
    %v1112 = vshll.u32 %v1111, 23
    %v1113 = vor.u32 4788187, %v1112
    %v1114 = vand.u32 2147483647, %v1113
    %v1116 = vcvt.s32.f32 %v1109
    %v1117 = vmul.f32 %v1116, %v1114
    %v1118 = vxor.u32 %v1117, 2147483648
    %v1119 = vsel %vm998, %v1118, %v1117
    %v1120 = vsub.s32 4, %v1096
    %v1121 = vsel %vm998, %v1120, %v1096
    %v1122 = vsel %vm997, %v995, %v1119
    %v1123 = vsel %vm997, 0, %v1121
    %v1124 = vmul.f32 %v1122, %v1122
    %v1125 = vmul.f32 %v1124, -0.001358992
    %v1126 = vadd.f32 %v1125, 0.041655596
    %v1127 = vmul.f32 %v1124, %v1126
    %v1128 = vadd.f32 %v1127, -0.4999988
    %v1129 = vmul.f32 %v1124, %v1128
    %v1130 = vadd.f32 1.0, %v1129
    %v1131 = vmul.f32 %v1122, %v1122
    %v1132 = vmul.f32 %v1131, -0.00019511016
    %v1133 = vadd.f32 %v1132, 0.008332121
    %v1134 = vmul.f32 %v1131, %v1133
    %v1135 = vadd.f32 %v1134, -0.16666654
    %v1136 = vmul.f32 %v1131, %v1135
    %v1137 = vadd.f32 %v1136, 1.0
    %v1138 = vmul.f32 %v1137, %v1122
    %vm1139 = vweird.f32 %v995
    %v1140 = vadd.s32 %v1123, 3
    %v1141 = vand.u32 %v1140, 3
    %vm1142 = vcmp.lt.s32.totalorder %v1141, 2
    %vm1143 = vcmp.eq.s32.totalorder %v1141, 0
    %v1144 = vxor.u32 %v1138, 2147483648
    %v1145 = vsel %vm1143, %v1130, %v1144
    %vm1146 = vcmp.eq.s32.totalorder %v1141, 2
    %v1147 = vxor.u32 %v1130, 2147483648
    %v1148 = vsel %vm1146, %v1147, %v1138
    %v1149 = vsel %vm1142, %v1145, %v1148
    %v1150 = vsel %vm1139, nan, %v1149
    %1151 = vst.msk [vmem:[#allocation7 + $0x5] sm:$0x1] %vm239, %v1150
    %1152 = vrot.lane.b32.xlu0 %v241, 80
    %v1153 = vpop.permute.xlu0 %1152
    %v1154 = vsel %vm55, %v1153, 0
    %1156 = vmatpush.msra.mxu0 0.0
    %1157 = vmatpush.msra.mxu0 0.0
    %1158 = vmatpush.msra.mxu0 0.0
    %1159 = vmatpush.msra.mxu0 0.0
    %1160 = vmatpush.msra.mxu0 0.0
    %1161 = vmatpush.msra.mxu0 0.0
    %1162 = vmatpush.msra.mxu0 0.0
    %1163 = vmatpush.msra.mxu0 0.0
    %1164 = vmatpush.msra.mxu0 0.0
    %1165 = vmatpush.msra.mxu0 0.0
    %1166 = vmatpush.msra.mxu0 0.0
    %1167 = vmatpush.msra.mxu0 0.0
    %1168 = vmatpush.msra.mxu0 0.0
    %1169 = vmatpush.msra.mxu0 0.0
    %1170 = vmatpush.msra.mxu0 0.0
    %1171 = vmatpush.msra.mxu0 %v54
    %1172 = vmatmul.f32.gmra.mxu0 %v1154
    %v1173 = vpop.f32.mrf.mxu0
    %v1174 = vadd.f32 0.0, %v1173
    %1175 = vdwg.mxu0
    %v1176 = vmul.f32 %v1174, %v52
    %v1177 = vadd.f32 %v1176, %v53
    %v1178 = vand.u32 2147483647, %v1177
    %vm1179 = vcmp.le.f32.partialorder %v1178, 0.7853982
    %vm1180 = vcmp.lt.s32.totalorder %v1177, 0
    %v1181 = vand.u32 %v1177, 2139095040
    %v1182 = vshrl.u32 %v1181, 23
    %v1183 = vsub.s32 %v1182, 127
    %v1184 = vand.u32 2147483647, %v1177
    %v1185 = vand.u32 %v1184, 8388607
    %v1186 = vor.u32 %v1185, 8388608
    %v1187 = vsub.s32 0, %v1186
    %v1188 = vadd.s32 %v1183, 1
    %vm1189 = vcmp.gt.s32.totalorder %v1188, 0
    %v1190 = vsel %vm1189, %v1188, 0
    %v1191 = vshrl.u32 %v1190, 5
    %v1192 = vand.u32 %v1190, 31
    %v1193 = vsub.s32 32, %v1192
    %v1194 = vshrl.u32 683565275, %v1193
    %v1195 = vshll.u32 683565275, %v1192
    %v1196 = vshrl.u32 2475754826, %v1193
    %v1197 = vor.u32 %v1195, %v1196
    %v1198 = vshll.u32 2475754826, %v1192
    %v1199 = vshrl.u32 2131351028, %v1193
    %v1200 = vor.u32 %v1198, %v1199
    %v1201 = vshll.u32 2131351028, %v1192
    %v1202 = vshrl.u32 2102212464, %v1193
    %v1203 = vor.u32 %v1201, %v1202
    %v1204 = vshll.u32 2102212464, %v1192
    %v1205 = vshrl.u32 920167782, %v1193
    %v1206 = vor.u32 %v1204, %v1205
    %v1207 = vshll.u32 920167782, %v1192
    %v1208 = vshrl.u32 1326507024, %v1193
    %v1209 = vor.u32 %v1207, %v1208
    %vm1210 = vcmp.lt.s32.totalorder %v1191, 1
    %vm1211 = vcmp.lt.s32.totalorder %v1191, 2
    %vm1212 = vcmp.lt.s32.totalorder %v1191, 3
    %vm1213 = vcmp.lt.s32.totalorder %v1191, 4
    %v1214 = vsel %vm1210, %v1194, %v1197
    %v1215 = vsel %vm1213, %v1203, 2102212464
    %v1216 = vsel %vm1212, %v1200, %v1215
    %v1217 = vsel %vm1211, %v1214, %v1216
    %v1218 = vsel %vm1210, %v1197, %v1200
    %v1219 = vsel %vm1213, %v1206, 920167782
    %v1220 = vsel %vm1212, %v1203, %v1219
    %v1221 = vsel %vm1211, %v1218, %v1220
    %v1222 = vsel %vm1210, %v1200, %v1203
    %v1223 = vsel %vm1213, %v1209, 1326507024
    %v1224 = vsel %vm1212, %v1206, %v1223
    %v1225 = vsel %vm1211, %v1222, %v1224
    %v1226 = vshll.u32 %v1186, 8
    %v1227 = vand.u32 %v1226, 65535
    %v1228 = vshrl.u32 %v1226, 16
    %v1229 = vand.u32 %v1225, 65535
    %v1230 = vshrl.u32 %v1225, 16
    %v1231 = vmul.u32 %v1227, %v1229
    %v1232 = vmul.u32 %v1227, %v1230
    %v1233 = vmul.u32 %v1228, %v1229
    %v1234 = vmul.u32 %v1228, %v1230
    %v1235 = vshll.u32 %v1232, 16
    %v1236 = vshrl.u32 %v1232, 16
    %v1237 = vshll.u32 %v1233, 16
    %v1238 = vshrl.u32 %v1233, 16
    %vm1239 = vc.u32 %v1231, %v1235
    %v1240 = vsel %vm1239, 1, 0
    %v1241 = vadd.s32 %v1231, %v1235
    %v1242 = vadd.s32 %v1234, %v1240
    %vm1243 = vc.u32 %v1241, %v1237
    %v1244 = vsel %vm1243, 1, 0
    %v1245 = vadd.s32 %v1241, %v1237
    %v1246 = vadd.s32 %v1242, %v1244
    %v1247 = vadd.s32 %v1246, %v1236
    %v1248 = vadd.s32 %v1247, %v1238
    %v1249 = vand.u32 %v1226, 65535
    %v1250 = vshrl.u32 %v1226, 16
    %v1251 = vand.u32 %v1221, 65535
    %v1252 = vshrl.u32 %v1221, 16
    %v1253 = vmul.u32 %v1249, %v1251
    %v1254 = vmul.u32 %v1249, %v1252
    %v1255 = vmul.u32 %v1250, %v1251
    %v1256 = vmul.u32 %v1250, %v1252
    %v1257 = vshll.u32 %v1254, 16
    %v1258 = vshrl.u32 %v1254, 16
    %v1259 = vshll.u32 %v1255, 16
    %v1260 = vshrl.u32 %v1255, 16
    %vm1261 = vc.u32 %v1253, %v1257
    %v1262 = vsel %vm1261, 1, 0
    %v1263 = vadd.s32 %v1253, %v1257
    %v1264 = vadd.s32 %v1256, %v1262
    %vm1265 = vc.u32 %v1263, %v1259
    %v1266 = vsel %vm1265, 1, 0
    %v1267 = vadd.s32 %v1263, %v1259
    %v1268 = vadd.s32 %v1264, %v1266
    %v1269 = vadd.s32 %v1268, %v1258
    %v1270 = vadd.s32 %v1269, %v1260
    %v1271 = vmul.u32 %v1226, %v1217
    %v1272 = vadd.s32 %v1248, %v1267
    %vm1273 = vc.u32 %v1248, %v1267
    %v1274 = vadd.s32 %v1270, 1
    %v1275 = vsel %vm1273, %v1274, %v1270
    %v1276 = vadd.s32 %v1271, %v1275
    %v1277 = vadd.s32 %v1276, 536870912
    %v1278 = vshrl.u32 %v1277, 30
    %v1279 = vshll.u32 %v1278, 30
    %v1280 = vsub.s32 %v1276, %v1279
    %vm1281 = vcmp.lt.s32.totalorder %v1280, 0
    %v1282 = vsub.s32 0, %v1280
    %v1283 = vsel %vm1281, %v1282, %v1280
    %v1284 = vclz %v1283
    %v1285 = vsub.s32 %v1284, 2
    %vm1286 = vcmp.gt.s32.totalorder 0, %v1285
    %v1287 = vsel %vm1286, 0, %v1285
    %v1288 = vsub.s32 32, %v1287
    %v1289 = vshll.u32 %v1280, %v1287
    %v1290 = vshrl.u32 %v1272, %v1288
    %v1291 = vor.u32 %v1289, %v1290
    %v1292 = vsub.s32 4294967266, %v1287
    %v1293 = vadd.s32 %v1292, 127
    %v1294 = vshll.u32 %v1293, 23
    %v1295 = vor.u32 4788187, %v1294
    %v1296 = vand.u32 2147483647, %v1295
    %v1298 = vcvt.s32.f32 %v1291
    %v1299 = vmul.f32 %v1298, %v1296
    %v1300 = vxor.u32 %v1299, 2147483648
    %v1301 = vsel %vm1180, %v1300, %v1299
    %v1302 = vsub.s32 4, %v1278
    %v1303 = vsel %vm1180, %v1302, %v1278
    %v1304 = vsel %vm1179, %v1177, %v1301
    %v1305 = vsel %vm1179, 0, %v1303
    %v1306 = vmul.f32 %v1304, %v1304
    %v1307 = vmul.f32 %v1306, -0.001358992
    %v1308 = vadd.f32 %v1307, 0.041655596
    %v1309 = vmul.f32 %v1306, %v1308
    %v1310 = vadd.f32 %v1309, -0.4999988
    %v1311 = vmul.f32 %v1306, %v1310
    %v1312 = vadd.f32 1.0, %v1311
    %v1313 = vmul.f32 %v1304, %v1304
    %v1314 = vmul.f32 %v1313, -0.00019511016
    %v1315 = vadd.f32 %v1314, 0.008332121
    %v1316 = vmul.f32 %v1313, %v1315
    %v1317 = vadd.f32 %v1316, -0.16666654
    %v1318 = vmul.f32 %v1313, %v1317
    %v1319 = vadd.f32 %v1318, 1.0
    %v1320 = vmul.f32 %v1319, %v1304
    %vm1321 = vweird.f32 %v1177
    %v1322 = vadd.s32 %v1305, 3
    %v1323 = vand.u32 %v1322, 3
    %vm1324 = vcmp.lt.s32.totalorder %v1323, 2
    %vm1325 = vcmp.eq.s32.totalorder %v1323, 0
    %v1326 = vxor.u32 %v1320, 2147483648
    %v1327 = vsel %vm1325, %v1312, %v1326
    %vm1328 = vcmp.eq.s32.totalorder %v1323, 2
    %v1329 = vxor.u32 %v1312, 2147483648
    %v1330 = vsel %vm1328, %v1329, %v1320
    %v1331 = vsel %vm1324, %v1327, %v1330
    %v1332 = vsel %vm1321, nan, %v1331
    %1333 = vst.msk [vmem:[#allocation7 + $0x6] sm:$0x1] %vm239, %v1332
    %1334 = vrot.lane.b32.xlu0 %v241, 72
    %v1335 = vpop.permute.xlu0 %1334
    %v1336 = vsel %vm55, %v1335, 0
    %1338 = vmatpush.msra.mxu0 0.0
    %1339 = vmatpush.msra.mxu0 0.0
    %1340 = vmatpush.msra.mxu0 0.0
    %1341 = vmatpush.msra.mxu0 0.0
    %1342 = vmatpush.msra.mxu0 0.0
    %1343 = vmatpush.msra.mxu0 0.0
    %1344 = vmatpush.msra.mxu0 0.0
    %1345 = vmatpush.msra.mxu0 0.0
    %1346 = vmatpush.msra.mxu0 0.0
    %1347 = vmatpush.msra.mxu0 0.0
    %1348 = vmatpush.msra.mxu0 0.0
    %1349 = vmatpush.msra.mxu0 0.0
    %1350 = vmatpush.msra.mxu0 0.0
    %1351 = vmatpush.msra.mxu0 0.0
    %1352 = vmatpush.msra.mxu0 0.0
    %1353 = vmatpush.msra.mxu0 %v54
    %1354 = vmatmul.f32.gmra.mxu0 %v1336
    %v1355 = vpop.f32.mrf.mxu0
    %v1356 = vadd.f32 0.0, %v1355
    %1357 = vdwg.mxu0
    %v1358 = vmul.f32 %v1356, %v52
    %v1359 = vadd.f32 %v1358, %v53
    %v1360 = vand.u32 2147483647, %v1359
    %vm1361 = vcmp.le.f32.partialorder %v1360, 0.7853982
    %vm1362 = vcmp.lt.s32.totalorder %v1359, 0
    %v1363 = vand.u32 %v1359, 2139095040
    %v1364 = vshrl.u32 %v1363, 23
    %v1365 = vsub.s32 %v1364, 127
    %v1366 = vand.u32 2147483647, %v1359
    %v1367 = vand.u32 %v1366, 8388607
    %v1368 = vor.u32 %v1367, 8388608
    %v1369 = vsub.s32 0, %v1368
    %v1370 = vadd.s32 %v1365, 1
    %vm1371 = vcmp.gt.s32.totalorder %v1370, 0
    %v1372 = vsel %vm1371, %v1370, 0
    %v1373 = vshrl.u32 %v1372, 5
    %v1374 = vand.u32 %v1372, 31
    %v1375 = vsub.s32 32, %v1374
    %v1376 = vshrl.u32 683565275, %v1375
    %v1377 = vshll.u32 683565275, %v1374
    %v1378 = vshrl.u32 2475754826, %v1375
    %v1379 = vor.u32 %v1377, %v1378
    %v1380 = vshll.u32 2475754826, %v1374
    %v1381 = vshrl.u32 2131351028, %v1375
    %v1382 = vor.u32 %v1380, %v1381
    %v1383 = vshll.u32 2131351028, %v1374
    %v1384 = vshrl.u32 2102212464, %v1375
    %v1385 = vor.u32 %v1383, %v1384
    %v1386 = vshll.u32 2102212464, %v1374
    %v1387 = vshrl.u32 920167782, %v1375
    %v1388 = vor.u32 %v1386, %v1387
    %v1389 = vshll.u32 920167782, %v1374
    %v1390 = vshrl.u32 1326507024, %v1375
    %v1391 = vor.u32 %v1389, %v1390
    %vm1392 = vcmp.lt.s32.totalorder %v1373, 1
    %vm1393 = vcmp.lt.s32.totalorder %v1373, 2
    %vm1394 = vcmp.lt.s32.totalorder %v1373, 3
    %vm1395 = vcmp.lt.s32.totalorder %v1373, 4
    %v1396 = vsel %vm1392, %v1376, %v1379
    %v1397 = vsel %vm1395, %v1385, 2102212464
    %v1398 = vsel %vm1394, %v1382, %v1397
    %v1399 = vsel %vm1393, %v1396, %v1398
    %v1400 = vsel %vm1392, %v1379, %v1382
    %v1401 = vsel %vm1395, %v1388, 920167782
    %v1402 = vsel %vm1394, %v1385, %v1401
    %v1403 = vsel %vm1393, %v1400, %v1402
    %v1404 = vsel %vm1392, %v1382, %v1385
    %v1405 = vsel %vm1395, %v1391, 1326507024
    %v1406 = vsel %vm1394, %v1388, %v1405
    %v1407 = vsel %vm1393, %v1404, %v1406
    %v1408 = vshll.u32 %v1368, 8
    %v1409 = vand.u32 %v1408, 65535
    %v1410 = vshrl.u32 %v1408, 16
    %v1411 = vand.u32 %v1407, 65535
    %v1412 = vshrl.u32 %v1407, 16
    %v1413 = vmul.u32 %v1409, %v1411
    %v1414 = vmul.u32 %v1409, %v1412
    %v1415 = vmul.u32 %v1410, %v1411
    %v1416 = vmul.u32 %v1410, %v1412
    %v1417 = vshll.u32 %v1414, 16
    %v1418 = vshrl.u32 %v1414, 16
    %v1419 = vshll.u32 %v1415, 16
    %v1420 = vshrl.u32 %v1415, 16
    %vm1421 = vc.u32 %v1413, %v1417
    %v1422 = vsel %vm1421, 1, 0
    %v1423 = vadd.s32 %v1413, %v1417
    %v1424 = vadd.s32 %v1416, %v1422
    %vm1425 = vc.u32 %v1423, %v1419
    %v1426 = vsel %vm1425, 1, 0
    %v1427 = vadd.s32 %v1423, %v1419
    %v1428 = vadd.s32 %v1424, %v1426
    %v1429 = vadd.s32 %v1428, %v1418
    %v1430 = vadd.s32 %v1429, %v1420
    %v1431 = vand.u32 %v1408, 65535
    %v1432 = vshrl.u32 %v1408, 16
    %v1433 = vand.u32 %v1403, 65535
    %v1434 = vshrl.u32 %v1403, 16
    %v1435 = vmul.u32 %v1431, %v1433
    %v1436 = vmul.u32 %v1431, %v1434
    %v1437 = vmul.u32 %v1432, %v1433
    %v1438 = vmul.u32 %v1432, %v1434
    %v1439 = vshll.u32 %v1436, 16
    %v1440 = vshrl.u32 %v1436, 16
    %v1441 = vshll.u32 %v1437, 16
    %v1442 = vshrl.u32 %v1437, 16
    %vm1443 = vc.u32 %v1435, %v1439
    %v1444 = vsel %vm1443, 1, 0
    %v1445 = vadd.s32 %v1435, %v1439
    %v1446 = vadd.s32 %v1438, %v1444
    %vm1447 = vc.u32 %v1445, %v1441
    %v1448 = vsel %vm1447, 1, 0
    %v1449 = vadd.s32 %v1445, %v1441
    %v1450 = vadd.s32 %v1446, %v1448
    %v1451 = vadd.s32 %v1450, %v1440
    %v1452 = vadd.s32 %v1451, %v1442
    %v1453 = vmul.u32 %v1408, %v1399
    %v1454 = vadd.s32 %v1430, %v1449
    %vm1455 = vc.u32 %v1430, %v1449
    %v1456 = vadd.s32 %v1452, 1
    %v1457 = vsel %vm1455, %v1456, %v1452
    %v1458 = vadd.s32 %v1453, %v1457
    %v1459 = vadd.s32 %v1458, 536870912
    %v1460 = vshrl.u32 %v1459, 30
    %v1461 = vshll.u32 %v1460, 30
    %v1462 = vsub.s32 %v1458, %v1461
    %vm1463 = vcmp.lt.s32.totalorder %v1462, 0
    %v1464 = vsub.s32 0, %v1462
    %v1465 = vsel %vm1463, %v1464, %v1462
    %v1466 = vclz %v1465
    %v1467 = vsub.s32 %v1466, 2
    %vm1468 = vcmp.gt.s32.totalorder 0, %v1467
    %v1469 = vsel %vm1468, 0, %v1467
    %v1470 = vsub.s32 32, %v1469
    %v1471 = vshll.u32 %v1462, %v1469
    %v1472 = vshrl.u32 %v1454, %v1470
    %v1473 = vor.u32 %v1471, %v1472
    %v1474 = vsub.s32 4294967266, %v1469
    %v1475 = vadd.s32 %v1474, 127
    %v1476 = vshll.u32 %v1475, 23
    %v1477 = vor.u32 4788187, %v1476
    %v1478 = vand.u32 2147483647, %v1477
    %v1480 = vcvt.s32.f32 %v1473
    %v1481 = vmul.f32 %v1480, %v1478
    %v1482 = vxor.u32 %v1481, 2147483648
    %v1483 = vsel %vm1362, %v1482, %v1481
    %v1484 = vsub.s32 4, %v1460
    %v1485 = vsel %vm1362, %v1484, %v1460
    %v1486 = vsel %vm1361, %v1359, %v1483
    %v1487 = vsel %vm1361, 0, %v1485
    %v1488 = vmul.f32 %v1486, %v1486
    %v1489 = vmul.f32 %v1488, -0.001358992
    %v1490 = vadd.f32 %v1489, 0.041655596
    %v1491 = vmul.f32 %v1488, %v1490
    %v1492 = vadd.f32 %v1491, -0.4999988
    %v1493 = vmul.f32 %v1488, %v1492
    %v1494 = vadd.f32 1.0, %v1493
    %v1495 = vmul.f32 %v1486, %v1486
    %v1496 = vmul.f32 %v1495, -0.00019511016
    %v1497 = vadd.f32 %v1496, 0.008332121
    %v1498 = vmul.f32 %v1495, %v1497
    %v1499 = vadd.f32 %v1498, -0.16666654
    %v1500 = vmul.f32 %v1495, %v1499
    %v1501 = vadd.f32 %v1500, 1.0
    %v1502 = vmul.f32 %v1501, %v1486
    %vm1503 = vweird.f32 %v1359
    %v1504 = vadd.s32 %v1487, 3
    %v1505 = vand.u32 %v1504, 3
    %vm1506 = vcmp.lt.s32.totalorder %v1505, 2
    %vm1507 = vcmp.eq.s32.totalorder %v1505, 0
    %v1508 = vxor.u32 %v1502, 2147483648
    %v1509 = vsel %vm1507, %v1494, %v1508
    %vm1510 = vcmp.eq.s32.totalorder %v1505, 2
    %v1511 = vxor.u32 %v1494, 2147483648
    %v1512 = vsel %vm1510, %v1511, %v1502
    %v1513 = vsel %vm1506, %v1509, %v1512
    %v1514 = vsel %vm1503, nan, %v1513
    %1515 = vst.msk [vmem:[#allocation7 + $0x7] sm:$0x1] %vm239, %v1514
    %1516 = vrot.lane.b32.xlu0 %v241, 64
    %v1517 = vpop.permute.xlu0 %1516
    %v1518 = vsel %vm55, %v1517, 0
    %1520 = vmatpush.msra.mxu0 0.0
    %1521 = vmatpush.msra.mxu0 0.0
    %1522 = vmatpush.msra.mxu0 0.0
    %1523 = vmatpush.msra.mxu0 0.0
    %1524 = vmatpush.msra.mxu0 0.0
    %1525 = vmatpush.msra.mxu0 0.0
    %1526 = vmatpush.msra.mxu0 0.0
    %1527 = vmatpush.msra.mxu0 0.0
    %1528 = vmatpush.msra.mxu0 0.0
    %1529 = vmatpush.msra.mxu0 0.0
    %1530 = vmatpush.msra.mxu0 0.0
    %1531 = vmatpush.msra.mxu0 0.0
    %1532 = vmatpush.msra.mxu0 0.0
    %1533 = vmatpush.msra.mxu0 0.0
    %1534 = vmatpush.msra.mxu0 0.0
    %1535 = vmatpush.msra.mxu0 %v54
    %1536 = vmatmul.f32.gmra.mxu0 %v1518
    %v1537 = vpop.f32.mrf.mxu0
    %v1538 = vadd.f32 0.0, %v1537
    %1539 = vdwg.mxu0
    %v1540 = vmul.f32 %v1538, %v52
    %v1541 = vadd.f32 %v1540, %v53
    %v1542 = vand.u32 2147483647, %v1541
    %vm1543 = vcmp.le.f32.partialorder %v1542, 0.7853982
    %vm1544 = vcmp.lt.s32.totalorder %v1541, 0
    %v1545 = vand.u32 %v1541, 2139095040
    %v1546 = vshrl.u32 %v1545, 23
    %v1547 = vsub.s32 %v1546, 127
    %v1548 = vand.u32 2147483647, %v1541
    %v1549 = vand.u32 %v1548, 8388607
    %v1550 = vor.u32 %v1549, 8388608
    %v1551 = vsub.s32 0, %v1550
    %v1552 = vadd.s32 %v1547, 1
    %vm1553 = vcmp.gt.s32.totalorder %v1552, 0
    %v1554 = vsel %vm1553, %v1552, 0
    %v1555 = vshrl.u32 %v1554, 5
    %v1556 = vand.u32 %v1554, 31
    %v1557 = vsub.s32 32, %v1556
    %v1558 = vshrl.u32 683565275, %v1557
    %v1559 = vshll.u32 683565275, %v1556
    %v1560 = vshrl.u32 2475754826, %v1557
    %v1561 = vor.u32 %v1559, %v1560
    %v1562 = vshll.u32 2475754826, %v1556
    %v1563 = vshrl.u32 2131351028, %v1557
    %v1564 = vor.u32 %v1562, %v1563
    %v1565 = vshll.u32 2131351028, %v1556
    %v1566 = vshrl.u32 2102212464, %v1557
    %v1567 = vor.u32 %v1565, %v1566
    %v1568 = vshll.u32 2102212464, %v1556
    %v1569 = vshrl.u32 920167782, %v1557
    %v1570 = vor.u32 %v1568, %v1569
    %v1571 = vshll.u32 920167782, %v1556
    %v1572 = vshrl.u32 1326507024, %v1557
    %v1573 = vor.u32 %v1571, %v1572
    %vm1574 = vcmp.lt.s32.totalorder %v1555, 1
    %vm1575 = vcmp.lt.s32.totalorder %v1555, 2
    %vm1576 = vcmp.lt.s32.totalorder %v1555, 3
    %vm1577 = vcmp.lt.s32.totalorder %v1555, 4
    %v1578 = vsel %vm1574, %v1558, %v1561
    %v1579 = vsel %vm1577, %v1567, 2102212464
    %v1580 = vsel %vm1576, %v1564, %v1579
    %v1581 = vsel %vm1575, %v1578, %v1580
    %v1582 = vsel %vm1574, %v1561, %v1564
    %v1583 = vsel %vm1577, %v1570, 920167782
    %v1584 = vsel %vm1576, %v1567, %v1583
    %v1585 = vsel %vm1575, %v1582, %v1584
    %v1586 = vsel %vm1574, %v1564, %v1567
    %v1587 = vsel %vm1577, %v1573, 1326507024
    %v1588 = vsel %vm1576, %v1570, %v1587
    %v1589 = vsel %vm1575, %v1586, %v1588
    %v1590 = vshll.u32 %v1550, 8
    %v1591 = vand.u32 %v1590, 65535
    %v1592 = vshrl.u32 %v1590, 16
    %v1593 = vand.u32 %v1589, 65535
    %v1594 = vshrl.u32 %v1589, 16
    %v1595 = vmul.u32 %v1591, %v1593
    %v1596 = vmul.u32 %v1591, %v1594
    %v1597 = vmul.u32 %v1592, %v1593
    %v1598 = vmul.u32 %v1592, %v1594
    %v1599 = vshll.u32 %v1596, 16
    %v1600 = vshrl.u32 %v1596, 16
    %v1601 = vshll.u32 %v1597, 16
    %v1602 = vshrl.u32 %v1597, 16
    %vm1603 = vc.u32 %v1595, %v1599
    %v1604 = vsel %vm1603, 1, 0
    %v1605 = vadd.s32 %v1595, %v1599
    %v1606 = vadd.s32 %v1598, %v1604
    %vm1607 = vc.u32 %v1605, %v1601
    %v1608 = vsel %vm1607, 1, 0
    %v1609 = vadd.s32 %v1605, %v1601
    %v1610 = vadd.s32 %v1606, %v1608
    %v1611 = vadd.s32 %v1610, %v1600
    %v1612 = vadd.s32 %v1611, %v1602
    %v1613 = vand.u32 %v1590, 65535
    %v1614 = vshrl.u32 %v1590, 16
    %v1615 = vand.u32 %v1585, 65535
    %v1616 = vshrl.u32 %v1585, 16
    %v1617 = vmul.u32 %v1613, %v1615
    %v1618 = vmul.u32 %v1613, %v1616
    %v1619 = vmul.u32 %v1614, %v1615
    %v1620 = vmul.u32 %v1614, %v1616
    %v1621 = vshll.u32 %v1618, 16
    %v1622 = vshrl.u32 %v1618, 16
    %v1623 = vshll.u32 %v1619, 16
    %v1624 = vshrl.u32 %v1619, 16
    %vm1625 = vc.u32 %v1617, %v1621
    %v1626 = vsel %vm1625, 1, 0
    %v1627 = vadd.s32 %v1617, %v1621
    %v1628 = vadd.s32 %v1620, %v1626
    %vm1629 = vc.u32 %v1627, %v1623
    %v1630 = vsel %vm1629, 1, 0
    %v1631 = vadd.s32 %v1627, %v1623
    %v1632 = vadd.s32 %v1628, %v1630
    %v1633 = vadd.s32 %v1632, %v1622
    %v1634 = vadd.s32 %v1633, %v1624
    %v1635 = vmul.u32 %v1590, %v1581
    %v1636 = vadd.s32 %v1612, %v1631
    %vm1637 = vc.u32 %v1612, %v1631
    %v1638 = vadd.s32 %v1634, 1
    %v1639 = vsel %vm1637, %v1638, %v1634
    %v1640 = vadd.s32 %v1635, %v1639
    %v1641 = vadd.s32 %v1640, 536870912
    %v1642 = vshrl.u32 %v1641, 30
    %v1643 = vshll.u32 %v1642, 30
    %v1644 = vsub.s32 %v1640, %v1643
    %vm1645 = vcmp.lt.s32.totalorder %v1644, 0
    %v1646 = vsub.s32 0, %v1644
    %v1647 = vsel %vm1645, %v1646, %v1644
    %v1648 = vclz %v1647
    %v1649 = vsub.s32 %v1648, 2
    %vm1650 = vcmp.gt.s32.totalorder 0, %v1649
    %v1651 = vsel %vm1650, 0, %v1649
    %v1652 = vsub.s32 32, %v1651
    %v1653 = vshll.u32 %v1644, %v1651
    %v1654 = vshrl.u32 %v1636, %v1652
    %v1655 = vor.u32 %v1653, %v1654
    %v1656 = vsub.s32 4294967266, %v1651
    %v1657 = vadd.s32 %v1656, 127
    %v1658 = vshll.u32 %v1657, 23
    %v1659 = vor.u32 4788187, %v1658
    %v1660 = vand.u32 2147483647, %v1659
    %v1662 = vcvt.s32.f32 %v1655
    %v1663 = vmul.f32 %v1662, %v1660
    %v1664 = vxor.u32 %v1663, 2147483648
    %v1665 = vsel %vm1544, %v1664, %v1663
    %v1666 = vsub.s32 4, %v1642
    %v1667 = vsel %vm1544, %v1666, %v1642
    %v1668 = vsel %vm1543, %v1541, %v1665
    %v1669 = vsel %vm1543, 0, %v1667
    %v1670 = vmul.f32 %v1668, %v1668
    %v1671 = vmul.f32 %v1670, -0.001358992
    %v1672 = vadd.f32 %v1671, 0.041655596
    %v1673 = vmul.f32 %v1670, %v1672
    %v1674 = vadd.f32 %v1673, -0.4999988
    %v1675 = vmul.f32 %v1670, %v1674
    %v1676 = vadd.f32 1.0, %v1675
    %v1677 = vmul.f32 %v1668, %v1668
    %v1678 = vmul.f32 %v1677, -0.00019511016
    %v1679 = vadd.f32 %v1678, 0.008332121
    %v1680 = vmul.f32 %v1677, %v1679
    %v1681 = vadd.f32 %v1680, -0.16666654
    %v1682 = vmul.f32 %v1677, %v1681
    %v1683 = vadd.f32 %v1682, 1.0
    %v1684 = vmul.f32 %v1683, %v1668
    %vm1685 = vweird.f32 %v1541
    %v1686 = vadd.s32 %v1669, 3
    %v1687 = vand.u32 %v1686, 3
    %vm1688 = vcmp.lt.s32.totalorder %v1687, 2
    %vm1689 = vcmp.eq.s32.totalorder %v1687, 0
    %v1690 = vxor.u32 %v1684, 2147483648
    %v1691 = vsel %vm1689, %v1676, %v1690
    %vm1692 = vcmp.eq.s32.totalorder %v1687, 2
    %v1693 = vxor.u32 %v1676, 2147483648
    %v1694 = vsel %vm1692, %v1693, %v1684
    %v1695 = vsel %vm1688, %v1691, %v1694
    %v1696 = vsel %vm1685, nan, %v1695
    %1697 = vst.msk [vmem:[#allocation7 + $0x8] sm:$0x1] %vm239, %v1696
    %1698 = vrot.lane.b32.xlu0 %v241, 56
    %v1699 = vpop.permute.xlu0 %1698
    %v1700 = vsel %vm55, %v1699, 0
    %1702 = vmatpush.msra.mxu0 0.0
    %1703 = vmatpush.msra.mxu0 0.0
    %1704 = vmatpush.msra.mxu0 0.0
    %1705 = vmatpush.msra.mxu0 0.0
    %1706 = vmatpush.msra.mxu0 0.0
    %1707 = vmatpush.msra.mxu0 0.0
    %1708 = vmatpush.msra.mxu0 0.0
    %1709 = vmatpush.msra.mxu0 0.0
    %1710 = vmatpush.msra.mxu0 0.0
    %1711 = vmatpush.msra.mxu0 0.0
    %1712 = vmatpush.msra.mxu0 0.0
    %1713 = vmatpush.msra.mxu0 0.0
    %1714 = vmatpush.msra.mxu0 0.0
    %1715 = vmatpush.msra.mxu0 0.0
    %1716 = vmatpush.msra.mxu0 0.0
    %1717 = vmatpush.msra.mxu0 %v54
    %1718 = vmatmul.f32.gmra.mxu0 %v1700
    %v1719 = vpop.f32.mrf.mxu0
    %v1720 = vadd.f32 0.0, %v1719
    %1721 = vdwg.mxu0
    %v1722 = vmul.f32 %v1720, %v52
    %v1723 = vadd.f32 %v1722, %v53
    %v1724 = vand.u32 2147483647, %v1723
    %vm1725 = vcmp.le.f32.partialorder %v1724, 0.7853982
    %vm1726 = vcmp.lt.s32.totalorder %v1723, 0
    %v1727 = vand.u32 %v1723, 2139095040
    %v1728 = vshrl.u32 %v1727, 23
    %v1729 = vsub.s32 %v1728, 127
    %v1730 = vand.u32 2147483647, %v1723
    %v1731 = vand.u32 %v1730, 8388607
    %v1732 = vor.u32 %v1731, 8388608
    %v1733 = vsub.s32 0, %v1732
    %v1734 = vadd.s32 %v1729, 1
    %vm1735 = vcmp.gt.s32.totalorder %v1734, 0
    %v1736 = vsel %vm1735, %v1734, 0
    %v1737 = vshrl.u32 %v1736, 5
    %v1738 = vand.u32 %v1736, 31
    %v1739 = vsub.s32 32, %v1738
    %v1740 = vshrl.u32 683565275, %v1739
    %v1741 = vshll.u32 683565275, %v1738
    %v1742 = vshrl.u32 2475754826, %v1739
    %v1743 = vor.u32 %v1741, %v1742
    %v1744 = vshll.u32 2475754826, %v1738
    %v1745 = vshrl.u32 2131351028, %v1739
    %v1746 = vor.u32 %v1744, %v1745
    %v1747 = vshll.u32 2131351028, %v1738
    %v1748 = vshrl.u32 2102212464, %v1739
    %v1749 = vor.u32 %v1747, %v1748
    %v1750 = vshll.u32 2102212464, %v1738
    %v1751 = vshrl.u32 920167782, %v1739
    %v1752 = vor.u32 %v1750, %v1751
    %v1753 = vshll.u32 920167782, %v1738
    %v1754 = vshrl.u32 1326507024, %v1739
    %v1755 = vor.u32 %v1753, %v1754
    %vm1756 = vcmp.lt.s32.totalorder %v1737, 1
    %vm1757 = vcmp.lt.s32.totalorder %v1737, 2
    %vm1758 = vcmp.lt.s32.totalorder %v1737, 3
    %vm1759 = vcmp.lt.s32.totalorder %v1737, 4
    %v1760 = vsel %vm1756, %v1740, %v1743
    %v1761 = vsel %vm1759, %v1749, 2102212464
    %v1762 = vsel %vm1758, %v1746, %v1761
    %v1763 = vsel %vm1757, %v1760, %v1762
    %v1764 = vsel %vm1756, %v1743, %v1746
    %v1765 = vsel %vm1759, %v1752, 920167782
    %v1766 = vsel %vm1758, %v1749, %v1765
    %v1767 = vsel %vm1757, %v1764, %v1766
    %v1768 = vsel %vm1756, %v1746, %v1749
    %v1769 = vsel %vm1759, %v1755, 1326507024
    %v1770 = vsel %vm1758, %v1752, %v1769
    %v1771 = vsel %vm1757, %v1768, %v1770
    %v1772 = vshll.u32 %v1732, 8
    %v1773 = vand.u32 %v1772, 65535
    %v1774 = vshrl.u32 %v1772, 16
    %v1775 = vand.u32 %v1771, 65535
    %v1776 = vshrl.u32 %v1771, 16
    %v1777 = vmul.u32 %v1773, %v1775
    %v1778 = vmul.u32 %v1773, %v1776
    %v1779 = vmul.u32 %v1774, %v1775
    %v1780 = vmul.u32 %v1774, %v1776
    %v1781 = vshll.u32 %v1778, 16
    %v1782 = vshrl.u32 %v1778, 16
    %v1783 = vshll.u32 %v1779, 16
    %v1784 = vshrl.u32 %v1779, 16
    %vm1785 = vc.u32 %v1777, %v1781
    %v1786 = vsel %vm1785, 1, 0
    %v1787 = vadd.s32 %v1777, %v1781
    %v1788 = vadd.s32 %v1780, %v1786
    %vm1789 = vc.u32 %v1787, %v1783
    %v1790 = vsel %vm1789, 1, 0
    %v1791 = vadd.s32 %v1787, %v1783
    %v1792 = vadd.s32 %v1788, %v1790
    %v1793 = vadd.s32 %v1792, %v1782
    %v1794 = vadd.s32 %v1793, %v1784
    %v1795 = vand.u32 %v1772, 65535
    %v1796 = vshrl.u32 %v1772, 16
    %v1797 = vand.u32 %v1767, 65535
    %v1798 = vshrl.u32 %v1767, 16
    %v1799 = vmul.u32 %v1795, %v1797
    %v1800 = vmul.u32 %v1795, %v1798
    %v1801 = vmul.u32 %v1796, %v1797
    %v1802 = vmul.u32 %v1796, %v1798
    %v1803 = vshll.u32 %v1800, 16
    %v1804 = vshrl.u32 %v1800, 16
    %v1805 = vshll.u32 %v1801, 16
    %v1806 = vshrl.u32 %v1801, 16
    %vm1807 = vc.u32 %v1799, %v1803
    %v1808 = vsel %vm1807, 1, 0
    %v1809 = vadd.s32 %v1799, %v1803
    %v1810 = vadd.s32 %v1802, %v1808
    %vm1811 = vc.u32 %v1809, %v1805
    %v1812 = vsel %vm1811, 1, 0
    %v1813 = vadd.s32 %v1809, %v1805
    %v1814 = vadd.s32 %v1810, %v1812
    %v1815 = vadd.s32 %v1814, %v1804
    %v1816 = vadd.s32 %v1815, %v1806
    %v1817 = vmul.u32 %v1772, %v1763
    %v1818 = vadd.s32 %v1794, %v1813
    %vm1819 = vc.u32 %v1794, %v1813
    %v1820 = vadd.s32 %v1816, 1
    %v1821 = vsel %vm1819, %v1820, %v1816
    %v1822 = vadd.s32 %v1817, %v1821
    %v1823 = vadd.s32 %v1822, 536870912
    %v1824 = vshrl.u32 %v1823, 30
    %v1825 = vshll.u32 %v1824, 30
    %v1826 = vsub.s32 %v1822, %v1825
    %vm1827 = vcmp.lt.s32.totalorder %v1826, 0
    %v1828 = vsub.s32 0, %v1826
    %v1829 = vsel %vm1827, %v1828, %v1826
    %v1830 = vclz %v1829
    %v1831 = vsub.s32 %v1830, 2
    %vm1832 = vcmp.gt.s32.totalorder 0, %v1831
    %v1833 = vsel %vm1832, 0, %v1831
    %v1834 = vsub.s32 32, %v1833
    %v1835 = vshll.u32 %v1826, %v1833
    %v1836 = vshrl.u32 %v1818, %v1834
    %v1837 = vor.u32 %v1835, %v1836
    %v1838 = vsub.s32 4294967266, %v1833
    %v1839 = vadd.s32 %v1838, 127
    %v1840 = vshll.u32 %v1839, 23
    %v1841 = vor.u32 4788187, %v1840
    %v1842 = vand.u32 2147483647, %v1841
    %v1844 = vcvt.s32.f32 %v1837
    %v1845 = vmul.f32 %v1844, %v1842
    %v1846 = vxor.u32 %v1845, 2147483648
    %v1847 = vsel %vm1726, %v1846, %v1845
    %v1848 = vsub.s32 4, %v1824
    %v1849 = vsel %vm1726, %v1848, %v1824
    %v1850 = vsel %vm1725, %v1723, %v1847
    %v1851 = vsel %vm1725, 0, %v1849
    %v1852 = vmul.f32 %v1850, %v1850
    %v1853 = vmul.f32 %v1852, -0.001358992
    %v1854 = vadd.f32 %v1853, 0.041655596
    %v1855 = vmul.f32 %v1852, %v1854
    %v1856 = vadd.f32 %v1855, -0.4999988
    %v1857 = vmul.f32 %v1852, %v1856
    %v1858 = vadd.f32 1.0, %v1857
    %v1859 = vmul.f32 %v1850, %v1850
    %v1860 = vmul.f32 %v1859, -0.00019511016
    %v1861 = vadd.f32 %v1860, 0.008332121
    %v1862 = vmul.f32 %v1859, %v1861
    %v1863 = vadd.f32 %v1862, -0.16666654
    %v1864 = vmul.f32 %v1859, %v1863
    %v1865 = vadd.f32 %v1864, 1.0
    %v1866 = vmul.f32 %v1865, %v1850
    %vm1867 = vweird.f32 %v1723
    %v1868 = vadd.s32 %v1851, 3
    %v1869 = vand.u32 %v1868, 3
    %vm1870 = vcmp.lt.s32.totalorder %v1869, 2
    %vm1871 = vcmp.eq.s32.totalorder %v1869, 0
    %v1872 = vxor.u32 %v1866, 2147483648
    %v1873 = vsel %vm1871, %v1858, %v1872
    %vm1874 = vcmp.eq.s32.totalorder %v1869, 2
    %v1875 = vxor.u32 %v1858, 2147483648
    %v1876 = vsel %vm1874, %v1875, %v1866
    %v1877 = vsel %vm1870, %v1873, %v1876
    %v1878 = vsel %vm1867, nan, %v1877
    %1879 = vst.msk [vmem:[#allocation7 + $0x9] sm:$0x1] %vm239, %v1878
    %1880 = vrot.lane.b32.xlu0 %v241, 48
    %v1881 = vpop.permute.xlu0 %1880
    %v1882 = vsel %vm55, %v1881, 0
    %1884 = vmatpush.msra.mxu0 0.0
    %1885 = vmatpush.msra.mxu0 0.0
    %1886 = vmatpush.msra.mxu0 0.0
    %1887 = vmatpush.msra.mxu0 0.0
    %1888 = vmatpush.msra.mxu0 0.0
    %1889 = vmatpush.msra.mxu0 0.0
    %1890 = vmatpush.msra.mxu0 0.0
    %1891 = vmatpush.msra.mxu0 0.0
    %1892 = vmatpush.msra.mxu0 0.0
    %1893 = vmatpush.msra.mxu0 0.0
    %1894 = vmatpush.msra.mxu0 0.0
    %1895 = vmatpush.msra.mxu0 0.0
    %1896 = vmatpush.msra.mxu0 0.0
    %1897 = vmatpush.msra.mxu0 0.0
    %1898 = vmatpush.msra.mxu0 0.0
    %1899 = vmatpush.msra.mxu0 %v54
    %1900 = vmatmul.f32.gmra.mxu0 %v1882
    %v1901 = vpop.f32.mrf.mxu0
    %v1902 = vadd.f32 0.0, %v1901
    %1903 = vdwg.mxu0
    %v1904 = vmul.f32 %v1902, %v52
    %v1905 = vadd.f32 %v1904, %v53
    %v1906 = vand.u32 2147483647, %v1905
    %vm1907 = vcmp.le.f32.partialorder %v1906, 0.7853982
    %vm1908 = vcmp.lt.s32.totalorder %v1905, 0
    %v1909 = vand.u32 %v1905, 2139095040
    %v1910 = vshrl.u32 %v1909, 23
    %v1911 = vsub.s32 %v1910, 127
    %v1912 = vand.u32 2147483647, %v1905
    %v1913 = vand.u32 %v1912, 8388607
    %v1914 = vor.u32 %v1913, 8388608
    %v1915 = vsub.s32 0, %v1914
    %v1916 = vadd.s32 %v1911, 1
    %vm1917 = vcmp.gt.s32.totalorder %v1916, 0
    %v1918 = vsel %vm1917, %v1916, 0
    %v1919 = vshrl.u32 %v1918, 5
    %v1920 = vand.u32 %v1918, 31
    %v1921 = vsub.s32 32, %v1920
    %v1922 = vshrl.u32 683565275, %v1921
    %v1923 = vshll.u32 683565275, %v1920
    %v1924 = vshrl.u32 2475754826, %v1921
    %v1925 = vor.u32 %v1923, %v1924
    %v1926 = vshll.u32 2475754826, %v1920
    %v1927 = vshrl.u32 2131351028, %v1921
    %v1928 = vor.u32 %v1926, %v1927
    %v1929 = vshll.u32 2131351028, %v1920
    %v1930 = vshrl.u32 2102212464, %v1921
    %v1931 = vor.u32 %v1929, %v1930
    %v1932 = vshll.u32 2102212464, %v1920
    %v1933 = vshrl.u32 920167782, %v1921
    %v1934 = vor.u32 %v1932, %v1933
    %v1935 = vshll.u32 920167782, %v1920
    %v1936 = vshrl.u32 1326507024, %v1921
    %v1937 = vor.u32 %v1935, %v1936
    %vm1938 = vcmp.lt.s32.totalorder %v1919, 1
    %vm1939 = vcmp.lt.s32.totalorder %v1919, 2
    %vm1940 = vcmp.lt.s32.totalorder %v1919, 3
    %vm1941 = vcmp.lt.s32.totalorder %v1919, 4
    %v1942 = vsel %vm1938, %v1922, %v1925
    %v1943 = vsel %vm1941, %v1931, 2102212464
    %v1944 = vsel %vm1940, %v1928, %v1943
    %v1945 = vsel %vm1939, %v1942, %v1944
    %v1946 = vsel %vm1938, %v1925, %v1928
    %v1947 = vsel %vm1941, %v1934, 920167782
    %v1948 = vsel %vm1940, %v1931, %v1947
    %v1949 = vsel %vm1939, %v1946, %v1948
    %v1950 = vsel %vm1938, %v1928, %v1931
    %v1951 = vsel %vm1941, %v1937, 1326507024
    %v1952 = vsel %vm1940, %v1934, %v1951
    %v1953 = vsel %vm1939, %v1950, %v1952
    %v1954 = vshll.u32 %v1914, 8
    %v1955 = vand.u32 %v1954, 65535
    %v1956 = vshrl.u32 %v1954, 16
    %v1957 = vand.u32 %v1953, 65535
    %v1958 = vshrl.u32 %v1953, 16
    %v1959 = vmul.u32 %v1955, %v1957
    %v1960 = vmul.u32 %v1955, %v1958
    %v1961 = vmul.u32 %v1956, %v1957
    %v1962 = vmul.u32 %v1956, %v1958
    %v1963 = vshll.u32 %v1960, 16
    %v1964 = vshrl.u32 %v1960, 16
    %v1965 = vshll.u32 %v1961, 16
    %v1966 = vshrl.u32 %v1961, 16
    %vm1967 = vc.u32 %v1959, %v1963
    %v1968 = vsel %vm1967, 1, 0
    %v1969 = vadd.s32 %v1959, %v1963
    %v1970 = vadd.s32 %v1962, %v1968
    %vm1971 = vc.u32 %v1969, %v1965
    %v1972 = vsel %vm1971, 1, 0
    %v1973 = vadd.s32 %v1969, %v1965
    %v1974 = vadd.s32 %v1970, %v1972
    %v1975 = vadd.s32 %v1974, %v1964
    %v1976 = vadd.s32 %v1975, %v1966
    %v1977 = vand.u32 %v1954, 65535
    %v1978 = vshrl.u32 %v1954, 16
    %v1979 = vand.u32 %v1949, 65535
    %v1980 = vshrl.u32 %v1949, 16
    %v1981 = vmul.u32 %v1977, %v1979
    %v1982 = vmul.u32 %v1977, %v1980
    %v1983 = vmul.u32 %v1978, %v1979
    %v1984 = vmul.u32 %v1978, %v1980
    %v1985 = vshll.u32 %v1982, 16
    %v1986 = vshrl.u32 %v1982, 16
    %v1987 = vshll.u32 %v1983, 16
    %v1988 = vshrl.u32 %v1983, 16
    %vm1989 = vc.u32 %v1981, %v1985
    %v1990 = vsel %vm1989, 1, 0
    %v1991 = vadd.s32 %v1981, %v1985
    %v1992 = vadd.s32 %v1984, %v1990
    %vm1993 = vc.u32 %v1991, %v1987
    %v1994 = vsel %vm1993, 1, 0
    %v1995 = vadd.s32 %v1991, %v1987
    %v1996 = vadd.s32 %v1992, %v1994
    %v1997 = vadd.s32 %v1996, %v1986
    %v1998 = vadd.s32 %v1997, %v1988
    %v1999 = vmul.u32 %v1954, %v1945
    %v2000 = vadd.s32 %v1976, %v1995
    %vm2001 = vc.u32 %v1976, %v1995
    %v2002 = vadd.s32 %v1998, 1
    %v2003 = vsel %vm2001, %v2002, %v1998
    %v2004 = vadd.s32 %v1999, %v2003
    %v2005 = vadd.s32 %v2004, 536870912
    %v2006 = vshrl.u32 %v2005, 30
    %v2007 = vshll.u32 %v2006, 30
    %v2008 = vsub.s32 %v2004, %v2007
    %vm2009 = vcmp.lt.s32.totalorder %v2008, 0
    %v2010 = vsub.s32 0, %v2008
    %v2011 = vsel %vm2009, %v2010, %v2008
    %v2012 = vclz %v2011
    %v2013 = vsub.s32 %v2012, 2
    %vm2014 = vcmp.gt.s32.totalorder 0, %v2013
    %v2015 = vsel %vm2014, 0, %v2013
    %v2016 = vsub.s32 32, %v2015
    %v2017 = vshll.u32 %v2008, %v2015
    %v2018 = vshrl.u32 %v2000, %v2016
    %v2019 = vor.u32 %v2017, %v2018
    %v2020 = vsub.s32 4294967266, %v2015
    %v2021 = vadd.s32 %v2020, 127
    %v2022 = vshll.u32 %v2021, 23
    %v2023 = vor.u32 4788187, %v2022
    %v2024 = vand.u32 2147483647, %v2023
    %v2026 = vcvt.s32.f32 %v2019
    %v2027 = vmul.f32 %v2026, %v2024
    %v2028 = vxor.u32 %v2027, 2147483648
    %v2029 = vsel %vm1908, %v2028, %v2027
    %v2030 = vsub.s32 4, %v2006
    %v2031 = vsel %vm1908, %v2030, %v2006
    %v2032 = vsel %vm1907, %v1905, %v2029
    %v2033 = vsel %vm1907, 0, %v2031
    %v2034 = vmul.f32 %v2032, %v2032
    %v2035 = vmul.f32 %v2034, -0.001358992
    %v2036 = vadd.f32 %v2035, 0.041655596
    %v2037 = vmul.f32 %v2034, %v2036
    %v2038 = vadd.f32 %v2037, -0.4999988
    %v2039 = vmul.f32 %v2034, %v2038
    %v2040 = vadd.f32 1.0, %v2039
    %v2041 = vmul.f32 %v2032, %v2032
    %v2042 = vmul.f32 %v2041, -0.00019511016
    %v2043 = vadd.f32 %v2042, 0.008332121
    %v2044 = vmul.f32 %v2041, %v2043
    %v2045 = vadd.f32 %v2044, -0.16666654
    %v2046 = vmul.f32 %v2041, %v2045
    %v2047 = vadd.f32 %v2046, 1.0
    %v2048 = vmul.f32 %v2047, %v2032
    %vm2049 = vweird.f32 %v1905
    %v2050 = vadd.s32 %v2033, 3
    %v2051 = vand.u32 %v2050, 3
    %vm2052 = vcmp.lt.s32.totalorder %v2051, 2
    %vm2053 = vcmp.eq.s32.totalorder %v2051, 0
    %v2054 = vxor.u32 %v2048, 2147483648
    %v2055 = vsel %vm2053, %v2040, %v2054
    %vm2056 = vcmp.eq.s32.totalorder %v2051, 2
    %v2057 = vxor.u32 %v2040, 2147483648
    %v2058 = vsel %vm2056, %v2057, %v2048
    %v2059 = vsel %vm2052, %v2055, %v2058
    %v2060 = vsel %vm2049, nan, %v2059
    %2061 = vst.msk [vmem:[#allocation7 + $0xa] sm:$0x1] %vm239, %v2060
    %2062 = vrot.lane.b32.xlu0 %v241, 40
    %v2063 = vpop.permute.xlu0 %2062
    %v2064 = vsel %vm55, %v2063, 0
    %2066 = vmatpush.msra.mxu0 0.0
    %2067 = vmatpush.msra.mxu0 0.0
    %2068 = vmatpush.msra.mxu0 0.0
    %2069 = vmatpush.msra.mxu0 0.0
    %2070 = vmatpush.msra.mxu0 0.0
    %2071 = vmatpush.msra.mxu0 0.0
    %2072 = vmatpush.msra.mxu0 0.0
    %2073 = vmatpush.msra.mxu0 0.0
    %2074 = vmatpush.msra.mxu0 0.0
    %2075 = vmatpush.msra.mxu0 0.0
    %2076 = vmatpush.msra.mxu0 0.0
    %2077 = vmatpush.msra.mxu0 0.0
    %2078 = vmatpush.msra.mxu0 0.0
    %2079 = vmatpush.msra.mxu0 0.0
    %2080 = vmatpush.msra.mxu0 0.0
    %2081 = vmatpush.msra.mxu0 %v54
    %2082 = vmatmul.f32.gmra.mxu0 %v2064
    %v2083 = vpop.f32.mrf.mxu0
    %v2084 = vadd.f32 0.0, %v2083
    %2085 = vdwg.mxu0
    %v2086 = vmul.f32 %v2084, %v52
    %v2087 = vadd.f32 %v2086, %v53
    %v2088 = vand.u32 2147483647, %v2087
    %vm2089 = vcmp.le.f32.partialorder %v2088, 0.7853982
    %vm2090 = vcmp.lt.s32.totalorder %v2087, 0
    %v2091 = vand.u32 %v2087, 2139095040
    %v2092 = vshrl.u32 %v2091, 23
    %v2093 = vsub.s32 %v2092, 127
    %v2094 = vand.u32 2147483647, %v2087
    %v2095 = vand.u32 %v2094, 8388607
    %v2096 = vor.u32 %v2095, 8388608
    %v2097 = vsub.s32 0, %v2096
    %v2098 = vadd.s32 %v2093, 1
    %vm2099 = vcmp.gt.s32.totalorder %v2098, 0
    %v2100 = vsel %vm2099, %v2098, 0
    %v2101 = vshrl.u32 %v2100, 5
    %v2102 = vand.u32 %v2100, 31
    %v2103 = vsub.s32 32, %v2102
    %v2104 = vshrl.u32 683565275, %v2103
    %v2105 = vshll.u32 683565275, %v2102
    %v2106 = vshrl.u32 2475754826, %v2103
    %v2107 = vor.u32 %v2105, %v2106
    %v2108 = vshll.u32 2475754826, %v2102
    %v2109 = vshrl.u32 2131351028, %v2103
    %v2110 = vor.u32 %v2108, %v2109
    %v2111 = vshll.u32 2131351028, %v2102
    %v2112 = vshrl.u32 2102212464, %v2103
    %v2113 = vor.u32 %v2111, %v2112
    %v2114 = vshll.u32 2102212464, %v2102
    %v2115 = vshrl.u32 920167782, %v2103
    %v2116 = vor.u32 %v2114, %v2115
    %v2117 = vshll.u32 920167782, %v2102
    %v2118 = vshrl.u32 1326507024, %v2103
    %v2119 = vor.u32 %v2117, %v2118
    %vm2120 = vcmp.lt.s32.totalorder %v2101, 1
    %vm2121 = vcmp.lt.s32.totalorder %v2101, 2
    %vm2122 = vcmp.lt.s32.totalorder %v2101, 3
    %vm2123 = vcmp.lt.s32.totalorder %v2101, 4
    %v2124 = vsel %vm2120, %v2104, %v2107
    %v2125 = vsel %vm2123, %v2113, 2102212464
    %v2126 = vsel %vm2122, %v2110, %v2125
    %v2127 = vsel %vm2121, %v2124, %v2126
    %v2128 = vsel %vm2120, %v2107, %v2110
    %v2129 = vsel %vm2123, %v2116, 920167782
    %v2130 = vsel %vm2122, %v2113, %v2129
    %v2131 = vsel %vm2121, %v2128, %v2130
    %v2132 = vsel %vm2120, %v2110, %v2113
    %v2133 = vsel %vm2123, %v2119, 1326507024
    %v2134 = vsel %vm2122, %v2116, %v2133
    %v2135 = vsel %vm2121, %v2132, %v2134
    %v2136 = vshll.u32 %v2096, 8
    %v2137 = vand.u32 %v2136, 65535
    %v2138 = vshrl.u32 %v2136, 16
    %v2139 = vand.u32 %v2135, 65535
    %v2140 = vshrl.u32 %v2135, 16
    %v2141 = vmul.u32 %v2137, %v2139
    %v2142 = vmul.u32 %v2137, %v2140
    %v2143 = vmul.u32 %v2138, %v2139
    %v2144 = vmul.u32 %v2138, %v2140
    %v2145 = vshll.u32 %v2142, 16
    %v2146 = vshrl.u32 %v2142, 16
    %v2147 = vshll.u32 %v2143, 16
    %v2148 = vshrl.u32 %v2143, 16
    %vm2149 = vc.u32 %v2141, %v2145
    %v2150 = vsel %vm2149, 1, 0
    %v2151 = vadd.s32 %v2141, %v2145
    %v2152 = vadd.s32 %v2144, %v2150
    %vm2153 = vc.u32 %v2151, %v2147
    %v2154 = vsel %vm2153, 1, 0
    %v2155 = vadd.s32 %v2151, %v2147
    %v2156 = vadd.s32 %v2152, %v2154
    %v2157 = vadd.s32 %v2156, %v2146
    %v2158 = vadd.s32 %v2157, %v2148
    %v2159 = vand.u32 %v2136, 65535
    %v2160 = vshrl.u32 %v2136, 16
    %v2161 = vand.u32 %v2131, 65535
    %v2162 = vshrl.u32 %v2131, 16
    %v2163 = vmul.u32 %v2159, %v2161
    %v2164 = vmul.u32 %v2159, %v2162
    %v2165 = vmul.u32 %v2160, %v2161
    %v2166 = vmul.u32 %v2160, %v2162
    %v2167 = vshll.u32 %v2164, 16
    %v2168 = vshrl.u32 %v2164, 16
    %v2169 = vshll.u32 %v2165, 16
    %v2170 = vshrl.u32 %v2165, 16
    %vm2171 = vc.u32 %v2163, %v2167
    %v2172 = vsel %vm2171, 1, 0
    %v2173 = vadd.s32 %v2163, %v2167
    %v2174 = vadd.s32 %v2166, %v2172
    %vm2175 = vc.u32 %v2173, %v2169
    %v2176 = vsel %vm2175, 1, 0
    %v2177 = vadd.s32 %v2173, %v2169
    %v2178 = vadd.s32 %v2174, %v2176
    %v2179 = vadd.s32 %v2178, %v2168
    %v2180 = vadd.s32 %v2179, %v2170
    %v2181 = vmul.u32 %v2136, %v2127
    %v2182 = vadd.s32 %v2158, %v2177
    %vm2183 = vc.u32 %v2158, %v2177
    %v2184 = vadd.s32 %v2180, 1
    %v2185 = vsel %vm2183, %v2184, %v2180
    %v2186 = vadd.s32 %v2181, %v2185
    %v2187 = vadd.s32 %v2186, 536870912
    %v2188 = vshrl.u32 %v2187, 30
    %v2189 = vshll.u32 %v2188, 30
    %v2190 = vsub.s32 %v2186, %v2189
    %vm2191 = vcmp.lt.s32.totalorder %v2190, 0
    %v2192 = vsub.s32 0, %v2190
    %v2193 = vsel %vm2191, %v2192, %v2190
    %v2194 = vclz %v2193
    %v2195 = vsub.s32 %v2194, 2
    %vm2196 = vcmp.gt.s32.totalorder 0, %v2195
    %v2197 = vsel %vm2196, 0, %v2195
    %v2198 = vsub.s32 32, %v2197
    %v2199 = vshll.u32 %v2190, %v2197
    %v2200 = vshrl.u32 %v2182, %v2198
    %v2201 = vor.u32 %v2199, %v2200
    %v2202 = vsub.s32 4294967266, %v2197
    %v2203 = vadd.s32 %v2202, 127
    %v2204 = vshll.u32 %v2203, 23
    %v2205 = vor.u32 4788187, %v2204
    %v2206 = vand.u32 2147483647, %v2205
    %v2208 = vcvt.s32.f32 %v2201
    %v2209 = vmul.f32 %v2208, %v2206
    %v2210 = vxor.u32 %v2209, 2147483648
    %v2211 = vsel %vm2090, %v2210, %v2209
    %v2212 = vsub.s32 4, %v2188
    %v2213 = vsel %vm2090, %v2212, %v2188
    %v2214 = vsel %vm2089, %v2087, %v2211
    %v2215 = vsel %vm2089, 0, %v2213
    %v2216 = vmul.f32 %v2214, %v2214
    %v2217 = vmul.f32 %v2216, -0.001358992
    %v2218 = vadd.f32 %v2217, 0.041655596
    %v2219 = vmul.f32 %v2216, %v2218
    %v2220 = vadd.f32 %v2219, -0.4999988
    %v2221 = vmul.f32 %v2216, %v2220
    %v2222 = vadd.f32 1.0, %v2221
    %v2223 = vmul.f32 %v2214, %v2214
    %v2224 = vmul.f32 %v2223, -0.00019511016
    %v2225 = vadd.f32 %v2224, 0.008332121
    %v2226 = vmul.f32 %v2223, %v2225
    %v2227 = vadd.f32 %v2226, -0.16666654
    %v2228 = vmul.f32 %v2223, %v2227
    %v2229 = vadd.f32 %v2228, 1.0
    %v2230 = vmul.f32 %v2229, %v2214
    %vm2231 = vweird.f32 %v2087
    %v2232 = vadd.s32 %v2215, 3
    %v2233 = vand.u32 %v2232, 3
    %vm2234 = vcmp.lt.s32.totalorder %v2233, 2
    %vm2235 = vcmp.eq.s32.totalorder %v2233, 0
    %v2236 = vxor.u32 %v2230, 2147483648
    %v2237 = vsel %vm2235, %v2222, %v2236
    %vm2238 = vcmp.eq.s32.totalorder %v2233, 2
    %v2239 = vxor.u32 %v2222, 2147483648
    %v2240 = vsel %vm2238, %v2239, %v2230
    %v2241 = vsel %vm2234, %v2237, %v2240
    %v2242 = vsel %vm2231, nan, %v2241
    %2243 = vst.msk [vmem:[#allocation7 + $0xb] sm:$0x1] %vm239, %v2242
    %2244 = vrot.lane.b32.xlu0 %v241, 32
    %v2245 = vpop.permute.xlu0 %2244
    %v2246 = vsel %vm55, %v2245, 0
    %2248 = vmatpush.msra.mxu0 0.0
    %2249 = vmatpush.msra.mxu0 0.0
    %2250 = vmatpush.msra.mxu0 0.0
    %2251 = vmatpush.msra.mxu0 0.0
    %2252 = vmatpush.msra.mxu0 0.0
    %2253 = vmatpush.msra.mxu0 0.0
    %2254 = vmatpush.msra.mxu0 0.0
    %2255 = vmatpush.msra.mxu0 0.0
    %2256 = vmatpush.msra.mxu0 0.0
    %2257 = vmatpush.msra.mxu0 0.0
    %2258 = vmatpush.msra.mxu0 0.0
    %2259 = vmatpush.msra.mxu0 0.0
    %2260 = vmatpush.msra.mxu0 0.0
    %2261 = vmatpush.msra.mxu0 0.0
    %2262 = vmatpush.msra.mxu0 0.0
    %2263 = vmatpush.msra.mxu0 %v54
    %2264 = vmatmul.f32.gmra.mxu0 %v2246
    %v2265 = vpop.f32.mrf.mxu0
    %v2266 = vadd.f32 0.0, %v2265
    %2267 = vdwg.mxu0
    %v2268 = vmul.f32 %v2266, %v52
    %v2269 = vadd.f32 %v2268, %v53
    %v2270 = vand.u32 2147483647, %v2269
    %vm2271 = vcmp.le.f32.partialorder %v2270, 0.7853982
    %vm2272 = vcmp.lt.s32.totalorder %v2269, 0
    %v2273 = vand.u32 %v2269, 2139095040
    %v2274 = vshrl.u32 %v2273, 23
    %v2275 = vsub.s32 %v2274, 127
    %v2276 = vand.u32 2147483647, %v2269
    %v2277 = vand.u32 %v2276, 8388607
    %v2278 = vor.u32 %v2277, 8388608
    %v2279 = vsub.s32 0, %v2278
    %v2280 = vadd.s32 %v2275, 1
    %vm2281 = vcmp.gt.s32.totalorder %v2280, 0
    %v2282 = vsel %vm2281, %v2280, 0
    %v2283 = vshrl.u32 %v2282, 5
    %v2284 = vand.u32 %v2282, 31
    %v2285 = vsub.s32 32, %v2284
    %v2286 = vshrl.u32 683565275, %v2285
    %v2287 = vshll.u32 683565275, %v2284
    %v2288 = vshrl.u32 2475754826, %v2285
    %v2289 = vor.u32 %v2287, %v2288
    %v2290 = vshll.u32 2475754826, %v2284
    %v2291 = vshrl.u32 2131351028, %v2285
    %v2292 = vor.u32 %v2290, %v2291
    %v2293 = vshll.u32 2131351028, %v2284
    %v2294 = vshrl.u32 2102212464, %v2285
    %v2295 = vor.u32 %v2293, %v2294
    %v2296 = vshll.u32 2102212464, %v2284
    %v2297 = vshrl.u32 920167782, %v2285
    %v2298 = vor.u32 %v2296, %v2297
    %v2299 = vshll.u32 920167782, %v2284
    %v2300 = vshrl.u32 1326507024, %v2285
    %v2301 = vor.u32 %v2299, %v2300
    %vm2302 = vcmp.lt.s32.totalorder %v2283, 1
    %vm2303 = vcmp.lt.s32.totalorder %v2283, 2
    %vm2304 = vcmp.lt.s32.totalorder %v2283, 3
    %vm2305 = vcmp.lt.s32.totalorder %v2283, 4
    %v2306 = vsel %vm2302, %v2286, %v2289
    %v2307 = vsel %vm2305, %v2295, 2102212464
    %v2308 = vsel %vm2304, %v2292, %v2307
    %v2309 = vsel %vm2303, %v2306, %v2308
    %v2310 = vsel %vm2302, %v2289, %v2292
    %v2311 = vsel %vm2305, %v2298, 920167782
    %v2312 = vsel %vm2304, %v2295, %v2311
    %v2313 = vsel %vm2303, %v2310, %v2312
    %v2314 = vsel %vm2302, %v2292, %v2295
    %v2315 = vsel %vm2305, %v2301, 1326507024
    %v2316 = vsel %vm2304, %v2298, %v2315
    %v2317 = vsel %vm2303, %v2314, %v2316
    %v2318 = vshll.u32 %v2278, 8
    %v2319 = vand.u32 %v2318, 65535
    %v2320 = vshrl.u32 %v2318, 16
    %v2321 = vand.u32 %v2317, 65535
    %v2322 = vshrl.u32 %v2317, 16
    %v2323 = vmul.u32 %v2319, %v2321
    %v2324 = vmul.u32 %v2319, %v2322
    %v2325 = vmul.u32 %v2320, %v2321
    %v2326 = vmul.u32 %v2320, %v2322
    %v2327 = vshll.u32 %v2324, 16
    %v2328 = vshrl.u32 %v2324, 16
    %v2329 = vshll.u32 %v2325, 16
    %v2330 = vshrl.u32 %v2325, 16
    %vm2331 = vc.u32 %v2323, %v2327
    %v2332 = vsel %vm2331, 1, 0
    %v2333 = vadd.s32 %v2323, %v2327
    %v2334 = vadd.s32 %v2326, %v2332
    %vm2335 = vc.u32 %v2333, %v2329
    %v2336 = vsel %vm2335, 1, 0
    %v2337 = vadd.s32 %v2333, %v2329
    %v2338 = vadd.s32 %v2334, %v2336
    %v2339 = vadd.s32 %v2338, %v2328
    %v2340 = vadd.s32 %v2339, %v2330
    %v2341 = vand.u32 %v2318, 65535
    %v2342 = vshrl.u32 %v2318, 16
    %v2343 = vand.u32 %v2313, 65535
    %v2344 = vshrl.u32 %v2313, 16
    %v2345 = vmul.u32 %v2341, %v2343
    %v2346 = vmul.u32 %v2341, %v2344
    %v2347 = vmul.u32 %v2342, %v2343
    %v2348 = vmul.u32 %v2342, %v2344
    %v2349 = vshll.u32 %v2346, 16
    %v2350 = vshrl.u32 %v2346, 16
    %v2351 = vshll.u32 %v2347, 16
    %v2352 = vshrl.u32 %v2347, 16
    %vm2353 = vc.u32 %v2345, %v2349
    %v2354 = vsel %vm2353, 1, 0
    %v2355 = vadd.s32 %v2345, %v2349
    %v2356 = vadd.s32 %v2348, %v2354
    %vm2357 = vc.u32 %v2355, %v2351
    %v2358 = vsel %vm2357, 1, 0
    %v2359 = vadd.s32 %v2355, %v2351
    %v2360 = vadd.s32 %v2356, %v2358
    %v2361 = vadd.s32 %v2360, %v2350
    %v2362 = vadd.s32 %v2361, %v2352
    %v2363 = vmul.u32 %v2318, %v2309
    %v2364 = vadd.s32 %v2340, %v2359
    %vm2365 = vc.u32 %v2340, %v2359
    %v2366 = vadd.s32 %v2362, 1
    %v2367 = vsel %vm2365, %v2366, %v2362
    %v2368 = vadd.s32 %v2363, %v2367
    %v2369 = vadd.s32 %v2368, 536870912
    %v2370 = vshrl.u32 %v2369, 30
    %v2371 = vshll.u32 %v2370, 30
    %v2372 = vsub.s32 %v2368, %v2371
    %vm2373 = vcmp.lt.s32.totalorder %v2372, 0
    %v2374 = vsub.s32 0, %v2372
    %v2375 = vsel %vm2373, %v2374, %v2372
    %v2376 = vclz %v2375
    %v2377 = vsub.s32 %v2376, 2
    %vm2378 = vcmp.gt.s32.totalorder 0, %v2377
    %v2379 = vsel %vm2378, 0, %v2377
    %v2380 = vsub.s32 32, %v2379
    %v2381 = vshll.u32 %v2372, %v2379
    %v2382 = vshrl.u32 %v2364, %v2380
    %v2383 = vor.u32 %v2381, %v2382
    %v2384 = vsub.s32 4294967266, %v2379
    %v2385 = vadd.s32 %v2384, 127
    %v2386 = vshll.u32 %v2385, 23
    %v2387 = vor.u32 4788187, %v2386
    %v2388 = vand.u32 2147483647, %v2387
    %v2390 = vcvt.s32.f32 %v2383
    %v2391 = vmul.f32 %v2390, %v2388
    %v2392 = vxor.u32 %v2391, 2147483648
    %v2393 = vsel %vm2272, %v2392, %v2391
    %v2394 = vsub.s32 4, %v2370
    %v2395 = vsel %vm2272, %v2394, %v2370
    %v2396 = vsel %vm2271, %v2269, %v2393
    %v2397 = vsel %vm2271, 0, %v2395
    %v2398 = vmul.f32 %v2396, %v2396
    %v2399 = vmul.f32 %v2398, -0.001358992
    %v2400 = vadd.f32 %v2399, 0.041655596
    %v2401 = vmul.f32 %v2398, %v2400
    %v2402 = vadd.f32 %v2401, -0.4999988
    %v2403 = vmul.f32 %v2398, %v2402
    %v2404 = vadd.f32 1.0, %v2403
    %v2405 = vmul.f32 %v2396, %v2396
    %v2406 = vmul.f32 %v2405, -0.00019511016
    %v2407 = vadd.f32 %v2406, 0.008332121
    %v2408 = vmul.f32 %v2405, %v2407
    %v2409 = vadd.f32 %v2408, -0.16666654
    %v2410 = vmul.f32 %v2405, %v2409
    %v2411 = vadd.f32 %v2410, 1.0
    %v2412 = vmul.f32 %v2411, %v2396
    %vm2413 = vweird.f32 %v2269
    %v2414 = vadd.s32 %v2397, 3
    %v2415 = vand.u32 %v2414, 3
    %vm2416 = vcmp.lt.s32.totalorder %v2415, 2
    %vm2417 = vcmp.eq.s32.totalorder %v2415, 0
    %v2418 = vxor.u32 %v2412, 2147483648
    %v2419 = vsel %vm2417, %v2404, %v2418
    %vm2420 = vcmp.eq.s32.totalorder %v2415, 2
    %v2421 = vxor.u32 %v2404, 2147483648
    %v2422 = vsel %vm2420, %v2421, %v2412
    %v2423 = vsel %vm2416, %v2419, %v2422
    %v2424 = vsel %vm2413, nan, %v2423
    %2425 = vst.msk [vmem:[#allocation7 + $0xc] sm:$0x1] %vm239, %v2424
    %2426 = vrot.lane.b32.xlu0 %v241, 24
    %v2427 = vpop.permute.xlu0 %2426
    %v2428 = vsel %vm55, %v2427, 0
    %2430 = vmatpush.msra.mxu0 0.0
    %2431 = vmatpush.msra.mxu0 0.0
    %2432 = vmatpush.msra.mxu0 0.0
    %2433 = vmatpush.msra.mxu0 0.0
    %2434 = vmatpush.msra.mxu0 0.0
    %2435 = vmatpush.msra.mxu0 0.0
    %2436 = vmatpush.msra.mxu0 0.0
    %2437 = vmatpush.msra.mxu0 0.0
    %2438 = vmatpush.msra.mxu0 0.0
    %2439 = vmatpush.msra.mxu0 0.0
    %2440 = vmatpush.msra.mxu0 0.0
    %2441 = vmatpush.msra.mxu0 0.0
    %2442 = vmatpush.msra.mxu0 0.0
    %2443 = vmatpush.msra.mxu0 0.0
    %2444 = vmatpush.msra.mxu0 0.0
    %2445 = vmatpush.msra.mxu0 %v54
    %2446 = vmatmul.f32.gmra.mxu0 %v2428
    %v2447 = vpop.f32.mrf.mxu0
    %v2448 = vadd.f32 0.0, %v2447
    %2449 = vdwg.mxu0
    %v2450 = vmul.f32 %v2448, %v52
    %v2451 = vadd.f32 %v2450, %v53
    %v2452 = vand.u32 2147483647, %v2451
    %vm2453 = vcmp.le.f32.partialorder %v2452, 0.7853982
    %vm2454 = vcmp.lt.s32.totalorder %v2451, 0
    %v2455 = vand.u32 %v2451, 2139095040
    %v2456 = vshrl.u32 %v2455, 23
    %v2457 = vsub.s32 %v2456, 127
    %v2458 = vand.u32 2147483647, %v2451
    %v2459 = vand.u32 %v2458, 8388607
    %v2460 = vor.u32 %v2459, 8388608
    %v2461 = vsub.s32 0, %v2460
    %v2462 = vadd.s32 %v2457, 1
    %vm2463 = vcmp.gt.s32.totalorder %v2462, 0
    %v2464 = vsel %vm2463, %v2462, 0
    %v2465 = vshrl.u32 %v2464, 5
    %v2466 = vand.u32 %v2464, 31
    %v2467 = vsub.s32 32, %v2466
    %v2468 = vshrl.u32 683565275, %v2467
    %v2469 = vshll.u32 683565275, %v2466
    %v2470 = vshrl.u32 2475754826, %v2467
    %v2471 = vor.u32 %v2469, %v2470
    %v2472 = vshll.u32 2475754826, %v2466
    %v2473 = vshrl.u32 2131351028, %v2467
    %v2474 = vor.u32 %v2472, %v2473
    %v2475 = vshll.u32 2131351028, %v2466
    %v2476 = vshrl.u32 2102212464, %v2467
    %v2477 = vor.u32 %v2475, %v2476
    %v2478 = vshll.u32 2102212464, %v2466
    %v2479 = vshrl.u32 920167782, %v2467
    %v2480 = vor.u32 %v2478, %v2479
    %v2481 = vshll.u32 920167782, %v2466
    %v2482 = vshrl.u32 1326507024, %v2467
    %v2483 = vor.u32 %v2481, %v2482
    %vm2484 = vcmp.lt.s32.totalorder %v2465, 1
    %vm2485 = vcmp.lt.s32.totalorder %v2465, 2
    %vm2486 = vcmp.lt.s32.totalorder %v2465, 3
    %vm2487 = vcmp.lt.s32.totalorder %v2465, 4
    %v2488 = vsel %vm2484, %v2468, %v2471
    %v2489 = vsel %vm2487, %v2477, 2102212464
    %v2490 = vsel %vm2486, %v2474, %v2489
    %v2491 = vsel %vm2485, %v2488, %v2490
    %v2492 = vsel %vm2484, %v2471, %v2474
    %v2493 = vsel %vm2487, %v2480, 920167782
    %v2494 = vsel %vm2486, %v2477, %v2493
    %v2495 = vsel %vm2485, %v2492, %v2494
    %v2496 = vsel %vm2484, %v2474, %v2477
    %v2497 = vsel %vm2487, %v2483, 1326507024
    %v2498 = vsel %vm2486, %v2480, %v2497
    %v2499 = vsel %vm2485, %v2496, %v2498
    %v2500 = vshll.u32 %v2460, 8
    %v2501 = vand.u32 %v2500, 65535
    %v2502 = vshrl.u32 %v2500, 16
    %v2503 = vand.u32 %v2499, 65535
    %v2504 = vshrl.u32 %v2499, 16
    %v2505 = vmul.u32 %v2501, %v2503
    %v2506 = vmul.u32 %v2501, %v2504
    %v2507 = vmul.u32 %v2502, %v2503
    %v2508 = vmul.u32 %v2502, %v2504
    %v2509 = vshll.u32 %v2506, 16
    %v2510 = vshrl.u32 %v2506, 16
    %v2511 = vshll.u32 %v2507, 16
    %v2512 = vshrl.u32 %v2507, 16
    %vm2513 = vc.u32 %v2505, %v2509
    %v2514 = vsel %vm2513, 1, 0
    %v2515 = vadd.s32 %v2505, %v2509
    %v2516 = vadd.s32 %v2508, %v2514
    %vm2517 = vc.u32 %v2515, %v2511
    %v2518 = vsel %vm2517, 1, 0
    %v2519 = vadd.s32 %v2515, %v2511
    %v2520 = vadd.s32 %v2516, %v2518
    %v2521 = vadd.s32 %v2520, %v2510
    %v2522 = vadd.s32 %v2521, %v2512
    %v2523 = vand.u32 %v2500, 65535
    %v2524 = vshrl.u32 %v2500, 16
    %v2525 = vand.u32 %v2495, 65535
    %v2526 = vshrl.u32 %v2495, 16
    %v2527 = vmul.u32 %v2523, %v2525
    %v2528 = vmul.u32 %v2523, %v2526
    %v2529 = vmul.u32 %v2524, %v2525
    %v2530 = vmul.u32 %v2524, %v2526
    %v2531 = vshll.u32 %v2528, 16
    %v2532 = vshrl.u32 %v2528, 16
    %v2533 = vshll.u32 %v2529, 16
    %v2534 = vshrl.u32 %v2529, 16
    %vm2535 = vc.u32 %v2527, %v2531
    %v2536 = vsel %vm2535, 1, 0
    %v2537 = vadd.s32 %v2527, %v2531
    %v2538 = vadd.s32 %v2530, %v2536
    %vm2539 = vc.u32 %v2537, %v2533
    %v2540 = vsel %vm2539, 1, 0
    %v2541 = vadd.s32 %v2537, %v2533
    %v2542 = vadd.s32 %v2538, %v2540
    %v2543 = vadd.s32 %v2542, %v2532
    %v2544 = vadd.s32 %v2543, %v2534
    %v2545 = vmul.u32 %v2500, %v2491
    %v2546 = vadd.s32 %v2522, %v2541
    %vm2547 = vc.u32 %v2522, %v2541
    %v2548 = vadd.s32 %v2544, 1
    %v2549 = vsel %vm2547, %v2548, %v2544
    %v2550 = vadd.s32 %v2545, %v2549
    %v2551 = vadd.s32 %v2550, 536870912
    %v2552 = vshrl.u32 %v2551, 30
    %v2553 = vshll.u32 %v2552, 30
    %v2554 = vsub.s32 %v2550, %v2553
    %vm2555 = vcmp.lt.s32.totalorder %v2554, 0
    %v2556 = vsub.s32 0, %v2554
    %v2557 = vsel %vm2555, %v2556, %v2554
    %v2558 = vclz %v2557
    %v2559 = vsub.s32 %v2558, 2
    %vm2560 = vcmp.gt.s32.totalorder 0, %v2559
    %v2561 = vsel %vm2560, 0, %v2559
    %v2562 = vsub.s32 32, %v2561
    %v2563 = vshll.u32 %v2554, %v2561
    %v2564 = vshrl.u32 %v2546, %v2562
    %v2565 = vor.u32 %v2563, %v2564
    %v2566 = vsub.s32 4294967266, %v2561
    %v2567 = vadd.s32 %v2566, 127
    %v2568 = vshll.u32 %v2567, 23
    %v2569 = vor.u32 4788187, %v2568
    %v2570 = vand.u32 2147483647, %v2569
    %v2572 = vcvt.s32.f32 %v2565
    %v2573 = vmul.f32 %v2572, %v2570
    %v2574 = vxor.u32 %v2573, 2147483648
    %v2575 = vsel %vm2454, %v2574, %v2573
    %v2576 = vsub.s32 4, %v2552
    %v2577 = vsel %vm2454, %v2576, %v2552
    %v2578 = vsel %vm2453, %v2451, %v2575
    %v2579 = vsel %vm2453, 0, %v2577
    %v2580 = vmul.f32 %v2578, %v2578
    %v2581 = vmul.f32 %v2580, -0.001358992
    %v2582 = vadd.f32 %v2581, 0.041655596
    %v2583 = vmul.f32 %v2580, %v2582
    %v2584 = vadd.f32 %v2583, -0.4999988
    %v2585 = vmul.f32 %v2580, %v2584
    %v2586 = vadd.f32 1.0, %v2585
    %v2587 = vmul.f32 %v2578, %v2578
    %v2588 = vmul.f32 %v2587, -0.00019511016
    %v2589 = vadd.f32 %v2588, 0.008332121
    %v2590 = vmul.f32 %v2587, %v2589
    %v2591 = vadd.f32 %v2590, -0.16666654
    %v2592 = vmul.f32 %v2587, %v2591
    %v2593 = vadd.f32 %v2592, 1.0
    %v2594 = vmul.f32 %v2593, %v2578
    %vm2595 = vweird.f32 %v2451
    %v2596 = vadd.s32 %v2579, 3
    %v2597 = vand.u32 %v2596, 3
    %vm2598 = vcmp.lt.s32.totalorder %v2597, 2
    %vm2599 = vcmp.eq.s32.totalorder %v2597, 0
    %v2600 = vxor.u32 %v2594, 2147483648
    %v2601 = vsel %vm2599, %v2586, %v2600
    %vm2602 = vcmp.eq.s32.totalorder %v2597, 2
    %v2603 = vxor.u32 %v2586, 2147483648
    %v2604 = vsel %vm2602, %v2603, %v2594
    %v2605 = vsel %vm2598, %v2601, %v2604
    %v2606 = vsel %vm2595, nan, %v2605
    %2607 = vst.msk [vmem:[#allocation7 + $0xd] sm:$0x1] %vm239, %v2606
    %2608 = vrot.lane.b32.xlu0 %v241, 16
    %v2609 = vpop.permute.xlu0 %2608
    %v2610 = vsel %vm55, %v2609, 0
    %2612 = vmatpush.msra.mxu0 0.0
    %2613 = vmatpush.msra.mxu0 0.0
    %2614 = vmatpush.msra.mxu0 0.0
    %2615 = vmatpush.msra.mxu0 0.0
    %2616 = vmatpush.msra.mxu0 0.0
    %2617 = vmatpush.msra.mxu0 0.0
    %2618 = vmatpush.msra.mxu0 0.0
    %2619 = vmatpush.msra.mxu0 0.0
    %2620 = vmatpush.msra.mxu0 0.0
    %2621 = vmatpush.msra.mxu0 0.0
    %2622 = vmatpush.msra.mxu0 0.0
    %2623 = vmatpush.msra.mxu0 0.0
    %2624 = vmatpush.msra.mxu0 0.0
    %2625 = vmatpush.msra.mxu0 0.0
    %2626 = vmatpush.msra.mxu0 0.0
    %2627 = vmatpush.msra.mxu0 %v54
    %2628 = vmatmul.f32.gmra.mxu0 %v2610
    %v2629 = vpop.f32.mrf.mxu0
    %v2630 = vadd.f32 0.0, %v2629
    %2631 = vdwg.mxu0
    %v2632 = vmul.f32 %v2630, %v52
    %v2633 = vadd.f32 %v2632, %v53
    %v2634 = vand.u32 2147483647, %v2633
    %vm2635 = vcmp.le.f32.partialorder %v2634, 0.7853982
    %vm2636 = vcmp.lt.s32.totalorder %v2633, 0
    %v2637 = vand.u32 %v2633, 2139095040
    %v2638 = vshrl.u32 %v2637, 23
    %v2639 = vsub.s32 %v2638, 127
    %v2640 = vand.u32 2147483647, %v2633
    %v2641 = vand.u32 %v2640, 8388607
    %v2642 = vor.u32 %v2641, 8388608
    %v2643 = vsub.s32 0, %v2642
    %v2644 = vadd.s32 %v2639, 1
    %vm2645 = vcmp.gt.s32.totalorder %v2644, 0
    %v2646 = vsel %vm2645, %v2644, 0
    %v2647 = vshrl.u32 %v2646, 5
    %v2648 = vand.u32 %v2646, 31
    %v2649 = vsub.s32 32, %v2648
    %v2650 = vshrl.u32 683565275, %v2649
    %v2651 = vshll.u32 683565275, %v2648
    %v2652 = vshrl.u32 2475754826, %v2649
    %v2653 = vor.u32 %v2651, %v2652
    %v2654 = vshll.u32 2475754826, %v2648
    %v2655 = vshrl.u32 2131351028, %v2649
    %v2656 = vor.u32 %v2654, %v2655
    %v2657 = vshll.u32 2131351028, %v2648
    %v2658 = vshrl.u32 2102212464, %v2649
    %v2659 = vor.u32 %v2657, %v2658
    %v2660 = vshll.u32 2102212464, %v2648
    %v2661 = vshrl.u32 920167782, %v2649
    %v2662 = vor.u32 %v2660, %v2661
    %v2663 = vshll.u32 920167782, %v2648
    %v2664 = vshrl.u32 1326507024, %v2649
    %v2665 = vor.u32 %v2663, %v2664
    %vm2666 = vcmp.lt.s32.totalorder %v2647, 1
    %vm2667 = vcmp.lt.s32.totalorder %v2647, 2
    %vm2668 = vcmp.lt.s32.totalorder %v2647, 3
    %vm2669 = vcmp.lt.s32.totalorder %v2647, 4
    %v2670 = vsel %vm2666, %v2650, %v2653
    %v2671 = vsel %vm2669, %v2659, 2102212464
    %v2672 = vsel %vm2668, %v2656, %v2671
    %v2673 = vsel %vm2667, %v2670, %v2672
    %v2674 = vsel %vm2666, %v2653, %v2656
    %v2675 = vsel %vm2669, %v2662, 920167782
    %v2676 = vsel %vm2668, %v2659, %v2675
    %v2677 = vsel %vm2667, %v2674, %v2676
    %v2678 = vsel %vm2666, %v2656, %v2659
    %v2679 = vsel %vm2669, %v2665, 1326507024
    %v2680 = vsel %vm2668, %v2662, %v2679
    %v2681 = vsel %vm2667, %v2678, %v2680
    %v2682 = vshll.u32 %v2642, 8
    %v2683 = vand.u32 %v2682, 65535
    %v2684 = vshrl.u32 %v2682, 16
    %v2685 = vand.u32 %v2681, 65535
    %v2686 = vshrl.u32 %v2681, 16
    %v2687 = vmul.u32 %v2683, %v2685
    %v2688 = vmul.u32 %v2683, %v2686
    %v2689 = vmul.u32 %v2684, %v2685
    %v2690 = vmul.u32 %v2684, %v2686
    %v2691 = vshll.u32 %v2688, 16
    %v2692 = vshrl.u32 %v2688, 16
    %v2693 = vshll.u32 %v2689, 16
    %v2694 = vshrl.u32 %v2689, 16
    %vm2695 = vc.u32 %v2687, %v2691
    %v2696 = vsel %vm2695, 1, 0
    %v2697 = vadd.s32 %v2687, %v2691
    %v2698 = vadd.s32 %v2690, %v2696
    %vm2699 = vc.u32 %v2697, %v2693
    %v2700 = vsel %vm2699, 1, 0
    %v2701 = vadd.s32 %v2697, %v2693
    %v2702 = vadd.s32 %v2698, %v2700
    %v2703 = vadd.s32 %v2702, %v2692
    %v2704 = vadd.s32 %v2703, %v2694
    %v2705 = vand.u32 %v2682, 65535
    %v2706 = vshrl.u32 %v2682, 16
    %v2707 = vand.u32 %v2677, 65535
    %v2708 = vshrl.u32 %v2677, 16
    %v2709 = vmul.u32 %v2705, %v2707
    %v2710 = vmul.u32 %v2705, %v2708
    %v2711 = vmul.u32 %v2706, %v2707
    %v2712 = vmul.u32 %v2706, %v2708
    %v2713 = vshll.u32 %v2710, 16
    %v2714 = vshrl.u32 %v2710, 16
    %v2715 = vshll.u32 %v2711, 16
    %v2716 = vshrl.u32 %v2711, 16
    %vm2717 = vc.u32 %v2709, %v2713
    %v2718 = vsel %vm2717, 1, 0
    %v2719 = vadd.s32 %v2709, %v2713
    %v2720 = vadd.s32 %v2712, %v2718
    %vm2721 = vc.u32 %v2719, %v2715
    %v2722 = vsel %vm2721, 1, 0
    %v2723 = vadd.s32 %v2719, %v2715
    %v2724 = vadd.s32 %v2720, %v2722
    %v2725 = vadd.s32 %v2724, %v2714
    %v2726 = vadd.s32 %v2725, %v2716
    %v2727 = vmul.u32 %v2682, %v2673
    %v2728 = vadd.s32 %v2704, %v2723
    %vm2729 = vc.u32 %v2704, %v2723
    %v2730 = vadd.s32 %v2726, 1
    %v2731 = vsel %vm2729, %v2730, %v2726
    %v2732 = vadd.s32 %v2727, %v2731
    %v2733 = vadd.s32 %v2732, 536870912
    %v2734 = vshrl.u32 %v2733, 30
    %v2735 = vshll.u32 %v2734, 30
    %v2736 = vsub.s32 %v2732, %v2735
    %vm2737 = vcmp.lt.s32.totalorder %v2736, 0
    %v2738 = vsub.s32 0, %v2736
    %v2739 = vsel %vm2737, %v2738, %v2736
    %v2740 = vclz %v2739
    %v2741 = vsub.s32 %v2740, 2
    %vm2742 = vcmp.gt.s32.totalorder 0, %v2741
    %v2743 = vsel %vm2742, 0, %v2741
    %v2744 = vsub.s32 32, %v2743
    %v2745 = vshll.u32 %v2736, %v2743
    %v2746 = vshrl.u32 %v2728, %v2744
    %v2747 = vor.u32 %v2745, %v2746
    %v2748 = vsub.s32 4294967266, %v2743
    %v2749 = vadd.s32 %v2748, 127
    %v2750 = vshll.u32 %v2749, 23
    %v2751 = vor.u32 4788187, %v2750
    %v2752 = vand.u32 2147483647, %v2751
    %v2754 = vcvt.s32.f32 %v2747
    %v2755 = vmul.f32 %v2754, %v2752
    %v2756 = vxor.u32 %v2755, 2147483648
    %v2757 = vsel %vm2636, %v2756, %v2755
    %v2758 = vsub.s32 4, %v2734
    %v2759 = vsel %vm2636, %v2758, %v2734
    %v2760 = vsel %vm2635, %v2633, %v2757
    %v2761 = vsel %vm2635, 0, %v2759
    %v2762 = vmul.f32 %v2760, %v2760
    %v2763 = vmul.f32 %v2762, -0.001358992
    %v2764 = vadd.f32 %v2763, 0.041655596
    %v2765 = vmul.f32 %v2762, %v2764
    %v2766 = vadd.f32 %v2765, -0.4999988
    %v2767 = vmul.f32 %v2762, %v2766
    %v2768 = vadd.f32 1.0, %v2767
    %v2769 = vmul.f32 %v2760, %v2760
    %v2770 = vmul.f32 %v2769, -0.00019511016
    %v2771 = vadd.f32 %v2770, 0.008332121
    %v2772 = vmul.f32 %v2769, %v2771
    %v2773 = vadd.f32 %v2772, -0.16666654
    %v2774 = vmul.f32 %v2769, %v2773
    %v2775 = vadd.f32 %v2774, 1.0
    %v2776 = vmul.f32 %v2775, %v2760
    %vm2777 = vweird.f32 %v2633
    %v2778 = vadd.s32 %v2761, 3
    %v2779 = vand.u32 %v2778, 3
    %vm2780 = vcmp.lt.s32.totalorder %v2779, 2
    %vm2781 = vcmp.eq.s32.totalorder %v2779, 0
    %v2782 = vxor.u32 %v2776, 2147483648
    %v2783 = vsel %vm2781, %v2768, %v2782
    %vm2784 = vcmp.eq.s32.totalorder %v2779, 2
    %v2785 = vxor.u32 %v2768, 2147483648
    %v2786 = vsel %vm2784, %v2785, %v2776
    %v2787 = vsel %vm2780, %v2783, %v2786
    %v2788 = vsel %vm2777, nan, %v2787
    %2789 = vst.msk [vmem:[#allocation7 + $0xe] sm:$0x1] %vm239, %v2788
    %2790 = vrot.lane.b32.xlu0 %v241, 8
    %v2791 = vpop.permute.xlu0 %2790
    %v2792 = vsel %vm55, %v2791, 0
    %2794 = vmatpush.msra.mxu0 0.0
    %2795 = vmatpush.msra.mxu0 0.0
    %2796 = vmatpush.msra.mxu0 0.0
    %2797 = vmatpush.msra.mxu0 0.0
    %2798 = vmatpush.msra.mxu0 0.0
    %2799 = vmatpush.msra.mxu0 0.0
    %2800 = vmatpush.msra.mxu0 0.0
    %2801 = vmatpush.msra.mxu0 0.0
    %2802 = vmatpush.msra.mxu0 0.0
    %2803 = vmatpush.msra.mxu0 0.0
    %2804 = vmatpush.msra.mxu0 0.0
    %2805 = vmatpush.msra.mxu0 0.0
    %2806 = vmatpush.msra.mxu0 0.0
    %2807 = vmatpush.msra.mxu0 0.0
    %2808 = vmatpush.msra.mxu0 0.0
    %2809 = vmatpush.msra.mxu0 %v54
    %2810 = vmatmul.f32.gmra.mxu0 %v2792
    %v2811 = vpop.f32.mrf.mxu0
    %v2812 = vadd.f32 0.0, %v2811
    %2813 = vdwg.mxu0
    %v2814 = vmul.f32 %v2812, %v52
    %v2815 = vadd.f32 %v2814, %v53
    %v2816 = vand.u32 2147483647, %v2815
    %vm2817 = vcmp.le.f32.partialorder %v2816, 0.7853982
    %vm2818 = vcmp.lt.s32.totalorder %v2815, 0
    %v2819 = vand.u32 %v2815, 2139095040
    %v2820 = vshrl.u32 %v2819, 23
    %v2821 = vsub.s32 %v2820, 127
    %v2822 = vand.u32 2147483647, %v2815
    %v2823 = vand.u32 %v2822, 8388607
    %v2824 = vor.u32 %v2823, 8388608
    %v2825 = vsub.s32 0, %v2824
    %v2826 = vadd.s32 %v2821, 1
    %vm2827 = vcmp.gt.s32.totalorder %v2826, 0
    %v2828 = vsel %vm2827, %v2826, 0
    %v2829 = vshrl.u32 %v2828, 5
    %v2830 = vand.u32 %v2828, 31
    %v2831 = vsub.s32 32, %v2830
    %v2832 = vshrl.u32 683565275, %v2831
    %v2833 = vshll.u32 683565275, %v2830
    %v2834 = vshrl.u32 2475754826, %v2831
    %v2835 = vor.u32 %v2833, %v2834
    %v2836 = vshll.u32 2475754826, %v2830
    %v2837 = vshrl.u32 2131351028, %v2831
    %v2838 = vor.u32 %v2836, %v2837
    %v2839 = vshll.u32 2131351028, %v2830
    %v2840 = vshrl.u32 2102212464, %v2831
    %v2841 = vor.u32 %v2839, %v2840
    %v2842 = vshll.u32 2102212464, %v2830
    %v2843 = vshrl.u32 920167782, %v2831
    %v2844 = vor.u32 %v2842, %v2843
    %v2845 = vshll.u32 920167782, %v2830
    %v2846 = vshrl.u32 1326507024, %v2831
    %v2847 = vor.u32 %v2845, %v2846
    %vm2848 = vcmp.lt.s32.totalorder %v2829, 1
    %vm2849 = vcmp.lt.s32.totalorder %v2829, 2
    %vm2850 = vcmp.lt.s32.totalorder %v2829, 3
    %vm2851 = vcmp.lt.s32.totalorder %v2829, 4
    %v2852 = vsel %vm2848, %v2832, %v2835
    %v2853 = vsel %vm2851, %v2841, 2102212464
    %v2854 = vsel %vm2850, %v2838, %v2853
    %v2855 = vsel %vm2849, %v2852, %v2854
    %v2856 = vsel %vm2848, %v2835, %v2838
    %v2857 = vsel %vm2851, %v2844, 920167782
    %v2858 = vsel %vm2850, %v2841, %v2857
    %v2859 = vsel %vm2849, %v2856, %v2858
    %v2860 = vsel %vm2848, %v2838, %v2841
    %v2861 = vsel %vm2851, %v2847, 1326507024
    %v2862 = vsel %vm2850, %v2844, %v2861
    %v2863 = vsel %vm2849, %v2860, %v2862
    %v2864 = vshll.u32 %v2824, 8
    %v2865 = vand.u32 %v2864, 65535
    %v2866 = vshrl.u32 %v2864, 16
    %v2867 = vand.u32 %v2863, 65535
    %v2868 = vshrl.u32 %v2863, 16
    %v2869 = vmul.u32 %v2865, %v2867
    %v2870 = vmul.u32 %v2865, %v2868
    %v2871 = vmul.u32 %v2866, %v2867
    %v2872 = vmul.u32 %v2866, %v2868
    %v2873 = vshll.u32 %v2870, 16
    %v2874 = vshrl.u32 %v2870, 16
    %v2875 = vshll.u32 %v2871, 16
    %v2876 = vshrl.u32 %v2871, 16
    %vm2877 = vc.u32 %v2869, %v2873
    %v2878 = vsel %vm2877, 1, 0
    %v2879 = vadd.s32 %v2869, %v2873
    %v2880 = vadd.s32 %v2872, %v2878
    %vm2881 = vc.u32 %v2879, %v2875
    %v2882 = vsel %vm2881, 1, 0
    %v2883 = vadd.s32 %v2879, %v2875
    %v2884 = vadd.s32 %v2880, %v2882
    %v2885 = vadd.s32 %v2884, %v2874
    %v2886 = vadd.s32 %v2885, %v2876
    %v2887 = vand.u32 %v2864, 65535
    %v2888 = vshrl.u32 %v2864, 16
    %v2889 = vand.u32 %v2859, 65535
    %v2890 = vshrl.u32 %v2859, 16
    %v2891 = vmul.u32 %v2887, %v2889
    %v2892 = vmul.u32 %v2887, %v2890
    %v2893 = vmul.u32 %v2888, %v2889
    %v2894 = vmul.u32 %v2888, %v2890
    %v2895 = vshll.u32 %v2892, 16
    %v2896 = vshrl.u32 %v2892, 16
    %v2897 = vshll.u32 %v2893, 16
    %v2898 = vshrl.u32 %v2893, 16
    %vm2899 = vc.u32 %v2891, %v2895
    %v2900 = vsel %vm2899, 1, 0
    %v2901 = vadd.s32 %v2891, %v2895
    %v2902 = vadd.s32 %v2894, %v2900
    %vm2903 = vc.u32 %v2901, %v2897
    %v2904 = vsel %vm2903, 1, 0
    %v2905 = vadd.s32 %v2901, %v2897
    %v2906 = vadd.s32 %v2902, %v2904
    %v2907 = vadd.s32 %v2906, %v2896
    %v2908 = vadd.s32 %v2907, %v2898
    %v2909 = vmul.u32 %v2864, %v2855
    %v2910 = vadd.s32 %v2886, %v2905
    %vm2911 = vc.u32 %v2886, %v2905
    %v2912 = vadd.s32 %v2908, 1
    %v2913 = vsel %vm2911, %v2912, %v2908
    %v2914 = vadd.s32 %v2909, %v2913
    %v2915 = vadd.s32 %v2914, 536870912
    %v2916 = vshrl.u32 %v2915, 30
    %v2917 = vshll.u32 %v2916, 30
    %v2918 = vsub.s32 %v2914, %v2917
    %vm2919 = vcmp.lt.s32.totalorder %v2918, 0
    %v2920 = vsub.s32 0, %v2918
    %v2921 = vsel %vm2919, %v2920, %v2918
    %v2922 = vclz %v2921
    %v2923 = vsub.s32 %v2922, 2
    %vm2924 = vcmp.gt.s32.totalorder 0, %v2923
    %v2925 = vsel %vm2924, 0, %v2923
    %v2926 = vsub.s32 32, %v2925
    %v2927 = vshll.u32 %v2918, %v2925
    %v2928 = vshrl.u32 %v2910, %v2926
    %v2929 = vor.u32 %v2927, %v2928
    %v2930 = vsub.s32 4294967266, %v2925
    %v2931 = vadd.s32 %v2930, 127
    %v2932 = vshll.u32 %v2931, 23
    %v2933 = vor.u32 4788187, %v2932
    %v2934 = vand.u32 2147483647, %v2933
    %v2936 = vcvt.s32.f32 %v2929
    %v2937 = vmul.f32 %v2936, %v2934
    %v2938 = vxor.u32 %v2937, 2147483648
    %v2939 = vsel %vm2818, %v2938, %v2937
    %v2940 = vsub.s32 4, %v2916
    %v2941 = vsel %vm2818, %v2940, %v2916
    %v2942 = vsel %vm2817, %v2815, %v2939
    %v2943 = vsel %vm2817, 0, %v2941
    %v2944 = vmul.f32 %v2942, %v2942
    %v2945 = vmul.f32 %v2944, -0.001358992
    %v2946 = vadd.f32 %v2945, 0.041655596
    %v2947 = vmul.f32 %v2944, %v2946
    %v2948 = vadd.f32 %v2947, -0.4999988
    %v2949 = vmul.f32 %v2944, %v2948
    %v2950 = vadd.f32 1.0, %v2949
    %v2951 = vmul.f32 %v2942, %v2942
    %v2952 = vmul.f32 %v2951, -0.00019511016
    %v2953 = vadd.f32 %v2952, 0.008332121
    %v2954 = vmul.f32 %v2951, %v2953
    %v2955 = vadd.f32 %v2954, -0.16666654
    %v2956 = vmul.f32 %v2951, %v2955
    %v2957 = vadd.f32 %v2956, 1.0
    %v2958 = vmul.f32 %v2957, %v2942
    %vm2959 = vweird.f32 %v2815
    %v2960 = vadd.s32 %v2943, 3
    %v2961 = vand.u32 %v2960, 3
    %vm2962 = vcmp.lt.s32.totalorder %v2961, 2
    %vm2963 = vcmp.eq.s32.totalorder %v2961, 0
    %v2964 = vxor.u32 %v2958, 2147483648
    %v2965 = vsel %vm2963, %v2950, %v2964
    %vm2966 = vcmp.eq.s32.totalorder %v2961, 2
    %v2967 = vxor.u32 %v2950, 2147483648
    %v2968 = vsel %vm2966, %v2967, %v2958
    %v2969 = vsel %vm2962, %v2965, %v2968
    %v2970 = vsel %vm2959, nan, %v2969
    %2971 = vst.msk [vmem:[#allocation7 + $0xf] sm:$0x1] %vm239, %v2970
    // Predicated region
    $region26: #{tpu_custom_call.1} parent=1 // pred_check
      _
    $region27: #{tpu_custom_call.1} parent=1 // pred_check_branch
      %2973 = sbr.rel (0) target = $region29
    $region28: #{tpu_custom_call.1} parent=1 // pred_region
      %2975 = vsyncadd [#allocation4], 0
      %s2977 = sshll.u32 [#allocation7], 4
      %s2978 = int_to_ptr.vmem [resolvable:$true] %s2977
      %s2979 = sshll.u32 %s4, 4
      %s2980 = int_to_ptr.hbm [resolvable:$true] %s2979
      %2982 = dma.vmem_to_hbm [thread:$0]  %s2978, 256, %s2980, [#allocation4]
    $region29: #{tpu_custom_call.1} parent=1 // pred_fallthru
      _
    // Predicated region
    $region30: #{tpu_custom_call.1} parent=1 // pred_check
      _
    $region31: #{tpu_custom_call.1} parent=1 // pred_check_branch
      %2984 = sbr.rel (0) target = $region33
    $region32: #{tpu_custom_call.1} parent=1 // pred_region
      %2986 = dma.done [#allocation4], 256
    $region33: #{tpu_custom_call.1} parent=1 // pred_fallthru
      _
    %2987 = vsyncpa [#allocation3], 1
    %2988 = vsyncpa [#allocation6], 1
    %2989 = vsyncpa [#allocation4], 1

</llo_original>
